<compile_context>
chip_gen: v7x
topology: tpu7x:2x2x1
jax: 0.10.0
libtpu: 0.0.40
codegen_flags: <defaults>
</compile_context>

<pallas_src>
import functools

import jax
import jax.numpy as jnp
from jax.experimental import pallas as pl
from jax.experimental.pallas import tpu as pltpu


# ----------------------------------------------------------------------------
# helpers
# ----------------------------------------------------------------------------
def _round_up(x, m):
    return (x + m - 1) // m * m


def _pick_tm(m, cap):
    """Largest multiple of 8 <= cap that divides round_up(m, 8)."""
    m8 = _round_up(m, 8)
    cap = max(8, min(_round_up(cap, 8), m8))
    for t in range(cap, 7, -8):
        if m8 % t == 0:
            return t
    return 8


def _pick_bn(n, cap):
    """Largest divisor of n that is <= cap and (a multiple of 8 or == n)."""
    cap = max(1, min(cap, n))
    for d in range(cap, 0, -1):
        if n % d == 0 and (d % 8 == 0 or d == n):
            return d
    return n


# ----------------------------------------------------------------------------
# generic fused linear:  act(x @ w + b), M-tiled, bf16 MXU ops, f32 accumulation
# ----------------------------------------------------------------------------
def _linear_kernel(x_ref, w_ref, b_ref, o_ref, *, negative_slope):
    acc = jnp.dot(x_ref[...], w_ref[...], preferred_element_type=jnp.float32)
    acc = acc + b_ref[...]
    if negative_slope is not None:
        acc = jnp.where(acc >= 0.0, acc, acc * negative_slope)
    o_ref[...] = acc.astype(o_ref.dtype)


def fused_linear(x, w, b, *, negative_slope=None, tm_cap=512,
                 out_dtype=jnp.float32):
    """Pallas-fused act(x @ w + b).  x: [M, K] , w: [K, N], b: [N]."""
    M, K = x.shape
    K2, Nout = w.shape
    assert K == K2, (K, K2)
    tm = _pick_tm(M, tm_cap)
    m_pad = _round_up(M, tm)
    x_p = x if m_pad == M else jnp.pad(x, ((0, m_pad - M), (0, 0)))
    x_p = x_p.astype(jnp.bfloat16)
    w_b = w.astype(jnp.bfloat16)
    b2 = b.reshape(1, Nout).astype(jnp.float32)
    out = pl.pallas_call(
        functools.partial(_linear_kernel, negative_slope=negative_slope),
        out_shape=jax.ShapeDtypeStruct((m_pad, Nout), out_dtype),
        grid=(m_pad // tm,),
        in_specs=[
            pl.BlockSpec((tm, K), lambda i: (i, 0)),
            pl.BlockSpec((K, Nout), lambda i: (0, 0)),      # VMEM-resident weights
            pl.BlockSpec((1, Nout), lambda i: (0, 0)),
        ],
        out_specs=pl.BlockSpec((tm, Nout), lambda i: (i, 0)),
        compiler_params=pltpu.CompilerParams(dimension_semantics=("parallel",)),
        cost_estimate=pl.CostEstimate(
            flops=2 * m_pad * K * Nout,
            transcendentals=0,
            bytes_accessed=int((m_pad * K + K * Nout) * 2 + Nout * 4
                               + m_pad * Nout * jnp.dtype(out_dtype).itemsize)),
    )(x_p, w_b, b2)
    return out if m_pad == M else out[:M]


# ----------------------------------------------------------------------------
# conv 3x3 / stride 2 / pad 1  +  LeakyReLU(0.2), NHWC, as one im2col matmul
# ----------------------------------------------------------------------------
def _im2col_s2(x_nhwc):
    """3x3/stride-2/pad-1 patches, columns in (ky, kx, c) order: [N*Ho*Wo, 9*C]."""
    N, H, W, C = x_nhwc.shape
    Ho, Wo = H // 2, W // 2
    xp = jnp.pad(x_nhwc, ((0, 0), (1, 1), (1, 1), (0, 0)))
    cols = [xp[:, ky:ky + 2 * Ho:2, kx:kx + 2 * Wo:2, :]
            for ky in range(3) for kx in range(3)]
    return jnp.concatenate(cols, axis=-1).reshape(N * Ho * Wo, 9 * C)


def conv3x3_s2_leakyrelu(x_nhwc, w_hwio, b, *, slope=0.2, tm_cap=512,
                         out_dtype=jnp.bfloat16):
    N, H, W, C = x_nhwc.shape
    Cout = w_hwio.shape[-1]
    Ho, Wo = H // 2, W // 2
    patches = _im2col_s2(x_nhwc)                       # [N*Ho*Wo, 9*C] (XLA glue)
    w_mat = w_hwio.reshape(9 * C, Cout)                # (ky, kx, c) row order
    out = fused_linear(patches, w_mat, b, negative_slope=slope,
                       tm_cap=tm_cap, out_dtype=out_dtype)
    return out.reshape(N, Ho, Wo, Cout)


# ----------------------------------------------------------------------------
# conv3 + LeakyReLU + Flatten + Linear(4096 -> 1), fused in one kernel
# ----------------------------------------------------------------------------
def _conv3_fc_kernel(p_ref, w_ref, b_ref, fcw_ref, fcb_ref, o_ref,
                     *, rows_per_img, slope):
    """One aligned MXU matmul (K = 9*C) + bias + LeakyReLU, then the 1-wide fc
    as a VPU multiply + reduce, so the critic score never leaves VMEM unfused."""
    act = jnp.dot(p_ref[...], w_ref[...], preferred_element_type=jnp.float32)
    act = act + b_ref[...]
    act = jnp.where(act >= 0.0, act, act * slope)
    bn = o_ref.shape[0]
    act3 = act.reshape(bn, rows_per_img, act.shape[-1])       # [BN, 16, Cout]
    part = jnp.sum(act3 * fcw_ref[...], axis=2)               # [BN, 16]
    o_ref[...] = (jnp.sum(part, axis=1, keepdims=True)
                  + fcb_ref[...]).astype(o_ref.dtype)


def conv3_leakyrelu_fc(x_nhwc, w_hwio, b, fc_w, fc_b, *, slope=0.2,
                       row_target=256):
    N, H, W, C = x_nhwc.shape
    Cout = w_hwio.shape[-1]
    Ho, Wo = H // 2, W // 2
    rows = Ho * Wo                                            # 16
    patches = _im2col_s2(x_nhwc).astype(jnp.bfloat16)         # [N*16, 9*C]
    w_mat = w_hwio.reshape(9 * C, Cout).astype(jnp.bfloat16)
    b2 = b.reshape(1, Cout).astype(jnp.float32)
    # Permute fc rows once: NCHW-flatten (c,h,w) order -> NHWC (h,w,c) order, so
    # the conv3 activations never need a transpose or an HBM round trip.
    fcw = jnp.transpose(fc_w.reshape(Cout, Ho, Wo), (1, 2, 0)).reshape(rows, Cout)
    fcw = fcw.astype(jnp.float32)
    fcb = fc_b.reshape(1, 1).astype(jnp.float32)
    bn = _pick_bn(N, max(1, row_target // rows))
    return pl.pallas_call(
        functools.partial(_conv3_fc_kernel, rows_per_img=rows, slope=slope),
        out_shape=jax.ShapeDtypeStruct((N, 1), jnp.float32),
        grid=(N // bn,),
        in_specs=[
            pl.BlockSpec((bn * rows, 9 * C), lambda i: (i, 0)),
            pl.BlockSpec((9 * C, Cout), lambda i: (0, 0)),    # VMEM-resident
            pl.BlockSpec((1, Cout), lambda i: (0, 0)),
            pl.BlockSpec((rows, Cout), lambda i: (0, 0)),
            pl.BlockSpec((1, 1), lambda i: (0, 0)),
        ],
        out_specs=pl.BlockSpec((bn, 1), lambda i: (i, 0)),
        compiler_params=pltpu.CompilerParams(dimension_semantics=("parallel",)),
        cost_estimate=pl.CostEstimate(
            flops=2 * N * rows * 9 * C * Cout + 2 * N * rows * Cout,
            transcendentals=0,
            bytes_accessed=int(patches.size * 2 + w_mat.size * 2
                               + (rows + 1) * Cout * 4 + N * 4)),
    )(patches, w_mat, b2, fcw, fcb)


# ----------------------------------------------------------------------------
# Discriminator forward
# ----------------------------------------------------------------------------
def discriminator_forward(params, images_nchw, labels):
    N = images_nchw.shape[0]
    # TODO(synk): nn.Embedding lookup is a gather; it stays in XLA (jnp.take).
    emb = jnp.take(params["emb_w"], labels, axis=0)                    # [N, 100]
    lab = fused_linear(emb, params["lin_w"], params["lin_b"],
                       tm_cap=256, out_dtype=jnp.float32)              # [N, 1024]
    lab_map = lab.reshape(N, 32, 32, 1)                                # NHWC
    # Single NCHW->NHWC transpose of the 3-channel images; channel order after
    # the concat ([img0, img1, img2, label]) matches torch.cat(dim=1).
    imgs = jnp.transpose(images_nchw, (0, 2, 3, 1))                    # [N, 32, 32, 3]
    h = jnp.concatenate([imgs, lab_map], axis=-1)                      # [N, 32, 32, 4]
    h = conv3x3_s2_leakyrelu(h, params["conv1_w"], params["conv1_b"])  # [N,16,16,64] bf16
    h = conv3x3_s2_leakyrelu(h, params["conv2_w"], params["conv2_b"])  # [N, 8, 8,128] bf16
    y = conv3_leakyrelu_fc(h, params["conv3_w"], params["conv3_b"],
                           params["fc_w"], params["fc_b"])             # [N, 1]
    return y


# ----------------------------------------------------------------------------
# Deterministic parameter init (shapes follow the PyTorch module; Linear weights
# stored [in, out], conv weights HWIO, fc rows in NCHW-flatten order like torch).
# ----------------------------------------------------------------------------
def init_params(key, n_classes=10, embedding_dim=100):
    ks = jax.random.split(key, 10)

    def u(k, shape, fan_in):
        bound = 1.0 / jnp.sqrt(jnp.float32(fan_in))
        return jax.random.uniform(k, shape, jnp.float32, -bound, bound)

    return {
        "emb_w": jax.random.normal(ks[0], (n_classes, embedding_dim), jnp.float32),
        "lin_w": u(ks[1], (embedding_dim, 32 * 32), embedding_dim),
        "lin_b": u(ks[2], (32 * 32,), embedding_dim),
        "conv1_w": u(ks[3], (3, 3, 4, 64), 4 * 9),
        "conv1_b": u(ks[4], (64,), 4 * 9),
        "conv2_w": u(ks[5], (3, 3, 64, 128), 64 * 9),
        "conv2_b": u(ks[6], (128,), 64 * 9),
        "conv3_w": u(ks[7], (3, 3, 128, 256), 128 * 9),
        "conv3_b": u(ks[8], (256,), 128 * 9),
        "fc_w": u(ks[9], (256 * 4 * 4, 1), 256 * 4 * 4),
        "fc_b": jnp.zeros((1,), jnp.float32),
    }


# ----------------------------------------------------------------------------
# Pure-XLA reference with matching precision (bf16 matmul operands, f32 accum)
# ----------------------------------------------------------------------------
def reference_forward(params, images_nchw, labels):
    N = images_nchw.shape[0]
    emb = params["emb_w"][labels]
    lab = jnp.dot(emb.astype(jnp.bfloat16), params["lin_w"].astype(jnp.bfloat16),
                  preferred_element_type=jnp.float32) + params["lin_b"]
    lab_map = lab.reshape(N, 1, 32, 32)
    h = jnp.concatenate([images_nchw, lab_map], axis=1)
    for i in (1, 2, 3):
        w = params[f"conv{i}_w"].astype(jnp.bfloat16)
        b = params[f"conv{i}_b"]
        h = jax.lax.conv_general_dilated(
            h.astype(jnp.bfloat16), w, window_strides=(2, 2),
            padding=((1, 1), (1, 1)),
            dimension_numbers=("NCHW", "HWIO", "NCHW"),
            preferred_element_type=jnp.float32)
        h = h + b[None, :, None, None]
        h = jnp.where(h >= 0.0, h, 0.2 * h)
    flat = h.reshape(N, -1)
    return jnp.dot(flat, params["fc_w"],
                   precision=jax.lax.Precision.HIGHEST) + params["fc_b"]


if __name__ == "__main__":
    key = jax.random.PRNGKey(0)
    k_img, k_lab, k_par = jax.random.split(key, 3)

    N = 2  # small batch; spatial size is fixed at 32x32 by the architecture
    images = jax.random.normal(k_img, (N, 3, 32, 32), jnp.float32)
    labels = jax.random.randint(k_lab, (N,), 0, 10, dtype=jnp.int32)
    params = init_params(k_par)

    y = jax.jit(discriminator_forward)(params, images, labels)
    y = jax.block_until_ready(y)
    assert y.shape == (N, 1), y.shape
    assert bool(jnp.all(jnp.isfinite(y)))

    y_ref = reference_forward(params, images, labels)
    assert jnp.allclose(y, y_ref, rtol=1e-2, atol=1e-2), (y, y_ref)

    print("KERNEL_OK")
</pallas_src>

<mosaic_0001>
module attributes {stable_mosaic.version = 11 : i64} {
  func.func @_linear_kernel(%arg0: i32, %arg1: memref<8x100xbf16, #tpu.memory_space<vmem>>, %arg2: memref<100x1024xbf16, #tpu.memory_space<vmem>>, %arg3: memref<1x1024xf32, #tpu.memory_space<vmem>>, %arg4: memref<8x1024xf32, #tpu.memory_space<vmem>>) attributes {dimension_semantics = [#tpu.dimension_semantics<parallel>], iteration_bounds = array<i64: 1>, scalar_prefetch = 0 : i64, scratch_operands = 0 : i64, tpu.core_type = #tpu.core_type<tc>, window_params = [{transform_indices = @transform_0, window_bounds = array<i64: 8, 100>}, {pipeline_mode = #tpu.pipeline_mode<synchronous>, transform_indices = @transform_1, window_bounds = array<i64: 100, 1024>}, {pipeline_mode = #tpu.pipeline_mode<synchronous>, transform_indices = @transform_2, window_bounds = array<i64: 1, 1024>}, {transform_indices = @transform_3, window_bounds = array<i64: 8, 1024>}]} {
    %c0 = arith.constant 0 : index
    %c0_0 = arith.constant 0 : index
    %0 = vector.load %arg1[%c0, %c0_0] : memref<8x100xbf16, #tpu.memory_space<vmem>>, vector<8x100xbf16>
    %c0_1 = arith.constant 0 : index
    %c0_2 = arith.constant 0 : index
    %1 = vector.load %arg2[%c0_1, %c0_2] : memref<100x1024xbf16, #tpu.memory_space<vmem>>, vector<100x1024xbf16>
    %cst = arith.constant dense<0.000000e+00> : vector<8x1024xf32>
    %2 = tpu.matmul %0, %1, %cst {dimension_numbers = #tpu.dot_dimension_numbers<[1], [0], [0], [1], [0, 0, 1, 1], [], []>} : vector<8x100xbf16>, vector<100x1024xbf16>, vector<8x1024xf32> -> vector<8x1024xf32>
    %c0_3 = arith.constant 0 : index
    %c0_4 = arith.constant 0 : index
    %3 = vector.load %arg3[%c0_3, %c0_4] : memref<1x1024xf32, #tpu.memory_space<vmem>>, vector<1x1024xf32>
    %4 = vector.broadcast %3 : vector<1x1024xf32> to vector<8x1024xf32>
    %5 = arith.addf %2, %4 : vector<8x1024xf32>
    %c0_5 = arith.constant 0 : index
    %c0_6 = arith.constant 0 : index
    %6 = vector.load %arg4[%c0_5, %c0_6] : memref<8x1024xf32, #tpu.memory_space<vmem>>, vector<8x1024xf32>
    tpu.vector_store %arg4[%c0_5, %c0_6], %5 {strides = array<i32>} : memref<8x1024xf32, #tpu.memory_space<vmem>>, vector<8x1024xf32>,
    return
  }
  func.func @transform_0(%arg0: i32) -> (i32, i32) {
    %c0_i32 = arith.constant 0 : i32
    %c0_i32_0 = arith.constant 0 : i32
    return %arg0, %c0_i32 : i32, i32
  }
  func.func @transform_1(%arg0: i32) -> (i32, i32) {
    %c0_i32 = arith.constant 0 : i32
    %c0_i32_0 = arith.constant 0 : i32
    %c0_i32_1 = arith.constant 0 : i32
    return %c0_i32, %c0_i32_0 : i32, i32
  }
  func.func @transform_2(%arg0: i32) -> (i32, i32) {
    %c0_i32 = arith.constant 0 : i32
    %c0_i32_0 = arith.constant 0 : i32
    %c0_i32_1 = arith.constant 0 : i32
    return %c0_i32, %c0_i32_0 : i32, i32
  }
  func.func @transform_3(%arg0: i32) -> (i32, i32) {
    %c0_i32 = arith.constant 0 : i32
    %c0_i32_0 = arith.constant 0 : i32
    return %arg0, %c0_i32 : i32, i32
  }
}

module attributes {stable_mosaic.version = 11 : i64} {
  func.func @_linear_kernel(%arg0: i32, %arg1: memref<512x36xbf16, #tpu.memory_space<vmem>>, %arg2: memref<36x64xbf16, #tpu.memory_space<vmem>>, %arg3: memref<1x64xf32, #tpu.memory_space<vmem>>, %arg4: memref<512x64xbf16, #tpu.memory_space<vmem>>) attributes {dimension_semantics = [#tpu.dimension_semantics<parallel>], iteration_bounds = array<i64: 1>, scalar_prefetch = 0 : i64, scratch_operands = 0 : i64, tpu.core_type = #tpu.core_type<tc>, window_params = [{transform_indices = @transform_0, window_bounds = array<i64: 512, 36>}, {pipeline_mode = #tpu.pipeline_mode<synchronous>, transform_indices = @transform_1, window_bounds = array<i64: 36, 64>}, {pipeline_mode = #tpu.pipeline_mode<synchronous>, transform_indices = @transform_2, window_bounds = array<i64: 1, 64>}, {transform_indices = @transform_3, window_bounds = array<i64: 512, 64>}]} {
    %c0 = arith.constant 0 : index
    %c0_0 = arith.constant 0 : index
    %0 = vector.load %arg1[%c0, %c0_0] : memref<512x36xbf16, #tpu.memory_space<vmem>>, vector<512x36xbf16>
    %c0_1 = arith.constant 0 : index
    %c0_2 = arith.constant 0 : index
    %1 = vector.load %arg2[%c0_1, %c0_2] : memref<36x64xbf16, #tpu.memory_space<vmem>>, vector<36x64xbf16>
    %cst = arith.constant dense<0.000000e+00> : vector<512x64xf32>
    %2 = tpu.matmul %0, %1, %cst {dimension_numbers = #tpu.dot_dimension_numbers<[1], [0], [0], [1], [0, 0, 1, 1], [], []>} : vector<512x36xbf16>, vector<36x64xbf16>, vector<512x64xf32> -> vector<512x64xf32>
    %c0_3 = arith.constant 0 : index
    %c0_4 = arith.constant 0 : index
    %3 = vector.load %arg3[%c0_3, %c0_4] : memref<1x64xf32, #tpu.memory_space<vmem>>, vector<1x64xf32>
    %4 = vector.broadcast %3 : vector<1x64xf32> to vector<512x64xf32>
    %5 = arith.addf %2, %4 : vector<512x64xf32>
    %cst_5 = arith.constant 0.000000e+00 : f32
    %6 = vector.broadcast %cst_5 : f32 to vector<512x64xf32>
    %7 = arith.cmpf oge, %5, %6 : vector<512x64xf32>
    %cst_6 = arith.constant 2.000000e-01 : f32
    %8 = vector.broadcast %cst_6 : f32 to vector<512x64xf32>
    %9 = arith.mulf %5, %8 : vector<512x64xf32>
    %10 = arith.select %7, %5, %9 : vector<512x64xi1>, vector<512x64xf32>
    %11 = arith.truncf %10 : vector<512x64xf32> to vector<512x64xbf16>
    %c0_7 = arith.constant 0 : index
    %c0_8 = arith.constant 0 : index
    %12 = vector.load %arg4[%c0_7, %c0_8] : memref<512x64xbf16, #tpu.memory_space<vmem>>, vector<512x64xbf16>
    tpu.vector_store %arg4[%c0_7, %c0_8], %11 {strides = array<i32>} : memref<512x64xbf16, #tpu.memory_space<vmem>>, vector<512x64xbf16>,
    return
  }
  func.func @transform_0(%arg0: i32) -> (i32, i32) {
    %c0_i32 = arith.constant 0 : i32
    %c0_i32_0 = arith.constant 0 : i32
    return %arg0, %c0_i32 : i32, i32
  }
  func.func @transform_1(%arg0: i32) -> (i32, i32) {
    %c0_i32 = arith.constant 0 : i32
    %c0_i32_0 = arith.constant 0 : i32
    %c0_i32_1 = arith.constant 0 : i32
    return %c0_i32, %c0_i32_0 : i32, i32
  }
  func.func @transform_2(%arg0: i32) -> (i32, i32) {
    %c0_i32 = arith.constant 0 : i32
    %c0_i32_0 = arith.constant 0 : i32
    %c0_i32_1 = arith.constant 0 : i32
    return %c0_i32, %c0_i32_0 : i32, i32
  }
  func.func @transform_3(%arg0: i32) -> (i32, i32) {
    %c0_i32 = arith.constant 0 : i32
    %c0_i32_0 = arith.constant 0 : i32
    return %arg0, %c0_i32 : i32, i32
  }
}

module attributes {stable_mosaic.version = 11 : i64} {
  func.func @_linear_kernel(%arg0: i32, %arg1: memref<128x576xbf16, #tpu.memory_space<vmem>>, %arg2: memref<576x128xbf16, #tpu.memory_space<vmem>>, %arg3: memref<1x128xf32, #tpu.memory_space<vmem>>, %arg4: memref<128x128xbf16, #tpu.memory_space<vmem>>) attributes {dimension_semantics = [#tpu.dimension_semantics<parallel>], iteration_bounds = array<i64: 1>, scalar_prefetch = 0 : i64, scratch_operands = 0 : i64, tpu.core_type = #tpu.core_type<tc>, window_params = [{transform_indices = @transform_0, window_bounds = array<i64: 128, 576>}, {pipeline_mode = #tpu.pipeline_mode<synchronous>, transform_indices = @transform_1, window_bounds = array<i64: 576, 128>}, {pipeline_mode = #tpu.pipeline_mode<synchronous>, transform_indices = @transform_2, window_bounds = array<i64: 1, 128>}, {transform_indices = @transform_3, window_bounds = array<i64: 128, 128>}]} {
    %c0 = arith.constant 0 : index
    %c0_0 = arith.constant 0 : index
    %0 = vector.load %arg1[%c0, %c0_0] : memref<128x576xbf16, #tpu.memory_space<vmem>>, vector<128x576xbf16>
    %c0_1 = arith.constant 0 : index
    %c0_2 = arith.constant 0 : index
    %1 = vector.load %arg2[%c0_1, %c0_2] : memref<576x128xbf16, #tpu.memory_space<vmem>>, vector<576x128xbf16>
    %cst = arith.constant dense<0.000000e+00> : vector<128x128xf32>
    %2 = tpu.matmul %0, %1, %cst {dimension_numbers = #tpu.dot_dimension_numbers<[1], [0], [0], [1], [0, 0, 1, 1], [], []>} : vector<128x576xbf16>, vector<576x128xbf16>, vector<128x128xf32> -> vector<128x128xf32>
    %c0_3 = arith.constant 0 : index
    %c0_4 = arith.constant 0 : index
    %3 = vector.load %arg3[%c0_3, %c0_4] : memref<1x128xf32, #tpu.memory_space<vmem>>, vector<1x128xf32>
    %4 = vector.broadcast %3 : vector<1x128xf32> to vector<128x128xf32>
    %5 = arith.addf %2, %4 : vector<128x128xf32>
    %cst_5 = arith.constant 0.000000e+00 : f32
    %6 = vector.broadcast %cst_5 : f32 to vector<128x128xf32>
    %7 = arith.cmpf oge, %5, %6 : vector<128x128xf32>
    %cst_6 = arith.constant 2.000000e-01 : f32
    %8 = vector.broadcast %cst_6 : f32 to vector<128x128xf32>
    %9 = arith.mulf %5, %8 : vector<128x128xf32>
    %10 = arith.select %7, %5, %9 : vector<128x128xi1>, vector<128x128xf32>
    %11 = arith.truncf %10 : vector<128x128xf32> to vector<128x128xbf16>
    %c0_7 = arith.constant 0 : index
    %c0_8 = arith.constant 0 : index
    %12 = vector.load %arg4[%c0_7, %c0_8] : memref<128x128xbf16, #tpu.memory_space<vmem>>, vector<128x128xbf16>
    tpu.vector_store %arg4[%c0_7, %c0_8], %11 {strides = array<i32>} : memref<128x128xbf16, #tpu.memory_space<vmem>>, vector<128x128xbf16>,
    return
  }
  func.func @transform_0(%arg0: i32) -> (i32, i32) {
    %c0_i32 = arith.constant 0 : i32
    %c0_i32_0 = arith.constant 0 : i32
    return %arg0, %c0_i32 : i32, i32
  }
  func.func @transform_1(%arg0: i32) -> (i32, i32) {
    %c0_i32 = arith.constant 0 : i32
    %c0_i32_0 = arith.constant 0 : i32
    %c0_i32_1 = arith.constant 0 : i32
    return %c0_i32, %c0_i32_0 : i32, i32
  }
  func.func @transform_2(%arg0: i32) -> (i32, i32) {
    %c0_i32 = arith.constant 0 : i32
    %c0_i32_0 = arith.constant 0 : i32
    %c0_i32_1 = arith.constant 0 : i32
    return %c0_i32, %c0_i32_0 : i32, i32
  }
  func.func @transform_3(%arg0: i32) -> (i32, i32) {
    %c0_i32 = arith.constant 0 : i32
    %c0_i32_0 = arith.constant 0 : i32
    return %arg0, %c0_i32 : i32, i32
  }
}

module attributes {stable_mosaic.version = 11 : i64} {
  func.func @_conv3_fc_kernel(%arg0: i32, %arg1: memref<32x1152xbf16, #tpu.memory_space<vmem>>, %arg2: memref<1152x256xbf16, #tpu.memory_space<vmem>>, %arg3: memref<1x256xf32, #tpu.memory_space<vmem>>, %arg4: memref<16x256xf32, #tpu.memory_space<vmem>>, %arg5: memref<1x1xf32, #tpu.memory_space<vmem>>, %arg6: memref<2x1xf32, #tpu.memory_space<vmem>>) attributes {dimension_semantics = [#tpu.dimension_semantics<parallel>], iteration_bounds = array<i64: 1>, scalar_prefetch = 0 : i64, scratch_operands = 0 : i64, tpu.core_type = #tpu.core_type<tc>, window_params = [{transform_indices = @transform_0, window_bounds = array<i64: 32, 1152>}, {pipeline_mode = #tpu.pipeline_mode<synchronous>, transform_indices = @transform_1, window_bounds = array<i64: 1152, 256>}, {pipeline_mode = #tpu.pipeline_mode<synchronous>, transform_indices = @transform_2, window_bounds = array<i64: 1, 256>}, {pipeline_mode = #tpu.pipeline_mode<synchronous>, transform_indices = @transform_3, window_bounds = array<i64: 16, 256>}, {pipeline_mode = #tpu.pipeline_mode<synchronous>, transform_indices = @transform_4, window_bounds = array<i64: 1, 1>}, {transform_indices = @transform_5, window_bounds = array<i64: 2, 1>}]} {
    %c0 = arith.constant 0 : index
    %c0_0 = arith.constant 0 : index
    %0 = vector.load %arg1[%c0, %c0_0] : memref<32x1152xbf16, #tpu.memory_space<vmem>>, vector<32x1152xbf16>
    %c0_1 = arith.constant 0 : index
    %c0_2 = arith.constant 0 : index
    %1 = vector.load %arg2[%c0_1, %c0_2] : memref<1152x256xbf16, #tpu.memory_space<vmem>>, vector<1152x256xbf16>
    %cst = arith.constant dense<0.000000e+00> : vector<32x256xf32>
    %2 = tpu.matmul %0, %1, %cst {dimension_numbers = #tpu.dot_dimension_numbers<[1], [0], [0], [1], [0, 0, 1, 1], [], []>} : vector<32x1152xbf16>, vector<1152x256xbf16>, vector<32x256xf32> -> vector<32x256xf32>
    %c0_3 = arith.constant 0 : index
    %c0_4 = arith.constant 0 : index
    %3 = vector.load %arg3[%c0_3, %c0_4] : memref<1x256xf32, #tpu.memory_space<vmem>>, vector<1x256xf32>
    %4 = vector.broadcast %3 : vector<1x256xf32> to vector<32x256xf32>
    %5 = arith.addf %2, %4 : vector<32x256xf32>
    %cst_5 = arith.constant 0.000000e+00 : f32
    %6 = vector.broadcast %cst_5 : f32 to vector<32x256xf32>
    %7 = arith.cmpf oge, %5, %6 : vector<32x256xf32>
    %cst_6 = arith.constant 2.000000e-01 : f32
    %8 = vector.broadcast %cst_6 : f32 to vector<32x256xf32>
    %9 = arith.mulf %5, %8 : vector<32x256xf32>
    %10 = arith.select %7, %5, %9 : vector<32x256xi1>, vector<32x256xf32>
    %11 = vector.shape_cast %10 : vector<32x256xf32> to vector<2x16x256xf32>
    %c0_7 = arith.constant 0 : index
    %c0_8 = arith.constant 0 : index
    %12 = vector.load %arg4[%c0_7, %c0_8] : memref<16x256xf32, #tpu.memory_space<vmem>>, vector<16x256xf32>
    %13 = vector.shape_cast %12 : vector<16x256xf32> to vector<1x16x256xf32>
    %14 = vector.broadcast %13 : vector<1x16x256xf32> to vector<2x16x256xf32>
    %15 = arith.mulf %11, %14 : vector<2x16x256xf32>
    %cst_9 = arith.constant dense<0.000000e+00> : vector<2x16xf32>
    %16 = vector.multi_reduction <add>, %15, %cst_9 [2] : vector<2x16x256xf32> to vector<2x16xf32>
    %cst_10 = arith.constant dense<0.000000e+00> : vector<2xf32>
    %17 = vector.multi_reduction <add>, %16, %cst_10 [1] : vector<2x16xf32> to vector<2xf32>
    %18 = vector.shape_cast %17 : vector<2xf32> to vector<2x1xf32>
    %c0_11 = arith.constant 0 : index
    %c0_12 = arith.constant 0 : index
    %19 = vector.load %arg5[%c0_11, %c0_12] : memref<1x1xf32, #tpu.memory_space<vmem>>, vector<1x1xf32>
    %20 = vector.broadcast %19 : vector<1x1xf32> to vector<2x1xf32>
    %21 = arith.addf %18, %20 : vector<2x1xf32>
    %c0_13 = arith.constant 0 : index
    %c0_14 = arith.constant 0 : index
    %22 = vector.load %arg6[%c0_13, %c0_14] : memref<2x1xf32, #tpu.memory_space<vmem>>, vector<2x1xf32>
    tpu.vector_store %arg6[%c0_13, %c0_14], %21 {strides = array<i32>} : memref<2x1xf32, #tpu.memory_space<vmem>>, vector<2x1xf32>,
    return
  }
  func.func @transform_0(%arg0: i32) -> (i32, i32) {
    %c0_i32 = arith.constant 0 : i32
    %c0_i32_0 = arith.constant 0 : i32
    return %arg0, %c0_i32 : i32, i32
  }
  func.func @transform_1(%arg0: i32) -> (i32, i32) {
    %c0_i32 = arith.constant 0 : i32
    %c0_i32_0 = arith.constant 0 : i32
    %c0_i32_1 = arith.constant 0 : i32
    return %c0_i32, %c0_i32_0 : i32, i32
  }
  func.func @transform_2(%arg0: i32) -> (i32, i32) {
    %c0_i32 = arith.constant 0 : i32
    %c0_i32_0 = arith.constant 0 : i32
    %c0_i32_1 = arith.constant 0 : i32
    return %c0_i32, %c0_i32_0 : i32, i32
  }
  func.func @transform_3(%arg0: i32) -> (i32, i32) {
    %c0_i32 = arith.constant 0 : i32
    %c0_i32_0 = arith.constant 0 : i32
    %c0_i32_1 = arith.constant 0 : i32
    return %c0_i32, %c0_i32_0 : i32, i32
  }
  func.func @transform_4(%arg0: i32) -> (i32, i32) {
    %c0_i32 = arith.constant 0 : i32
    %c0_i32_0 = arith.constant 0 : i32
    %c0_i32_1 = arith.constant 0 : i32
    return %c0_i32, %c0_i32_0 : i32, i32
  }
  func.func @transform_5(%arg0: i32) -> (i32, i32) {
    %c0_i32 = arith.constant 0 : i32
    %c0_i32_0 = arith.constant 0 : i32
    return %arg0, %c0_i32 : i32, i32
  }
}

</mosaic_0001>

<llo_original>
// kernel: discriminator_forward.4
$region0: #{discriminator_forward.4}
  #allocation0 [shape = 'u32[]', space=smem, size = 0x4, offset = 0x4, fixed_abs, tag = 'smem constant byte address 0x4 - core index']
  #allocation1 [shape = 'u32[144,128]{1,0:T(1,128)}', space=vmem, size = 0x12000, scoped, tag = 'internal scratch']
  %s0 = inlined_call_operand.vmem [shape: bf16[8,100], index: 0, kind: input, shape index: {}]
  %s1 = inlined_call_operand.vmem [shape: bf16[100,1024], index: 1, kind: input, shape index: {}]
  %s2 = inlined_call_operand.hbm [shape: f32[1,1024], index: 2, kind: input, shape index: {}]
  %s3 = inlined_call_operand.vmem [shape: f32[8,1024], index: 3, kind: output, shape index: {}]
  %s4 = sld [smem:[#allocation0]]
  $region26: #{discriminator_forward.4} parent=0
    _
  %s6 = ssub.s32 1, %s4
  %s7 = scalar_select 0, %s6, %s4
  $region1: #{discriminator_forward.4} parent=0
    #allocation2 [shape = 'u8[4096]{0}', space=vmem, size = 0x1000, scoped, tag = 'input window, operand 2, single buffered']
    #allocation3 [shape = 's32[1]{0}', space=sflag, size = 0x4, scoped, tag = 'scoped memory for discriminator_forward.4']
    %8 = vsyncpa [#allocation3], 0
    // Predicated region
    $region2: #{discriminator_forward.4} parent=1 // pred_check
      _
    $region3: #{discriminator_forward.4} parent=1 // pred_check_branch
      %10 = sbr.rel (0) target = $region5
    $region4: #{discriminator_forward.4} parent=1 // pred_region
      _
    $region5: #{discriminator_forward.4} parent=1 // pred_fallthru
      _
    // Predicated region
    $region6: #{discriminator_forward.4} parent=1 // pred_check
      _
    $region7: #{discriminator_forward.4} parent=1 // pred_check_branch
      %12 = sbr.rel (0) target = $region9
    $region8: #{discriminator_forward.4} parent=1 // pred_region
      _
    $region9: #{discriminator_forward.4} parent=1 // pred_fallthru
      _
    // Predicated region
    $region10: #{discriminator_forward.4} parent=1 // pred_check
      _
    $region11: #{discriminator_forward.4} parent=1 // pred_check_branch
      %14 = sbr.rel (0) target = $region13
    $region12: #{discriminator_forward.4} parent=1 // pred_region
      %s16 = ssub.s32 128, 128
      %17 = vsyncadd [#allocation3], %s16
      %s19 = sshll.u32 [#allocation2], 4
      %s20 = int_to_ptr.vmem [resolvable:$true] %s19
      %22 = dma.hbm_to_vmem [thread:$0]  %s2, 128, %s20, [#allocation3]
    $region13: #{discriminator_forward.4} parent=1 // pred_fallthru
      _
    // Predicated region
    $region14: #{discriminator_forward.4} parent=1 // pred_check
      _
    $region15: #{discriminator_forward.4} parent=1 // pred_check_branch
      %24 = sbr.rel (0) target = $region17
    $region16: #{discriminator_forward.4} parent=1 // pred_region
      %25 = dma.done [#allocation3], 128
    $region17: #{discriminator_forward.4} parent=1 // pred_fallthru
      _
    %v27 = vld [vmem:[%s0] sm:$0xf]
    %v28 = vld [vmem:[%s1] sm:$0xff]
    %v29 = vld [vmem:[%s1 + $0x8] sm:$0xff]
    %v30 = vld [vmem:[%s1 + $0x10] sm:$0xff]
    %v31 = vld [vmem:[%s1 + $0x18] sm:$0xff]
    %v32 = vld [vmem:[%s1 + $0x20] sm:$0xff]
    %v33 = vld [vmem:[%s1 + $0x28] sm:$0xff]
    %v34 = vld [vmem:[%s1 + $0x30] sm:$0xff]
    %v35 = vld [vmem:[%s1 + $0x38] sm:$0xff]
    %v36 = vld [vmem:[%s1 + $0x40] sm:$0xff]
    %v37 = vld [vmem:[%s1 + $0x48] sm:$0xff]
    %v38 = vld [vmem:[%s1 + $0x50] sm:$0xff]
    %v39 = vld [vmem:[%s1 + $0x58] sm:$0xff]
    %v40 = vld [vmem:[%s1 + $0x60] sm:$0xff]
    %v41 = vld [vmem:[%s1 + $0x68] sm:$0xff]
    %v42 = vld [vmem:[%s1 + $0x70] sm:$0xff]
    %v43 = vld [vmem:[%s1 + $0x78] sm:$0xff]
    %v44 = vld [vmem:[%s1 + $0x80] sm:$0xff]
    %v45 = vld [vmem:[%s1 + $0x88] sm:$0xff]
    %v46 = vld [vmem:[%s1 + $0x90] sm:$0xff]
    %v47 = vld [vmem:[%s1 + $0x98] sm:$0xff]
    %v48 = vld [vmem:[%s1 + $0xa0] sm:$0xff]
    %v49 = vld [vmem:[%s1 + $0xa8] sm:$0xff]
    %v50 = vld [vmem:[%s1 + $0xb0] sm:$0xff]
    %v51 = vld [vmem:[%s1 + $0xb8] sm:$0xff]
    %v52 = vld [vmem:[%s1 + $0xc0] sm:$0xff]
    %v53 = vld [vmem:[%s1 + $0xc8] sm:$0xff]
    %v54 = vld [vmem:[%s1 + $0xd0] sm:$0xff]
    %v55 = vld [vmem:[%s1 + $0xd8] sm:$0xff]
    %v56 = vld [vmem:[%s1 + $0xe0] sm:$0xff]
    %v57 = vld [vmem:[%s1 + $0xe8] sm:$0xff]
    %v58 = vld [vmem:[%s1 + $0xf0] sm:$0xff]
    %v59 = vld [vmem:[%s1 + $0xf8] sm:$0xff]
    %v60 = vld [vmem:[%s1 + $0x100] sm:$0xff]
    %v61 = vld [vmem:[%s1 + $0x108] sm:$0xff]
    %v62 = vld [vmem:[%s1 + $0x110] sm:$0xff]
    %v63 = vld [vmem:[%s1 + $0x118] sm:$0xff]
    %v64 = vld [vmem:[%s1 + $0x120] sm:$0xff]
    %v65 = vld [vmem:[%s1 + $0x128] sm:$0xff]
    %v66 = vld [vmem:[%s1 + $0x130] sm:$0xff]
    %v67 = vld [vmem:[%s1 + $0x138] sm:$0xff]
    %v68 = vld [vmem:[%s1 + $0x140] sm:$0xff]
    %v69 = vld [vmem:[%s1 + $0x148] sm:$0xff]
    %v70 = vld [vmem:[%s1 + $0x150] sm:$0xff]
    %v71 = vld [vmem:[%s1 + $0x158] sm:$0xff]
    %v72 = vld [vmem:[%s1 + $0x160] sm:$0xff]
    %v73 = vld [vmem:[%s1 + $0x168] sm:$0xff]
    %v74 = vld [vmem:[%s1 + $0x170] sm:$0xff]
    %v75 = vld [vmem:[%s1 + $0x178] sm:$0xff]
    %v76 = vld [vmem:[%s1 + $0x180] sm:$0x33]
    %v77 = vld [vmem:[%s1 + $0x188] sm:$0x33]
    %v78 = vld [vmem:[%s1 + $0x190] sm:$0x33]
    %v79 = vld [vmem:[%s1 + $0x198] sm:$0x33]
    %v80 = vld [vmem:[#allocation2] sm:$0xff]
    %v82 = vlaneseq
    %v83 = vshrl.u32 %v82, 7
    %v84 = vsub.s32 0, %v83
    %v85 = vrot.slane %v80, %v84
    %v86 = vlaneseq
    %v87 = vshrl.u32 %v86, 7
    %v88 = vsub.s32 1, %v87
    %v89 = vrot.slane %v80, %v88
    %v90 = vlaneseq
    %v91 = vshrl.u32 %v90, 7
    %v92 = vsub.s32 2, %v91
    %v93 = vrot.slane %v80, %v92
    %v94 = vlaneseq
    %v95 = vshrl.u32 %v94, 7
    %v96 = vsub.s32 3, %v95
    %v97 = vrot.slane %v80, %v96
    %v98 = vlaneseq
    %v99 = vshrl.u32 %v98, 7
    %v100 = vsub.s32 4, %v99
    %v101 = vrot.slane %v80, %v100
    %v102 = vlaneseq
    %v103 = vshrl.u32 %v102, 7
    %v104 = vsub.s32 5, %v103
    %v105 = vrot.slane %v80, %v104
    %v106 = vlaneseq
    %v107 = vshrl.u32 %v106, 7
    %v108 = vsub.s32 6, %v107
    %v109 = vrot.slane %v80, %v108
    %v110 = vlaneseq
    %v111 = vshrl.u32 %v110, 7
    %v112 = vsub.s32 7, %v111
    %v113 = vrot.slane %v80, %v112
    %v174 = vunpack.c.l.b16 %v28
    %v175 = vunpack.c.h.b16 %v28
    %v176 = vunpack.c.l.b16 %v29
    %v177 = vunpack.c.h.b16 %v29
    %v178 = vunpack.c.l.b16 %v30
    %v179 = vunpack.c.h.b16 %v30
    %v180 = vunpack.c.l.b16 %v31
    %v181 = vunpack.c.h.b16 %v31
    %v182 = vunpack.c.l.b16 %v32
    %v183 = vunpack.c.h.b16 %v32
    %v184 = vunpack.c.l.b16 %v33
    %v185 = vunpack.c.h.b16 %v33
    %v186 = vunpack.c.l.b16 %v34
    %v187 = vunpack.c.h.b16 %v34
    %v188 = vunpack.c.l.b16 %v35
    %v189 = vunpack.c.h.b16 %v35
    %v190 = vunpack.c.l.b16 %v36
    %v191 = vunpack.c.h.b16 %v36
    %v192 = vunpack.c.l.b16 %v37
    %v193 = vunpack.c.h.b16 %v37
    %v194 = vunpack.c.l.b16 %v38
    %v195 = vunpack.c.h.b16 %v38
    %v196 = vunpack.c.l.b16 %v39
    %v197 = vunpack.c.h.b16 %v39
    %v198 = vunpack.c.l.b16 %v40
    %v199 = vunpack.c.h.b16 %v40
    %v200 = vunpack.c.l.b16 %v41
    %v201 = vunpack.c.h.b16 %v41
    %v202 = vunpack.c.l.b16 %v42
    %v203 = vunpack.c.h.b16 %v42
    %v204 = vunpack.c.l.b16 %v43
    %v205 = vunpack.c.h.b16 %v43
    %v206 = vunpack.c.l.b16 %v44
    %v207 = vunpack.c.h.b16 %v44
    %v208 = vunpack.c.l.b16 %v45
    %v209 = vunpack.c.h.b16 %v45
    %v210 = vunpack.c.l.b16 %v46
    %v211 = vunpack.c.h.b16 %v46
    %v212 = vunpack.c.l.b16 %v47
    %v213 = vunpack.c.h.b16 %v47
    %v214 = vunpack.c.l.b16 %v48
    %v215 = vunpack.c.h.b16 %v48
    %v216 = vunpack.c.l.b16 %v49
    %v217 = vunpack.c.h.b16 %v49
    %v218 = vunpack.c.l.b16 %v50
    %v219 = vunpack.c.h.b16 %v50
    %v220 = vunpack.c.l.b16 %v51
    %v221 = vunpack.c.h.b16 %v51
    %v222 = vunpack.c.l.b16 %v52
    %v223 = vunpack.c.h.b16 %v52
    %v224 = vunpack.c.l.b16 %v53
    %v225 = vunpack.c.h.b16 %v53
    %v226 = vunpack.c.l.b16 %v54
    %v227 = vunpack.c.h.b16 %v54
    %v228 = vunpack.c.l.b16 %v55
    %v229 = vunpack.c.h.b16 %v55
    %v230 = vunpack.c.l.b16 %v56
    %v231 = vunpack.c.h.b16 %v56
    %v232 = vunpack.c.l.b16 %v57
    %v233 = vunpack.c.h.b16 %v57
    %v234 = vunpack.c.l.b16 %v58
    %v235 = vunpack.c.h.b16 %v58
    %v236 = vunpack.c.l.b16 %v59
    %v237 = vunpack.c.h.b16 %v59
    %v238 = vunpack.c.l.b16 %v60
    %v239 = vunpack.c.h.b16 %v60
    %v240 = vunpack.c.l.b16 %v61
    %v241 = vunpack.c.h.b16 %v61
    %v242 = vunpack.c.l.b16 %v62
    %v243 = vunpack.c.h.b16 %v62
    %v244 = vunpack.c.l.b16 %v63
    %v245 = vunpack.c.h.b16 %v63
    %v246 = vunpack.c.l.b16 %v64
    %v247 = vunpack.c.h.b16 %v64
    %v248 = vunpack.c.l.b16 %v65
    %v249 = vunpack.c.h.b16 %v65
    %v250 = vunpack.c.l.b16 %v66
    %v251 = vunpack.c.h.b16 %v66
    %v252 = vunpack.c.l.b16 %v67
    %v253 = vunpack.c.h.b16 %v67
    %v254 = vunpack.c.l.b16 %v68
    %v255 = vunpack.c.h.b16 %v68
    %v256 = vunpack.c.l.b16 %v69
    %v257 = vunpack.c.h.b16 %v69
    %v258 = vunpack.c.l.b16 %v70
    %v259 = vunpack.c.h.b16 %v70
    %v260 = vunpack.c.l.b16 %v71
    %v261 = vunpack.c.h.b16 %v71
    %v262 = vunpack.c.l.b16 %v72
    %v263 = vunpack.c.h.b16 %v72
    %v264 = vunpack.c.l.b16 %v73
    %v265 = vunpack.c.h.b16 %v73
    %v266 = vunpack.c.l.b16 %v74
    %v267 = vunpack.c.h.b16 %v74
    %v268 = vunpack.c.l.b16 %v75
    %v269 = vunpack.c.h.b16 %v75
    %v270 = vunpack.c.l.b16 %v76
    %v271 = vunpack.c.h.b16 %v76
    %v272 = vunpack.c.l.b16 %v77
    %v273 = vunpack.c.h.b16 %v77
    %v274 = vunpack.c.l.b16 %v78
    %v275 = vunpack.c.h.b16 %v78
    %v276 = vunpack.c.l.b16 %v79
    %v277 = vunpack.c.h.b16 %v79
    %v278 = vpack.c.b16 %v182, %v174
    %v279 = vpack.c.b16 %v183, %v175
    %v280 = vpack.c.b16 %v184, %v176
    %v281 = vpack.c.b16 %v185, %v177
    %v282 = vpack.c.b16 %v186, %v178
    %v283 = vpack.c.b16 %v187, %v179
    %v284 = vpack.c.b16 %v188, %v180
    %v285 = vpack.c.b16 %v189, %v181
    %v286 = vpack.c.b16 %v198, %v190
    %v287 = vpack.c.b16 %v199, %v191
    %v288 = vpack.c.b16 %v200, %v192
    %v289 = vpack.c.b16 %v201, %v193
    %v290 = vpack.c.b16 %v202, %v194
    %v291 = vpack.c.b16 %v203, %v195
    %v292 = vpack.c.b16 %v204, %v196
    %v293 = vpack.c.b16 %v205, %v197
    %v294 = vpack.c.b16 %v214, %v206
    %v295 = vpack.c.b16 %v215, %v207
    %v296 = vpack.c.b16 %v216, %v208
    %v297 = vpack.c.b16 %v217, %v209
    %v298 = vpack.c.b16 %v218, %v210
    %v299 = vpack.c.b16 %v219, %v211
    %v300 = vpack.c.b16 %v220, %v212
    %v301 = vpack.c.b16 %v221, %v213
    %v302 = vpack.c.b16 %v230, %v222
    %v303 = vpack.c.b16 %v231, %v223
    %v304 = vpack.c.b16 %v232, %v224
    %v305 = vpack.c.b16 %v233, %v225
    %v306 = vpack.c.b16 %v234, %v226
    %v307 = vpack.c.b16 %v235, %v227
    %v308 = vpack.c.b16 %v236, %v228
    %v309 = vpack.c.b16 %v237, %v229
    %v310 = vpack.c.b16 %v246, %v238
    %v311 = vpack.c.b16 %v247, %v239
    %v312 = vpack.c.b16 %v248, %v240
    %v313 = vpack.c.b16 %v249, %v241
    %v314 = vpack.c.b16 %v250, %v242
    %v315 = vpack.c.b16 %v251, %v243
    %v316 = vpack.c.b16 %v252, %v244
    %v317 = vpack.c.b16 %v253, %v245
    %v318 = vpack.c.b16 %v262, %v254
    %v319 = vpack.c.b16 %v263, %v255
    %v320 = vpack.c.b16 %v264, %v256
    %v321 = vpack.c.b16 %v265, %v257
    %v322 = vpack.c.b16 %v266, %v258
    %v323 = vpack.c.b16 %v267, %v259
    %v324 = vpack.c.b16 %v268, %v260
    %v325 = vpack.c.b16 %v269, %v261
    %v326 = vpack.c.b16 %v270, %v270
    %v327 = vpack.c.b16 %v271, %v271
    %v328 = vpack.c.b16 %v272, %v272
    %v329 = vpack.c.b16 %v273, %v273
    %v330 = vpack.c.b16 %v274, %v274
    %v331 = vpack.c.b16 %v275, %v275
    %v332 = vpack.c.b16 %v276, %v276
    %v333 = vpack.c.b16 %v277, %v277
    %vm382 = vcmask 818176
    %v384 = vsel %vm382, %v27, 0
    %vm386 = vcmask 1041408
    %v388 = vsel %vm386, %v326, 0
    %v391 = vsel %vm386, %v327, 0
    %v394 = vsel %vm386, %v328, 0
    %v397 = vsel %vm386, %v329, 0
    %v400 = vsel %vm386, %v330, 0
    %v403 = vsel %vm386, %v331, 0
    %v406 = vsel %vm386, %v332, 0
    %v409 = vsel %vm386, %v333, 0
    %411 = vmatprep.subr.bf16.mxu0 %v279
    %412 = vmatpush1.bf16.msra.mxu0 %v278
    %413 = vmatprep.subr.bf16.mxu0 %v287
    %414 = vmatpush1.bf16.msra.mxu0 %v286
    %415 = vmatprep.subr.bf16.mxu0 %v295
    %416 = vmatpush1.bf16.msra.mxu0 %v294
    %417 = vmatprep.subr.bf16.mxu0 %v303
    %418 = vmatpush1.bf16.msra.mxu0 %v302
    %419 = vmatprep.subr.bf16.mxu0 %v311
    %420 = vmatpush1.bf16.msra.mxu0 %v310
    %421 = vmatprep.subr.bf16.mxu0 %v319
    %422 = vmatpush1.bf16.msra.mxu0 %v318
    %423 = vmatprep.subr.bf16.mxu0 %v391
    %424 = vmatpush1.bf16.msra.mxu0 %v388
    %425 = vmatprep.subr.bf16.mxu0 0
    %426 = vmatpush1.bf16.msra.mxu0 0
    %427 = vmatprep.subr.bf16.mxu0 0
    %428 = vmatpush1.bf16.msra.mxu0 0
    %429 = vmatprep.subr.bf16.mxu0 0
    %430 = vmatpush1.bf16.msra.mxu0 0
    %431 = vmatprep.subr.bf16.mxu0 0
    %432 = vmatpush1.bf16.msra.mxu0 0
    %433 = vmatprep.subr.bf16.mxu0 0
    %434 = vmatpush1.bf16.msra.mxu0 0
    %435 = vmatprep.subr.bf16.mxu0 0
    %436 = vmatpush1.bf16.msra.mxu0 0
    %437 = vmatprep.subr.bf16.mxu0 0
    %438 = vmatpush1.bf16.msra.mxu0 0
    %439 = vmatprep.subr.bf16.mxu0 0
    %440 = vmatpush1.bf16.msra.mxu0 0
    %441 = vmatprep.subr.bf16.mxu0 0
    %442 = vmatpush1.bf16.msra.mxu0 0
    %443 = vmatprep.mubr.bf16.mxu0 0
    %444 = vmatmul.mubr.bf16.gmra.mrb[0].mxu0 %v384
    %v445 = vpop.f32.mrb[0].mxu0
    %v446 = vadd.f32 %v85, %v445
    %v447 = vpop.f32.mrb[0].mxu0
    %v448 = vadd.f32 %v89, %v447
    %v449 = vpop.f32.mrb[0].mxu0
    %v450 = vpop.f32.mrb[0].mxu0
    %451 = vdwg.mxu0
    %452 = vmatprep.subr.bf16.mxu0 %v281
    %453 = vmatpush1.bf16.msra.mxu0 %v280
    %454 = vmatprep.subr.bf16.mxu0 %v289
    %455 = vmatpush1.bf16.msra.mxu0 %v288
    %456 = vmatprep.subr.bf16.mxu0 %v297
    %457 = vmatpush1.bf16.msra.mxu0 %v296
    %458 = vmatprep.subr.bf16.mxu0 %v305
    %459 = vmatpush1.bf16.msra.mxu0 %v304
    %460 = vmatprep.subr.bf16.mxu0 %v313
    %461 = vmatpush1.bf16.msra.mxu0 %v312
    %462 = vmatprep.subr.bf16.mxu0 %v321
    %463 = vmatpush1.bf16.msra.mxu0 %v320
    %464 = vmatprep.subr.bf16.mxu0 %v397
    %465 = vmatpush1.bf16.msra.mxu0 %v394
    %466 = vmatprep.subr.bf16.mxu0 0
    %467 = vmatpush1.bf16.msra.mxu0 0
    %468 = vmatprep.subr.bf16.mxu0 0
    %469 = vmatpush1.bf16.msra.mxu0 0
    %470 = vmatprep.subr.bf16.mxu0 0
    %471 = vmatpush1.bf16.msra.mxu0 0
    %472 = vmatprep.subr.bf16.mxu0 0
    %473 = vmatpush1.bf16.msra.mxu0 0
    %474 = vmatprep.subr.bf16.mxu0 0
    %475 = vmatpush1.bf16.msra.mxu0 0
    %476 = vmatprep.subr.bf16.mxu0 0
    %477 = vmatpush1.bf16.msra.mxu0 0
    %478 = vmatprep.subr.bf16.mxu0 0
    %479 = vmatpush1.bf16.msra.mxu0 0
    %480 = vmatprep.subr.bf16.mxu0 0
    %481 = vmatpush1.bf16.msra.mxu0 0
    %482 = vmatprep.subr.bf16.mxu0 0
    %483 = vmatpush1.bf16.msra.mxu0 0
    %484 = vmatprep.mubr.bf16.mxu0 0
    %485 = vmatmul.mubr.bf16.gmra.mrb[0].mxu0 %v384
    %v486 = vpop.f32.mrb[0].mxu0
    %v487 = vadd.f32 %v93, %v486
    %v488 = vpop.f32.mrb[0].mxu0
    %v489 = vadd.f32 %v97, %v488
    %v490 = vpop.f32.mrb[0].mxu0
    %v491 = vpop.f32.mrb[0].mxu0
    %492 = vdwg.mxu0
    %493 = vmatprep.subr.bf16.mxu0 %v283
    %494 = vmatpush1.bf16.msra.mxu0 %v282
    %495 = vmatprep.subr.bf16.mxu0 %v291
    %496 = vmatpush1.bf16.msra.mxu0 %v290
    %497 = vmatprep.subr.bf16.mxu0 %v299
    %498 = vmatpush1.bf16.msra.mxu0 %v298
    %499 = vmatprep.subr.bf16.mxu0 %v307
    %500 = vmatpush1.bf16.msra.mxu0 %v306
    %501 = vmatprep.subr.bf16.mxu0 %v315
    %502 = vmatpush1.bf16.msra.mxu0 %v314
    %503 = vmatprep.subr.bf16.mxu0 %v323
    %504 = vmatpush1.bf16.msra.mxu0 %v322
    %505 = vmatprep.subr.bf16.mxu0 %v403
    %506 = vmatpush1.bf16.msra.mxu0 %v400
    %507 = vmatprep.subr.bf16.mxu0 0
    %508 = vmatpush1.bf16.msra.mxu0 0
    %509 = vmatprep.subr.bf16.mxu0 0
    %510 = vmatpush1.bf16.msra.mxu0 0
    %511 = vmatprep.subr.bf16.mxu0 0
    %512 = vmatpush1.bf16.msra.mxu0 0
    %513 = vmatprep.subr.bf16.mxu0 0
    %514 = vmatpush1.bf16.msra.mxu0 0
    %515 = vmatprep.subr.bf16.mxu0 0
    %516 = vmatpush1.bf16.msra.mxu0 0
    %517 = vmatprep.subr.bf16.mxu0 0
    %518 = vmatpush1.bf16.msra.mxu0 0
    %519 = vmatprep.subr.bf16.mxu0 0
    %520 = vmatpush1.bf16.msra.mxu0 0
    %521 = vmatprep.subr.bf16.mxu0 0
    %522 = vmatpush1.bf16.msra.mxu0 0
    %523 = vmatprep.subr.bf16.mxu0 0
    %524 = vmatpush1.bf16.msra.mxu0 0
    %525 = vmatprep.mubr.bf16.mxu0 0
    %526 = vmatmul.mubr.bf16.gmra.mrb[0].mxu0 %v384
    %v527 = vpop.f32.mrb[0].mxu0
    %v528 = vadd.f32 %v101, %v527
    %v529 = vpop.f32.mrb[0].mxu0
    %v530 = vadd.f32 %v105, %v529
    %v531 = vpop.f32.mrb[0].mxu0
    %v532 = vpop.f32.mrb[0].mxu0
    %533 = vdwg.mxu0
    %534 = vmatprep.subr.bf16.mxu0 %v285
    %535 = vmatpush1.bf16.msra.mxu0 %v284
    %536 = vmatprep.subr.bf16.mxu0 %v293
    %537 = vmatpush1.bf16.msra.mxu0 %v292
    %538 = vmatprep.subr.bf16.mxu0 %v301
    %539 = vmatpush1.bf16.msra.mxu0 %v300
    %540 = vmatprep.subr.bf16.mxu0 %v309
    %541 = vmatpush1.bf16.msra.mxu0 %v308
    %542 = vmatprep.subr.bf16.mxu0 %v317
    %543 = vmatpush1.bf16.msra.mxu0 %v316
    %544 = vmatprep.subr.bf16.mxu0 %v325
    %545 = vmatpush1.bf16.msra.mxu0 %v324
    %546 = vmatprep.subr.bf16.mxu0 %v409
    %547 = vmatpush1.bf16.msra.mxu0 %v406
    %548 = vmatprep.subr.bf16.mxu0 0
    %549 = vmatpush1.bf16.msra.mxu0 0
    %550 = vmatprep.subr.bf16.mxu0 0
    %551 = vmatpush1.bf16.msra.mxu0 0
    %552 = vmatprep.subr.bf16.mxu0 0
    %553 = vmatpush1.bf16.msra.mxu0 0
    %554 = vmatprep.subr.bf16.mxu0 0
    %555 = vmatpush1.bf16.msra.mxu0 0
    %556 = vmatprep.subr.bf16.mxu0 0
    %557 = vmatpush1.bf16.msra.mxu0 0
    %558 = vmatprep.subr.bf16.mxu0 0
    %559 = vmatpush1.bf16.msra.mxu0 0
    %560 = vmatprep.subr.bf16.mxu0 0
    %561 = vmatpush1.bf16.msra.mxu0 0
    %562 = vmatprep.subr.bf16.mxu0 0
    %563 = vmatpush1.bf16.msra.mxu0 0
    %564 = vmatprep.subr.bf16.mxu0 0
    %565 = vmatpush1.bf16.msra.mxu0 0
    %566 = vmatprep.mubr.bf16.mxu0 0
    %567 = vmatmul.mubr.bf16.gmra.mrb[0].mxu0 %v384
    %v568 = vpop.f32.mrb[0].mxu0
    %v569 = vadd.f32 %v109, %v568
    %v570 = vpop.f32.mrb[0].mxu0
    %v571 = vadd.f32 %v113, %v570
    %v572 = vpop.f32.mrb[0].mxu0
    %v573 = vpop.f32.mrb[0].mxu0
    %574 = vdwg.mxu0
    %575 = vst [vmem:[%s3] sm:$0xff] %v446
    %576 = vst [vmem:[%s3 + $0x8] sm:$0xff] %v448
    %577 = vst [vmem:[%s3 + $0x10] sm:$0xff] %v487
    %578 = vst [vmem:[%s3 + $0x18] sm:$0xff] %v489
    %579 = vst [vmem:[%s3 + $0x20] sm:$0xff] %v528
    %580 = vst [vmem:[%s3 + $0x28] sm:$0xff] %v530
    %581 = vst [vmem:[%s3 + $0x30] sm:$0xff] %v569
    %582 = vst [vmem:[%s3 + $0x38] sm:$0xff] %v571
    // Predicated region
    $region18: #{discriminator_forward.4} parent=1 // pred_check
      _
    $region19: #{discriminator_forward.4} parent=1 // pred_check_branch
      %584 = sbr.rel (0) target = $region21
    $region20: #{discriminator_forward.4} parent=1 // pred_region
      _
    $region21: #{discriminator_forward.4} parent=1 // pred_fallthru
      _
    // Predicated region
    $region22: #{discriminator_forward.4} parent=1 // pred_check
      _
    $region23: #{discriminator_forward.4} parent=1 // pred_check_branch
      %586 = sbr.rel (0) target = $region25
    $region24: #{discriminator_forward.4} parent=1 // pred_region
      _
    $region25: #{discriminator_forward.4} parent=1 // pred_fallthru
      _
    %587 = vsyncpa [#allocation3], 1

// kernel: discriminator_forward.5
$region0: #{discriminator_forward.5}
  #allocation0 [shape = 'u32[]', space=smem, size = 0x4, offset = 0x4, fixed_abs, tag = 'smem constant byte address 0x4 - core index']
  #allocation1 [shape = 'u32[144,128]{1,0:T(1,128)}', space=vmem, size = 0x12000, scoped, tag = 'internal scratch']
  %s0 = inlined_call_operand.vmem [shape: bf16[512,36], index: 0, kind: input, shape index: {}]
  %s1 = inlined_call_operand.vmem [shape: bf16[36,64], index: 1, kind: input, shape index: {}]
  %s2 = inlined_call_operand.vmem [shape: f32[1,64], index: 2, kind: input, shape index: {}]
  %s3 = inlined_call_operand.vmem [shape: bf16[512,64], index: 3, kind: output, shape index: {}]
  %s4 = sld [smem:[#allocation0]]
  $region22: #{discriminator_forward.5} parent=0
    _
  %s6 = ssub.s32 1, %s4
  %s7 = scalar_select 0, %s6, %s4
  // Predicated region
  $region2: #{discriminator_forward.5} parent=0 // pred_check
    _
  $region3: #{discriminator_forward.5} parent=0 // pred_check_branch
    %9 = sbr.rel (0) target = $region5
  $region4: #{discriminator_forward.5} parent=0 // pred_region
    _
  $region5: #{discriminator_forward.5} parent=0 // pred_fallthru
    _
  // Predicated region
  $region6: #{discriminator_forward.5} parent=0 // pred_check
    _
  $region7: #{discriminator_forward.5} parent=0 // pred_check_branch
    %11 = sbr.rel (0) target = $region9
  $region8: #{discriminator_forward.5} parent=0 // pred_region
    _
  $region9: #{discriminator_forward.5} parent=0 // pred_fallthru
    _
  // Predicated region
  $region10: #{discriminator_forward.5} parent=0 // pred_check
    _
  $region11: #{discriminator_forward.5} parent=0 // pred_check_branch
    %13 = sbr.rel (0) target = $region13
  $region12: #{discriminator_forward.5} parent=0 // pred_region
    _
  $region13: #{discriminator_forward.5} parent=0 // pred_fallthru
    _
  %v15 = vld [vmem:[%s0] sm:$0xf]
  %v16 = vld [vmem:[%s0 + $0x4] sm:$0xf]
  %v17 = vld [vmem:[%s0 + $0x8] sm:$0xf]
  %v18 = vld [vmem:[%s0 + $0xc] sm:$0xf]
  %v19 = vld [vmem:[%s0 + $0x10] sm:$0xf]
  %v20 = vld [vmem:[%s0 + $0x14] sm:$0xf]
  %v21 = vld [vmem:[%s0 + $0x18] sm:$0xf]
  %v22 = vld [vmem:[%s0 + $0x1c] sm:$0xf]
  %v23 = vld [vmem:[%s0 + $0x20] sm:$0xf]
  %v24 = vld [vmem:[%s0 + $0x24] sm:$0xf]
  %v25 = vld [vmem:[%s0 + $0x28] sm:$0xf]
  %v26 = vld [vmem:[%s0 + $0x2c] sm:$0xf]
  %v27 = vld [vmem:[%s0 + $0x30] sm:$0xf]
  %v28 = vld [vmem:[%s0 + $0x34] sm:$0xf]
  %v29 = vld [vmem:[%s0 + $0x38] sm:$0xf]
  %v30 = vld [vmem:[%s0 + $0x3c] sm:$0xf]
  %v31 = vld [vmem:[%s0 + $0x40] sm:$0xf]
  %v32 = vld [vmem:[%s0 + $0x44] sm:$0xf]
  %v33 = vld [vmem:[%s0 + $0x48] sm:$0xf]
  %v34 = vld [vmem:[%s0 + $0x4c] sm:$0xf]
  %v35 = vld [vmem:[%s0 + $0x50] sm:$0xf]
  %v36 = vld [vmem:[%s0 + $0x54] sm:$0xf]
  %v37 = vld [vmem:[%s0 + $0x58] sm:$0xf]
  %v38 = vld [vmem:[%s0 + $0x5c] sm:$0xf]
  %v39 = vld [vmem:[%s0 + $0x60] sm:$0xf]
  %v40 = vld [vmem:[%s0 + $0x64] sm:$0xf]
  %v41 = vld [vmem:[%s0 + $0x68] sm:$0xf]
  %v42 = vld [vmem:[%s0 + $0x6c] sm:$0xf]
  %v43 = vld [vmem:[%s0 + $0x70] sm:$0xf]
  %v44 = vld [vmem:[%s0 + $0x74] sm:$0xf]
  %v45 = vld [vmem:[%s0 + $0x78] sm:$0xf]
  %v46 = vld [vmem:[%s0 + $0x7c] sm:$0xf]
  %v47 = vld [vmem:[%s0 + $0x80] sm:$0xf]
  %v48 = vld [vmem:[%s0 + $0x84] sm:$0xf]
  %v49 = vld [vmem:[%s0 + $0x88] sm:$0xf]
  %v50 = vld [vmem:[%s0 + $0x8c] sm:$0xf]
  %v51 = vld [vmem:[%s0 + $0x90] sm:$0xf]
  %v52 = vld [vmem:[%s0 + $0x94] sm:$0xf]
  %v53 = vld [vmem:[%s0 + $0x98] sm:$0xf]
  %v54 = vld [vmem:[%s0 + $0x9c] sm:$0xf]
  %v55 = vld [vmem:[%s0 + $0xa0] sm:$0xf]
  %v56 = vld [vmem:[%s0 + $0xa4] sm:$0xf]
  %v57 = vld [vmem:[%s0 + $0xa8] sm:$0xf]
  %v58 = vld [vmem:[%s0 + $0xac] sm:$0xf]
  %v59 = vld [vmem:[%s0 + $0xb0] sm:$0xf]
  %v60 = vld [vmem:[%s0 + $0xb4] sm:$0xf]
  %v61 = vld [vmem:[%s0 + $0xb8] sm:$0xf]
  %v62 = vld [vmem:[%s0 + $0xbc] sm:$0xf]
  %v63 = vld [vmem:[%s0 + $0xc0] sm:$0xf]
  %v64 = vld [vmem:[%s0 + $0xc4] sm:$0xf]
  %v65 = vld [vmem:[%s0 + $0xc8] sm:$0xf]
  %v66 = vld [vmem:[%s0 + $0xcc] sm:$0xf]
  %v67 = vld [vmem:[%s0 + $0xd0] sm:$0xf]
  %v68 = vld [vmem:[%s0 + $0xd4] sm:$0xf]
  %v69 = vld [vmem:[%s0 + $0xd8] sm:$0xf]
  %v70 = vld [vmem:[%s0 + $0xdc] sm:$0xf]
  %v71 = vld [vmem:[%s0 + $0xe0] sm:$0xf]
  %v72 = vld [vmem:[%s0 + $0xe4] sm:$0xf]
  %v73 = vld [vmem:[%s0 + $0xe8] sm:$0xf]
  %v74 = vld [vmem:[%s0 + $0xec] sm:$0xf]
  %v75 = vld [vmem:[%s0 + $0xf0] sm:$0xf]
  %v76 = vld [vmem:[%s0 + $0xf4] sm:$0xf]
  %v77 = vld [vmem:[%s0 + $0xf8] sm:$0xf]
  %v78 = vld [vmem:[%s0 + $0xfc] sm:$0xf]
  %v79 = vld [vmem:[%s1] sm:$0xf]
  %v80 = vld [vmem:[%s1 + $0x4] sm:$0xf]
  %v81 = vld [vmem:[%s1 + $0x8] sm:$0xf]
  %v82 = vld [vmem:[%s1 + $0xc] sm:$0xf]
  %v83 = vld [vmem:[%s1 + $0x10] sm:$0x3]
  %v84 = vld [vmem:[%s2] sm:$0x1]
  %v86 = vlaneseq
  %v87 = vshrl.u32 %v86, 7
  %v88 = vsub.s32 0, %v87
  %v89 = vrot.slane %v84, %v88
  %v155 = vunpack.c.l.b16 %v15
  %v156 = vunpack.c.l.b16 %v16
  %v157 = vunpack.c.l.b16 %v17
  %v158 = vunpack.c.l.b16 %v18
  %v159 = vunpack.c.l.b16 %v19
  %v160 = vunpack.c.l.b16 %v20
  %v161 = vunpack.c.l.b16 %v21
  %v162 = vunpack.c.l.b16 %v22
  %v163 = vunpack.c.l.b16 %v23
  %v164 = vunpack.c.l.b16 %v24
  %v165 = vunpack.c.l.b16 %v25
  %v166 = vunpack.c.l.b16 %v26
  %v167 = vunpack.c.l.b16 %v27
  %v168 = vunpack.c.l.b16 %v28
  %v169 = vunpack.c.l.b16 %v29
  %v170 = vunpack.c.l.b16 %v30
  %v171 = vunpack.c.l.b16 %v31
  %v172 = vunpack.c.l.b16 %v32
  %v173 = vunpack.c.l.b16 %v33
  %v174 = vunpack.c.l.b16 %v34
  %v175 = vunpack.c.l.b16 %v35
  %v176 = vunpack.c.l.b16 %v36
  %v177 = vunpack.c.l.b16 %v37
  %v178 = vunpack.c.l.b16 %v38
  %v179 = vunpack.c.l.b16 %v39
  %v180 = vunpack.c.l.b16 %v40
  %v181 = vunpack.c.l.b16 %v41
  %v182 = vunpack.c.l.b16 %v42
  %v183 = vunpack.c.l.b16 %v43
  %v184 = vunpack.c.l.b16 %v44
  %v185 = vunpack.c.l.b16 %v45
  %v186 = vunpack.c.l.b16 %v46
  %v187 = vunpack.c.l.b16 %v47
  %v188 = vunpack.c.l.b16 %v48
  %v189 = vunpack.c.l.b16 %v49
  %v190 = vunpack.c.l.b16 %v50
  %v191 = vunpack.c.l.b16 %v51
  %v192 = vunpack.c.l.b16 %v52
  %v193 = vunpack.c.l.b16 %v53
  %v194 = vunpack.c.l.b16 %v54
  %v195 = vunpack.c.l.b16 %v55
  %v196 = vunpack.c.l.b16 %v56
  %v197 = vunpack.c.l.b16 %v57
  %v198 = vunpack.c.l.b16 %v58
  %v199 = vunpack.c.l.b16 %v59
  %v200 = vunpack.c.l.b16 %v60
  %v201 = vunpack.c.l.b16 %v61
  %v202 = vunpack.c.l.b16 %v62
  %v203 = vunpack.c.l.b16 %v63
  %v204 = vunpack.c.l.b16 %v64
  %v205 = vunpack.c.l.b16 %v65
  %v206 = vunpack.c.l.b16 %v66
  %v207 = vunpack.c.l.b16 %v67
  %v208 = vunpack.c.l.b16 %v68
  %v209 = vunpack.c.l.b16 %v69
  %v210 = vunpack.c.l.b16 %v70
  %v211 = vunpack.c.l.b16 %v71
  %v212 = vunpack.c.l.b16 %v72
  %v213 = vunpack.c.l.b16 %v73
  %v214 = vunpack.c.l.b16 %v74
  %v215 = vunpack.c.l.b16 %v75
  %v216 = vunpack.c.l.b16 %v76
  %v217 = vunpack.c.l.b16 %v77
  %v218 = vunpack.c.l.b16 %v78
  %v219 = vpack.c.b16 %v156, %v155
  %v220 = vpack.c.b16 %v158, %v157
  %v221 = vpack.c.b16 %v160, %v159
  %v222 = vpack.c.b16 %v162, %v161
  %v223 = vpack.c.b16 %v164, %v163
  %v224 = vpack.c.b16 %v166, %v165
  %v225 = vpack.c.b16 %v168, %v167
  %v226 = vpack.c.b16 %v170, %v169
  %v227 = vpack.c.b16 %v172, %v171
  %v228 = vpack.c.b16 %v174, %v173
  %v229 = vpack.c.b16 %v176, %v175
  %v230 = vpack.c.b16 %v178, %v177
  %v231 = vpack.c.b16 %v180, %v179
  %v232 = vpack.c.b16 %v182, %v181
  %v233 = vpack.c.b16 %v184, %v183
  %v234 = vpack.c.b16 %v186, %v185
  %v235 = vpack.c.b16 %v188, %v187
  %v236 = vpack.c.b16 %v190, %v189
  %v237 = vpack.c.b16 %v192, %v191
  %v238 = vpack.c.b16 %v194, %v193
  %v239 = vpack.c.b16 %v196, %v195
  %v240 = vpack.c.b16 %v198, %v197
  %v241 = vpack.c.b16 %v200, %v199
  %v242 = vpack.c.b16 %v202, %v201
  %v243 = vpack.c.b16 %v204, %v203
  %v244 = vpack.c.b16 %v206, %v205
  %v245 = vpack.c.b16 %v208, %v207
  %v246 = vpack.c.b16 %v210, %v209
  %v247 = vpack.c.b16 %v212, %v211
  %v248 = vpack.c.b16 %v214, %v213
  %v249 = vpack.c.b16 %v216, %v215
  %v250 = vpack.c.b16 %v218, %v217
  %v256 = vunpack.c.l.b16 %v79
  %v257 = vunpack.c.l.b16 %v80
  %v258 = vunpack.c.l.b16 %v81
  %v259 = vunpack.c.l.b16 %v82
  %v260 = vunpack.c.l.b16 %v83
  %v261 = vpack.c.b16 %v257, %v256
  %v262 = vpack.c.b16 %v259, %v258
  %v263 = vpack.c.b16 %v260, %v260
  %vm266 = vcmask 293888
  %v268 = vsel %vm266, %v219, 0
  %v271 = vsel %vm266, %v220, 0
  %v274 = vsel %vm266, %v221, 0
  %v277 = vsel %vm266, %v222, 0
  %v280 = vsel %vm266, %v223, 0
  %v283 = vsel %vm266, %v224, 0
  %v286 = vsel %vm266, %v225, 0
  %v289 = vsel %vm266, %v226, 0
  %v292 = vsel %vm266, %v227, 0
  %v295 = vsel %vm266, %v228, 0
  %v298 = vsel %vm266, %v229, 0
  %v301 = vsel %vm266, %v230, 0
  %v304 = vsel %vm266, %v231, 0
  %v307 = vsel %vm266, %v232, 0
  %v310 = vsel %vm266, %v233, 0
  %v313 = vsel %vm266, %v234, 0
  %v316 = vsel %vm266, %v235, 0
  %v319 = vsel %vm266, %v236, 0
  %v322 = vsel %vm266, %v237, 0
  %v325 = vsel %vm266, %v238, 0
  %v328 = vsel %vm266, %v239, 0
  %v331 = vsel %vm266, %v240, 0
  %v334 = vsel %vm266, %v241, 0
  %v337 = vsel %vm266, %v242, 0
  %v340 = vsel %vm266, %v243, 0
  %v343 = vsel %vm266, %v244, 0
  %v346 = vsel %vm266, %v245, 0
  %v349 = vsel %vm266, %v246, 0
  %v352 = vsel %vm266, %v247, 0
  %v355 = vsel %vm266, %v248, 0
  %v358 = vsel %vm266, %v249, 0
  %v361 = vsel %vm266, %v250, 0
  %vm363 = vcmask 1041408
  %v365 = vsel %vm363, %v263, 0
  %367 = vmatprep.subr.bf16.mxu0 0
  %368 = vmatpush1.bf16.msra.mxu0 %v261
  %369 = vmatprep.subr.bf16.mxu0 0
  %370 = vmatpush1.bf16.msra.mxu0 %v262
  %371 = vmatprep.subr.bf16.mxu0 0
  %372 = vmatpush1.bf16.msra.mxu0 %v365
  %373 = vmatprep.subr.bf16.mxu0 0
  %374 = vmatpush1.bf16.msra.mxu0 0
  %375 = vmatprep.subr.bf16.mxu0 0
  %376 = vmatpush1.bf16.msra.mxu0 0
  %377 = vmatprep.subr.bf16.mxu0 0
  %378 = vmatpush1.bf16.msra.mxu0 0
  %379 = vmatprep.subr.bf16.mxu0 0
  %380 = vmatpush1.bf16.msra.mxu0 0
  %381 = vmatprep.subr.bf16.mxu0 0
  %382 = vmatpush1.bf16.msra.mxu0 0
  %383 = vmatprep.subr.bf16.mxu0 0
  %384 = vmatpush1.bf16.msra.mxu0 0
  %385 = vmatprep.subr.bf16.mxu0 0
  %386 = vmatpush1.bf16.msra.mxu0 0
  %387 = vmatprep.subr.bf16.mxu0 0
  %388 = vmatpush1.bf16.msra.mxu0 0
  %389 = vmatprep.subr.bf16.mxu0 0
  %390 = vmatpush1.bf16.msra.mxu0 0
  %391 = vmatprep.subr.bf16.mxu0 0
  %392 = vmatpush1.bf16.msra.mxu0 0
  %393 = vmatprep.subr.bf16.mxu0 0
  %394 = vmatpush1.bf16.msra.mxu0 0
  %395 = vmatprep.subr.bf16.mxu0 0
  %396 = vmatpush1.bf16.msra.mxu0 0
  %397 = vmatprep.subr.bf16.mxu0 0
  %398 = vmatpush1.bf16.msra.mxu0 0
  %399 = vmatprep.mubr.bf16.mxu0 0
  %400 = vmatmul.mubr.bf16.gmra.mrb[0].mxu0 %v268
  %v401 = vpop.f32.mrb[0].mxu0
  %v402 = vadd.f32 %v89, %v401
  %v403 = vpop.f32.mrb[0].mxu0
  %v404 = vpop.f32.mrb[0].mxu0
  %v405 = vadd.f32 %v89, %v404
  %v406 = vpop.f32.mrb[0].mxu0
  %407 = vmatprep.mubr.bf16.mxu0 0
  %408 = vmatmul.mubr.bf16.gmra.mrb[0].mxu0 %v271
  %v409 = vpop.f32.mrb[0].mxu0
  %v410 = vadd.f32 %v89, %v409
  %v411 = vpop.f32.mrb[0].mxu0
  %v412 = vpop.f32.mrb[0].mxu0
  %v413 = vadd.f32 %v89, %v412
  %v414 = vpop.f32.mrb[0].mxu0
  %415 = vmatprep.mubr.bf16.mxu0 0
  %416 = vmatmul.mubr.bf16.gmra.mrb[0].mxu0 %v274
  %v417 = vpop.f32.mrb[0].mxu0
  %v418 = vadd.f32 %v89, %v417
  %v419 = vpop.f32.mrb[0].mxu0
  %v420 = vpop.f32.mrb[0].mxu0
  %v421 = vadd.f32 %v89, %v420
  %v422 = vpop.f32.mrb[0].mxu0
  %423 = vmatprep.mubr.bf16.mxu0 0
  %424 = vmatmul.mubr.bf16.gmra.mrb[0].mxu0 %v277
  %v425 = vpop.f32.mrb[0].mxu0
  %v426 = vadd.f32 %v89, %v425
  %v427 = vpop.f32.mrb[0].mxu0
  %v428 = vpop.f32.mrb[0].mxu0
  %v429 = vadd.f32 %v89, %v428
  %v430 = vpop.f32.mrb[0].mxu0
  %431 = vmatprep.mubr.bf16.mxu0 0
  %432 = vmatmul.mubr.bf16.gmra.mrb[0].mxu0 %v280
  %v433 = vpop.f32.mrb[0].mxu0
  %v434 = vadd.f32 %v89, %v433
  %v435 = vpop.f32.mrb[0].mxu0
  %v436 = vpop.f32.mrb[0].mxu0
  %v437 = vadd.f32 %v89, %v436
  %v438 = vpop.f32.mrb[0].mxu0
  %439 = vmatprep.mubr.bf16.mxu0 0
  %440 = vmatmul.mubr.bf16.gmra.mrb[0].mxu0 %v283
  %v441 = vpop.f32.mrb[0].mxu0
  %v442 = vadd.f32 %v89, %v441
  %v443 = vpop.f32.mrb[0].mxu0
  %v444 = vpop.f32.mrb[0].mxu0
  %v445 = vadd.f32 %v89, %v444
  %v446 = vpop.f32.mrb[0].mxu0
  %447 = vmatprep.mubr.bf16.mxu0 0
  %448 = vmatmul.mubr.bf16.gmra.mrb[0].mxu0 %v286
  %v449 = vpop.f32.mrb[0].mxu0
  %v450 = vadd.f32 %v89, %v449
  %v451 = vpop.f32.mrb[0].mxu0
  %v452 = vpop.f32.mrb[0].mxu0
  %v453 = vadd.f32 %v89, %v452
  %v454 = vpop.f32.mrb[0].mxu0
  %455 = vmatprep.mubr.bf16.mxu0 0
  %456 = vmatmul.mubr.bf16.gmra.mrb[0].mxu0 %v289
  %v457 = vpop.f32.mrb[0].mxu0
  %v458 = vadd.f32 %v89, %v457
  %v459 = vpop.f32.mrb[0].mxu0
  %v460 = vpop.f32.mrb[0].mxu0
  %v461 = vadd.f32 %v89, %v460
  %v462 = vpop.f32.mrb[0].mxu0
  %463 = vmatprep.mubr.bf16.mxu0 0
  %464 = vmatmul.mubr.bf16.gmra.mrb[0].mxu0 %v292
  %v465 = vpop.f32.mrb[0].mxu0
  %v466 = vadd.f32 %v89, %v465
  %v467 = vpop.f32.mrb[0].mxu0
  %v468 = vpop.f32.mrb[0].mxu0
  %v469 = vadd.f32 %v89, %v468
  %v470 = vpop.f32.mrb[0].mxu0
  %471 = vmatprep.mubr.bf16.mxu0 0
  %472 = vmatmul.mubr.bf16.gmra.mrb[0].mxu0 %v295
  %v473 = vpop.f32.mrb[0].mxu0
  %v474 = vadd.f32 %v89, %v473
  %v475 = vpop.f32.mrb[0].mxu0
  %v476 = vpop.f32.mrb[0].mxu0
  %v477 = vadd.f32 %v89, %v476
  %v478 = vpop.f32.mrb[0].mxu0
  %479 = vmatprep.mubr.bf16.mxu0 0
  %480 = vmatmul.mubr.bf16.gmra.mrb[0].mxu0 %v298
  %v481 = vpop.f32.mrb[0].mxu0
  %v482 = vadd.f32 %v89, %v481
  %v483 = vpop.f32.mrb[0].mxu0
  %v484 = vpop.f32.mrb[0].mxu0
  %v485 = vadd.f32 %v89, %v484
  %v486 = vpop.f32.mrb[0].mxu0
  %487 = vmatprep.mubr.bf16.mxu0 0
  %488 = vmatmul.mubr.bf16.gmra.mrb[0].mxu0 %v301
  %v489 = vpop.f32.mrb[0].mxu0
  %v490 = vadd.f32 %v89, %v489
  %v491 = vpop.f32.mrb[0].mxu0
  %v492 = vpop.f32.mrb[0].mxu0
  %v493 = vadd.f32 %v89, %v492
  %v494 = vpop.f32.mrb[0].mxu0
  %495 = vmatprep.mubr.bf16.mxu0 0
  %496 = vmatmul.mubr.bf16.gmra.mrb[0].mxu0 %v304
  %v497 = vpop.f32.mrb[0].mxu0
  %v498 = vadd.f32 %v89, %v497
  %v499 = vpop.f32.mrb[0].mxu0
  %v500 = vpop.f32.mrb[0].mxu0
  %v501 = vadd.f32 %v89, %v500
  %v502 = vpop.f32.mrb[0].mxu0
  %503 = vmatprep.mubr.bf16.mxu0 0
  %504 = vmatmul.mubr.bf16.gmra.mrb[0].mxu0 %v307
  %v505 = vpop.f32.mrb[0].mxu0
  %v506 = vadd.f32 %v89, %v505
  %v507 = vpop.f32.mrb[0].mxu0
  %v508 = vpop.f32.mrb[0].mxu0
  %v509 = vadd.f32 %v89, %v508
  %v510 = vpop.f32.mrb[0].mxu0
  %511 = vmatprep.mubr.bf16.mxu0 0
  %512 = vmatmul.mubr.bf16.gmra.mrb[0].mxu0 %v310
  %v513 = vpop.f32.mrb[0].mxu0
  %v514 = vadd.f32 %v89, %v513
  %v515 = vpop.f32.mrb[0].mxu0
  %v516 = vpop.f32.mrb[0].mxu0
  %v517 = vadd.f32 %v89, %v516
  %v518 = vpop.f32.mrb[0].mxu0
  %519 = vmatprep.mubr.bf16.mxu0 0
  %520 = vmatmul.mubr.bf16.gmra.mrb[0].mxu0 %v313
  %v521 = vpop.f32.mrb[0].mxu0
  %v522 = vadd.f32 %v89, %v521
  %v523 = vpop.f32.mrb[0].mxu0
  %v524 = vpop.f32.mrb[0].mxu0
  %v525 = vadd.f32 %v89, %v524
  %v526 = vpop.f32.mrb[0].mxu0
  %527 = vmatprep.mubr.bf16.mxu0 0
  %528 = vmatmul.mubr.bf16.gmra.mrb[0].mxu0 %v316
  %v529 = vpop.f32.mrb[0].mxu0
  %v530 = vadd.f32 %v89, %v529
  %v531 = vpop.f32.mrb[0].mxu0
  %v532 = vpop.f32.mrb[0].mxu0
  %v533 = vadd.f32 %v89, %v532
  %v534 = vpop.f32.mrb[0].mxu0
  %535 = vmatprep.mubr.bf16.mxu0 0
  %536 = vmatmul.mubr.bf16.gmra.mrb[0].mxu0 %v319
  %v537 = vpop.f32.mrb[0].mxu0
  %v538 = vadd.f32 %v89, %v537
  %v539 = vpop.f32.mrb[0].mxu0
  %v540 = vpop.f32.mrb[0].mxu0
  %v541 = vadd.f32 %v89, %v540
  %v542 = vpop.f32.mrb[0].mxu0
  %543 = vmatprep.mubr.bf16.mxu0 0
  %544 = vmatmul.mubr.bf16.gmra.mrb[0].mxu0 %v322
  %v545 = vpop.f32.mrb[0].mxu0
  %v546 = vadd.f32 %v89, %v545
  %v547 = vpop.f32.mrb[0].mxu0
  %v548 = vpop.f32.mrb[0].mxu0
  %v549 = vadd.f32 %v89, %v548
  %v550 = vpop.f32.mrb[0].mxu0
  %551 = vmatprep.mubr.bf16.mxu0 0
  %552 = vmatmul.mubr.bf16.gmra.mrb[0].mxu0 %v325
  %v553 = vpop.f32.mrb[0].mxu0
  %v554 = vadd.f32 %v89, %v553
  %v555 = vpop.f32.mrb[0].mxu0
  %v556 = vpop.f32.mrb[0].mxu0
  %v557 = vadd.f32 %v89, %v556
  %v558 = vpop.f32.mrb[0].mxu0
  %559 = vmatprep.mubr.bf16.mxu0 0
  %560 = vmatmul.mubr.bf16.gmra.mrb[0].mxu0 %v328
  %v561 = vpop.f32.mrb[0].mxu0
  %v562 = vadd.f32 %v89, %v561
  %v563 = vpop.f32.mrb[0].mxu0
  %v564 = vpop.f32.mrb[0].mxu0
  %v565 = vadd.f32 %v89, %v564
  %v566 = vpop.f32.mrb[0].mxu0
  %567 = vmatprep.mubr.bf16.mxu0 0
  %568 = vmatmul.mubr.bf16.gmra.mrb[0].mxu0 %v331
  %v569 = vpop.f32.mrb[0].mxu0
  %v570 = vadd.f32 %v89, %v569
  %v571 = vpop.f32.mrb[0].mxu0
  %v572 = vpop.f32.mrb[0].mxu0
  %v573 = vadd.f32 %v89, %v572
  %v574 = vpop.f32.mrb[0].mxu0
  %575 = vmatprep.mubr.bf16.mxu0 0
  %576 = vmatmul.mubr.bf16.gmra.mrb[0].mxu0 %v334
  %v577 = vpop.f32.mrb[0].mxu0
  %v578 = vadd.f32 %v89, %v577
  %v579 = vpop.f32.mrb[0].mxu0
  %v580 = vpop.f32.mrb[0].mxu0
  %v581 = vadd.f32 %v89, %v580
  %v582 = vpop.f32.mrb[0].mxu0
  %583 = vmatprep.mubr.bf16.mxu0 0
  %584 = vmatmul.mubr.bf16.gmra.mrb[0].mxu0 %v337
  %v585 = vpop.f32.mrb[0].mxu0
  %v586 = vadd.f32 %v89, %v585
  %v587 = vpop.f32.mrb[0].mxu0
  %v588 = vpop.f32.mrb[0].mxu0
  %v589 = vadd.f32 %v89, %v588
  %v590 = vpop.f32.mrb[0].mxu0
  %591 = vmatprep.mubr.bf16.mxu0 0
  %592 = vmatmul.mubr.bf16.gmra.mrb[0].mxu0 %v340
  %v593 = vpop.f32.mrb[0].mxu0
  %v594 = vadd.f32 %v89, %v593
  %v595 = vpop.f32.mrb[0].mxu0
  %v596 = vpop.f32.mrb[0].mxu0
  %v597 = vadd.f32 %v89, %v596
  %v598 = vpop.f32.mrb[0].mxu0
  %599 = vmatprep.mubr.bf16.mxu0 0
  %600 = vmatmul.mubr.bf16.gmra.mrb[0].mxu0 %v343
  %v601 = vpop.f32.mrb[0].mxu0
  %v602 = vadd.f32 %v89, %v601
  %v603 = vpop.f32.mrb[0].mxu0
  %v604 = vpop.f32.mrb[0].mxu0
  %v605 = vadd.f32 %v89, %v604
  %v606 = vpop.f32.mrb[0].mxu0
  %607 = vmatprep.mubr.bf16.mxu0 0
  %608 = vmatmul.mubr.bf16.gmra.mrb[0].mxu0 %v346
  %v609 = vpop.f32.mrb[0].mxu0
  %v610 = vadd.f32 %v89, %v609
  %v611 = vpop.f32.mrb[0].mxu0
  %v612 = vpop.f32.mrb[0].mxu0
  %v613 = vadd.f32 %v89, %v612
  %v614 = vpop.f32.mrb[0].mxu0
  %615 = vmatprep.mubr.bf16.mxu0 0
  %616 = vmatmul.mubr.bf16.gmra.mrb[0].mxu0 %v349
  %v617 = vpop.f32.mrb[0].mxu0
  %v618 = vadd.f32 %v89, %v617
  %v619 = vpop.f32.mrb[0].mxu0
  %v620 = vpop.f32.mrb[0].mxu0
  %v621 = vadd.f32 %v89, %v620
  %v622 = vpop.f32.mrb[0].mxu0
  %623 = vmatprep.mubr.bf16.mxu0 0
  %624 = vmatmul.mubr.bf16.gmra.mrb[0].mxu0 %v352
  %v625 = vpop.f32.mrb[0].mxu0
  %v626 = vadd.f32 %v89, %v625
  %v627 = vpop.f32.mrb[0].mxu0
  %v628 = vpop.f32.mrb[0].mxu0
  %v629 = vadd.f32 %v89, %v628
  %v630 = vpop.f32.mrb[0].mxu0
  %631 = vmatprep.mubr.bf16.mxu0 0
  %632 = vmatmul.mubr.bf16.gmra.mrb[0].mxu0 %v355
  %v633 = vpop.f32.mrb[0].mxu0
  %v634 = vadd.f32 %v89, %v633
  %v635 = vpop.f32.mrb[0].mxu0
  %v636 = vpop.f32.mrb[0].mxu0
  %v637 = vadd.f32 %v89, %v636
  %v638 = vpop.f32.mrb[0].mxu0
  %639 = vmatprep.mubr.bf16.mxu0 0
  %640 = vmatmul.mubr.bf16.gmra.mrb[0].mxu0 %v358
  %v641 = vpop.f32.mrb[0].mxu0
  %v642 = vadd.f32 %v89, %v641
  %v643 = vpop.f32.mrb[0].mxu0
  %v644 = vpop.f32.mrb[0].mxu0
  %v645 = vadd.f32 %v89, %v644
  %v646 = vpop.f32.mrb[0].mxu0
  %647 = vmatprep.mubr.bf16.mxu0 0
  %648 = vmatmul.mubr.bf16.gmra.mrb[0].mxu0 %v361
  %v649 = vpop.f32.mrb[0].mxu0
  %v650 = vadd.f32 %v89, %v649
  %v651 = vpop.f32.mrb[0].mxu0
  %v652 = vpop.f32.mrb[0].mxu0
  %v653 = vadd.f32 %v89, %v652
  %v654 = vpop.f32.mrb[0].mxu0
  %655 = vdwg.mxu0
  %vm656 = vcmp.ge.f32.partialorder %v402, 0.0
  %vm657 = vcmp.ge.f32.partialorder %v405, 0.0
  %vm658 = vcmp.ge.f32.partialorder %v410, 0.0
  %vm659 = vcmp.ge.f32.partialorder %v413, 0.0
  %vm660 = vcmp.ge.f32.partialorder %v418, 0.0
  %vm661 = vcmp.ge.f32.partialorder %v421, 0.0
  %vm662 = vcmp.ge.f32.partialorder %v426, 0.0
  %vm663 = vcmp.ge.f32.partialorder %v429, 0.0
  %vm664 = vcmp.ge.f32.partialorder %v434, 0.0
  %vm665 = vcmp.ge.f32.partialorder %v437, 0.0
  %vm666 = vcmp.ge.f32.partialorder %v442, 0.0
  %vm667 = vcmp.ge.f32.partialorder %v445, 0.0
  %vm668 = vcmp.ge.f32.partialorder %v450, 0.0
  %vm669 = vcmp.ge.f32.partialorder %v453, 0.0
  %vm670 = vcmp.ge.f32.partialorder %v458, 0.0
  %vm671 = vcmp.ge.f32.partialorder %v461, 0.0
  %vm672 = vcmp.ge.f32.partialorder %v466, 0.0
  %vm673 = vcmp.ge.f32.partialorder %v469, 0.0
  %vm674 = vcmp.ge.f32.partialorder %v474, 0.0
  %vm675 = vcmp.ge.f32.partialorder %v477, 0.0
  %vm676 = vcmp.ge.f32.partialorder %v482, 0.0
  %vm677 = vcmp.ge.f32.partialorder %v485, 0.0
  %vm678 = vcmp.ge.f32.partialorder %v490, 0.0
  %vm679 = vcmp.ge.f32.partialorder %v493, 0.0
  %vm680 = vcmp.ge.f32.partialorder %v498, 0.0
  %vm681 = vcmp.ge.f32.partialorder %v501, 0.0
  %vm682 = vcmp.ge.f32.partialorder %v506, 0.0
  %vm683 = vcmp.ge.f32.partialorder %v509, 0.0
  %vm684 = vcmp.ge.f32.partialorder %v514, 0.0
  %vm685 = vcmp.ge.f32.partialorder %v517, 0.0
  %vm686 = vcmp.ge.f32.partialorder %v522, 0.0
  %vm687 = vcmp.ge.f32.partialorder %v525, 0.0
  %vm688 = vcmp.ge.f32.partialorder %v530, 0.0
  %vm689 = vcmp.ge.f32.partialorder %v533, 0.0
  %vm690 = vcmp.ge.f32.partialorder %v538, 0.0
  %vm691 = vcmp.ge.f32.partialorder %v541, 0.0
  %vm692 = vcmp.ge.f32.partialorder %v546, 0.0
  %vm693 = vcmp.ge.f32.partialorder %v549, 0.0
  %vm694 = vcmp.ge.f32.partialorder %v554, 0.0
  %vm695 = vcmp.ge.f32.partialorder %v557, 0.0
  %vm696 = vcmp.ge.f32.partialorder %v562, 0.0
  %vm697 = vcmp.ge.f32.partialorder %v565, 0.0
  %vm698 = vcmp.ge.f32.partialorder %v570, 0.0
  %vm699 = vcmp.ge.f32.partialorder %v573, 0.0
  %vm700 = vcmp.ge.f32.partialorder %v578, 0.0
  %vm701 = vcmp.ge.f32.partialorder %v581, 0.0
  %vm702 = vcmp.ge.f32.partialorder %v586, 0.0
  %vm703 = vcmp.ge.f32.partialorder %v589, 0.0
  %vm704 = vcmp.ge.f32.partialorder %v594, 0.0
  %vm705 = vcmp.ge.f32.partialorder %v597, 0.0
  %vm706 = vcmp.ge.f32.partialorder %v602, 0.0
  %vm707 = vcmp.ge.f32.partialorder %v605, 0.0
  %vm708 = vcmp.ge.f32.partialorder %v610, 0.0
  %vm709 = vcmp.ge.f32.partialorder %v613, 0.0
  %vm710 = vcmp.ge.f32.partialorder %v618, 0.0
  %vm711 = vcmp.ge.f32.partialorder %v621, 0.0
  %vm712 = vcmp.ge.f32.partialorder %v626, 0.0
  %vm713 = vcmp.ge.f32.partialorder %v629, 0.0
  %vm714 = vcmp.ge.f32.partialorder %v634, 0.0
  %vm715 = vcmp.ge.f32.partialorder %v637, 0.0
  %vm716 = vcmp.ge.f32.partialorder %v642, 0.0
  %vm717 = vcmp.ge.f32.partialorder %v645, 0.0
  %vm718 = vcmp.ge.f32.partialorder %v650, 0.0
  %vm719 = vcmp.ge.f32.partialorder %v653, 0.0
  %v720 = vmul.f32 %v402, 0.2
  %v721 = vmul.f32 %v405, 0.2
  %v722 = vmul.f32 %v410, 0.2
  %v723 = vmul.f32 %v413, 0.2
  %v724 = vmul.f32 %v418, 0.2
  %v725 = vmul.f32 %v421, 0.2
  %v726 = vmul.f32 %v426, 0.2
  %v727 = vmul.f32 %v429, 0.2
  %v728 = vmul.f32 %v434, 0.2
  %v729 = vmul.f32 %v437, 0.2
  %v730 = vmul.f32 %v442, 0.2
  %v731 = vmul.f32 %v445, 0.2
  %v732 = vmul.f32 %v450, 0.2
  %v733 = vmul.f32 %v453, 0.2
  %v734 = vmul.f32 %v458, 0.2
  %v735 = vmul.f32 %v461, 0.2
  %v736 = vmul.f32 %v466, 0.2
  %v737 = vmul.f32 %v469, 0.2
  %v738 = vmul.f32 %v474, 0.2
  %v739 = vmul.f32 %v477, 0.2
  %v740 = vmul.f32 %v482, 0.2
  %v741 = vmul.f32 %v485, 0.2
  %v742 = vmul.f32 %v490, 0.2
  %v743 = vmul.f32 %v493, 0.2
  %v744 = vmul.f32 %v498, 0.2
  %v745 = vmul.f32 %v501, 0.2
  %v746 = vmul.f32 %v506, 0.2
  %v747 = vmul.f32 %v509, 0.2
  %v748 = vmul.f32 %v514, 0.2
  %v749 = vmul.f32 %v517, 0.2
  %v750 = vmul.f32 %v522, 0.2
  %v751 = vmul.f32 %v525, 0.2
  %v752 = vmul.f32 %v530, 0.2
  %v753 = vmul.f32 %v533, 0.2
  %v754 = vmul.f32 %v538, 0.2
  %v755 = vmul.f32 %v541, 0.2
  %v756 = vmul.f32 %v546, 0.2
  %v757 = vmul.f32 %v549, 0.2
  %v758 = vmul.f32 %v554, 0.2
  %v759 = vmul.f32 %v557, 0.2
  %v760 = vmul.f32 %v562, 0.2
  %v761 = vmul.f32 %v565, 0.2
  %v762 = vmul.f32 %v570, 0.2
  %v763 = vmul.f32 %v573, 0.2
  %v764 = vmul.f32 %v578, 0.2
  %v765 = vmul.f32 %v581, 0.2
  %v766 = vmul.f32 %v586, 0.2
  %v767 = vmul.f32 %v589, 0.2
  %v768 = vmul.f32 %v594, 0.2
  %v769 = vmul.f32 %v597, 0.2
  %v770 = vmul.f32 %v602, 0.2
  %v771 = vmul.f32 %v605, 0.2
  %v772 = vmul.f32 %v610, 0.2
  %v773 = vmul.f32 %v613, 0.2
  %v774 = vmul.f32 %v618, 0.2
  %v775 = vmul.f32 %v621, 0.2
  %v776 = vmul.f32 %v626, 0.2
  %v777 = vmul.f32 %v629, 0.2
  %v778 = vmul.f32 %v634, 0.2
  %v779 = vmul.f32 %v637, 0.2
  %v780 = vmul.f32 %v642, 0.2
  %v781 = vmul.f32 %v645, 0.2
  %v782 = vmul.f32 %v650, 0.2
  %v783 = vmul.f32 %v653, 0.2
  %v784 = vsel %vm656, %v402, %v720
  %v785 = vsel %vm657, %v405, %v721
  %v786 = vsel %vm658, %v410, %v722
  %v787 = vsel %vm659, %v413, %v723
  %v788 = vsel %vm660, %v418, %v724
  %v789 = vsel %vm661, %v421, %v725
  %v790 = vsel %vm662, %v426, %v726
  %v791 = vsel %vm663, %v429, %v727
  %v792 = vsel %vm664, %v434, %v728
  %v793 = vsel %vm665, %v437, %v729
  %v794 = vsel %vm666, %v442, %v730
  %v795 = vsel %vm667, %v445, %v731
  %v796 = vsel %vm668, %v450, %v732
  %v797 = vsel %vm669, %v453, %v733
  %v798 = vsel %vm670, %v458, %v734
  %v799 = vsel %vm671, %v461, %v735
  %v800 = vsel %vm672, %v466, %v736
  %v801 = vsel %vm673, %v469, %v737
  %v802 = vsel %vm674, %v474, %v738
  %v803 = vsel %vm675, %v477, %v739
  %v804 = vsel %vm676, %v482, %v740
  %v805 = vsel %vm677, %v485, %v741
  %v806 = vsel %vm678, %v490, %v742
  %v807 = vsel %vm679, %v493, %v743
  %v808 = vsel %vm680, %v498, %v744
  %v809 = vsel %vm681, %v501, %v745
  %v810 = vsel %vm682, %v506, %v746
  %v811 = vsel %vm683, %v509, %v747
  %v812 = vsel %vm684, %v514, %v748
  %v813 = vsel %vm685, %v517, %v749
  %v814 = vsel %vm686, %v522, %v750
  %v815 = vsel %vm687, %v525, %v751
  %v816 = vsel %vm688, %v530, %v752
  %v817 = vsel %vm689, %v533, %v753
  %v818 = vsel %vm690, %v538, %v754
  %v819 = vsel %vm691, %v541, %v755
  %v820 = vsel %vm692, %v546, %v756
  %v821 = vsel %vm693, %v549, %v757
  %v822 = vsel %vm694, %v554, %v758
  %v823 = vsel %vm695, %v557, %v759
  %v824 = vsel %vm696, %v562, %v760
  %v825 = vsel %vm697, %v565, %v761
  %v826 = vsel %vm698, %v570, %v762
  %v827 = vsel %vm699, %v573, %v763
  %v828 = vsel %vm700, %v578, %v764
  %v829 = vsel %vm701, %v581, %v765
  %v830 = vsel %vm702, %v586, %v766
  %v831 = vsel %vm703, %v589, %v767
  %v832 = vsel %vm704, %v594, %v768
  %v833 = vsel %vm705, %v597, %v769
  %v834 = vsel %vm706, %v602, %v770
  %v835 = vsel %vm707, %v605, %v771
  %v836 = vsel %vm708, %v610, %v772
  %v837 = vsel %vm709, %v613, %v773
  %v838 = vsel %vm710, %v618, %v774
  %v839 = vsel %vm711, %v621, %v775
  %v840 = vsel %vm712, %v626, %v776
  %v841 = vsel %vm713, %v629, %v777
  %v842 = vsel %vm714, %v634, %v778
  %v843 = vsel %vm715, %v637, %v779
  %v844 = vsel %vm716, %v642, %v780
  %v845 = vsel %vm717, %v645, %v781
  %v846 = vsel %vm718, %v650, %v782
  %v847 = vsel %vm719, %v653, %v783
  %v848 = vpack.c.bf16 %v785, %v784
  %v849 = vpack.c.bf16 %v787, %v786
  %v850 = vpack.c.bf16 %v789, %v788
  %v851 = vpack.c.bf16 %v791, %v790
  %v852 = vpack.c.bf16 %v793, %v792
  %v853 = vpack.c.bf16 %v795, %v794
  %v854 = vpack.c.bf16 %v797, %v796
  %v855 = vpack.c.bf16 %v799, %v798
  %v856 = vpack.c.bf16 %v801, %v800
  %v857 = vpack.c.bf16 %v803, %v802
  %v858 = vpack.c.bf16 %v805, %v804
  %v859 = vpack.c.bf16 %v807, %v806
  %v860 = vpack.c.bf16 %v809, %v808
  %v861 = vpack.c.bf16 %v811, %v810
  %v862 = vpack.c.bf16 %v813, %v812
  %v863 = vpack.c.bf16 %v815, %v814
  %v864 = vpack.c.bf16 %v817, %v816
  %v865 = vpack.c.bf16 %v819, %v818
  %v866 = vpack.c.bf16 %v821, %v820
  %v867 = vpack.c.bf16 %v823, %v822
  %v868 = vpack.c.bf16 %v825, %v824
  %v869 = vpack.c.bf16 %v827, %v826
  %v870 = vpack.c.bf16 %v829, %v828
  %v871 = vpack.c.bf16 %v831, %v830
  %v872 = vpack.c.bf16 %v833, %v832
  %v873 = vpack.c.bf16 %v835, %v834
  %v874 = vpack.c.bf16 %v837, %v836
  %v875 = vpack.c.bf16 %v839, %v838
  %v876 = vpack.c.bf16 %v841, %v840
  %v877 = vpack.c.bf16 %v843, %v842
  %v878 = vpack.c.bf16 %v845, %v844
  %v879 = vpack.c.bf16 %v847, %v846
  %v912 = vunpack.c.l.b16 %v848
  %v913 = vunpack.c.h.b16 %v848
  %v914 = vunpack.c.l.b16 %v849
  %v915 = vunpack.c.h.b16 %v849
  %v916 = vunpack.c.l.b16 %v850
  %v917 = vunpack.c.h.b16 %v850
  %v918 = vunpack.c.l.b16 %v851
  %v919 = vunpack.c.h.b16 %v851
  %v920 = vunpack.c.l.b16 %v852
  %v921 = vunpack.c.h.b16 %v852
  %v922 = vunpack.c.l.b16 %v853
  %v923 = vunpack.c.h.b16 %v853
  %v924 = vunpack.c.l.b16 %v854
  %v925 = vunpack.c.h.b16 %v854
  %v926 = vunpack.c.l.b16 %v855
  %v927 = vunpack.c.h.b16 %v855
  %v928 = vunpack.c.l.b16 %v856
  %v929 = vunpack.c.h.b16 %v856
  %v930 = vunpack.c.l.b16 %v857
  %v931 = vunpack.c.h.b16 %v857
  %v932 = vunpack.c.l.b16 %v858
  %v933 = vunpack.c.h.b16 %v858
  %v934 = vunpack.c.l.b16 %v859
  %v935 = vunpack.c.h.b16 %v859
  %v936 = vunpack.c.l.b16 %v860
  %v937 = vunpack.c.h.b16 %v860
  %v938 = vunpack.c.l.b16 %v861
  %v939 = vunpack.c.h.b16 %v861
  %v940 = vunpack.c.l.b16 %v862
  %v941 = vunpack.c.h.b16 %v862
  %v942 = vunpack.c.l.b16 %v863
  %v943 = vunpack.c.h.b16 %v863
  %v944 = vunpack.c.l.b16 %v864
  %v945 = vunpack.c.h.b16 %v864
  %v946 = vunpack.c.l.b16 %v865
  %v947 = vunpack.c.h.b16 %v865
  %v948 = vunpack.c.l.b16 %v866
  %v949 = vunpack.c.h.b16 %v866
  %v950 = vunpack.c.l.b16 %v867
  %v951 = vunpack.c.h.b16 %v867
  %v952 = vunpack.c.l.b16 %v868
  %v953 = vunpack.c.h.b16 %v868
  %v954 = vunpack.c.l.b16 %v869
  %v955 = vunpack.c.h.b16 %v869
  %v956 = vunpack.c.l.b16 %v870
  %v957 = vunpack.c.h.b16 %v870
  %v958 = vunpack.c.l.b16 %v871
  %v959 = vunpack.c.h.b16 %v871
  %v960 = vunpack.c.l.b16 %v872
  %v961 = vunpack.c.h.b16 %v872
  %v962 = vunpack.c.l.b16 %v873
  %v963 = vunpack.c.h.b16 %v873
  %v964 = vunpack.c.l.b16 %v874
  %v965 = vunpack.c.h.b16 %v874
  %v966 = vunpack.c.l.b16 %v875
  %v967 = vunpack.c.h.b16 %v875
  %v968 = vunpack.c.l.b16 %v876
  %v969 = vunpack.c.h.b16 %v876
  %v970 = vunpack.c.l.b16 %v877
  %v971 = vunpack.c.h.b16 %v877
  %v972 = vunpack.c.l.b16 %v878
  %v973 = vunpack.c.h.b16 %v878
  %v974 = vunpack.c.l.b16 %v879
  %v975 = vunpack.c.h.b16 %v879
  %v976 = vpack.c.b16 %v912, %v912
  %v977 = vpack.c.b16 %v913, %v913
  %v978 = vpack.c.b16 %v914, %v914
  %v979 = vpack.c.b16 %v915, %v915
  %v980 = vpack.c.b16 %v916, %v916
  %v981 = vpack.c.b16 %v917, %v917
  %v982 = vpack.c.b16 %v918, %v918
  %v983 = vpack.c.b16 %v919, %v919
  %v984 = vpack.c.b16 %v920, %v920
  %v985 = vpack.c.b16 %v921, %v921
  %v986 = vpack.c.b16 %v922, %v922
  %v987 = vpack.c.b16 %v923, %v923
  %v988 = vpack.c.b16 %v924, %v924
  %v989 = vpack.c.b16 %v925, %v925
  %v990 = vpack.c.b16 %v926, %v926
  %v991 = vpack.c.b16 %v927, %v927
  %v992 = vpack.c.b16 %v928, %v928
  %v993 = vpack.c.b16 %v929, %v929
  %v994 = vpack.c.b16 %v930, %v930
  %v995 = vpack.c.b16 %v931, %v931
  %v996 = vpack.c.b16 %v932, %v932
  %v997 = vpack.c.b16 %v933, %v933
  %v998 = vpack.c.b16 %v934, %v934
  %v999 = vpack.c.b16 %v935, %v935
  %v1000 = vpack.c.b16 %v936, %v936
  %v1001 = vpack.c.b16 %v937, %v937
  %v1002 = vpack.c.b16 %v938, %v938
  %v1003 = vpack.c.b16 %v939, %v939
  %v1004 = vpack.c.b16 %v940, %v940
  %v1005 = vpack.c.b16 %v941, %v941
  %v1006 = vpack.c.b16 %v942, %v942
  %v1007 = vpack.c.b16 %v943, %v943
  %v1008 = vpack.c.b16 %v944, %v944
  %v1009 = vpack.c.b16 %v945, %v945
  %v1010 = vpack.c.b16 %v946, %v946
  %v1011 = vpack.c.b16 %v947, %v947
  %v1012 = vpack.c.b16 %v948, %v948
  %v1013 = vpack.c.b16 %v949, %v949
  %v1014 = vpack.c.b16 %v950, %v950
  %v1015 = vpack.c.b16 %v951, %v951
  %v1016 = vpack.c.b16 %v952, %v952
  %v1017 = vpack.c.b16 %v953, %v953
  %v1018 = vpack.c.b16 %v954, %v954
  %v1019 = vpack.c.b16 %v955, %v955
  %v1020 = vpack.c.b16 %v956, %v956
  %v1021 = vpack.c.b16 %v957, %v957
  %v1022 = vpack.c.b16 %v958, %v958
  %v1023 = vpack.c.b16 %v959, %v959
  %v1024 = vpack.c.b16 %v960, %v960
  %v1025 = vpack.c.b16 %v961, %v961
  %v1026 = vpack.c.b16 %v962, %v962
  %v1027 = vpack.c.b16 %v963, %v963
  %v1028 = vpack.c.b16 %v964, %v964
  %v1029 = vpack.c.b16 %v965, %v965
  %v1030 = vpack.c.b16 %v966, %v966
  %v1031 = vpack.c.b16 %v967, %v967
  %v1032 = vpack.c.b16 %v968, %v968
  %v1033 = vpack.c.b16 %v969, %v969
  %v1034 = vpack.c.b16 %v970, %v970
  %v1035 = vpack.c.b16 %v971, %v971
  %v1036 = vpack.c.b16 %v972, %v972
  %v1037 = vpack.c.b16 %v973, %v973
  %v1038 = vpack.c.b16 %v974, %v974
  %v1039 = vpack.c.b16 %v975, %v975
  %vm1104 = vcmask 519168
  %1105 = vst.msk [vmem:[%s3] sm:$0xf] %vm1104, %v976
  %1106 = vst.msk [vmem:[%s3 + $0x4] sm:$0xf] %vm1104, %v977
  %1107 = vst.msk [vmem:[%s3 + $0x8] sm:$0xf] %vm1104, %v978
  %1108 = vst.msk [vmem:[%s3 + $0xc] sm:$0xf] %vm1104, %v979
  %1109 = vst.msk [vmem:[%s3 + $0x10] sm:$0xf] %vm1104, %v980
  %1110 = vst.msk [vmem:[%s3 + $0x14] sm:$0xf] %vm1104, %v981
  %1111 = vst.msk [vmem:[%s3 + $0x18] sm:$0xf] %vm1104, %v982
  %1112 = vst.msk [vmem:[%s3 + $0x1c] sm:$0xf] %vm1104, %v983
  %1113 = vst.msk [vmem:[%s3 + $0x20] sm:$0xf] %vm1104, %v984
  %1114 = vst.msk [vmem:[%s3 + $0x24] sm:$0xf] %vm1104, %v985
  %1115 = vst.msk [vmem:[%s3 + $0x28] sm:$0xf] %vm1104, %v986
  %1116 = vst.msk [vmem:[%s3 + $0x2c] sm:$0xf] %vm1104, %v987
  %1117 = vst.msk [vmem:[%s3 + $0x30] sm:$0xf] %vm1104, %v988
  %1118 = vst.msk [vmem:[%s3 + $0x34] sm:$0xf] %vm1104, %v989
  %1119 = vst.msk [vmem:[%s3 + $0x38] sm:$0xf] %vm1104, %v990
  %1120 = vst.msk [vmem:[%s3 + $0x3c] sm:$0xf] %vm1104, %v991
  %1121 = vst.msk [vmem:[%s3 + $0x40] sm:$0xf] %vm1104, %v992
  %1122 = vst.msk [vmem:[%s3 + $0x44] sm:$0xf] %vm1104, %v993
  %1123 = vst.msk [vmem:[%s3 + $0x48] sm:$0xf] %vm1104, %v994
  %1124 = vst.msk [vmem:[%s3 + $0x4c] sm:$0xf] %vm1104, %v995
  %1125 = vst.msk [vmem:[%s3 + $0x50] sm:$0xf] %vm1104, %v996
  %1126 = vst.msk [vmem:[%s3 + $0x54] sm:$0xf] %vm1104, %v997
  %1127 = vst.msk [vmem:[%s3 + $0x58] sm:$0xf] %vm1104, %v998
  %1128 = vst.msk [vmem:[%s3 + $0x5c] sm:$0xf] %vm1104, %v999
  %1129 = vst.msk [vmem:[%s3 + $0x60] sm:$0xf] %vm1104, %v1000
  %1130 = vst.msk [vmem:[%s3 + $0x64] sm:$0xf] %vm1104, %v1001
  %1131 = vst.msk [vmem:[%s3 + $0x68] sm:$0xf] %vm1104, %v1002
  %1132 = vst.msk [vmem:[%s3 + $0x6c] sm:$0xf] %vm1104, %v1003
  %1133 = vst.msk [vmem:[%s3 + $0x70] sm:$0xf] %vm1104, %v1004
  %1134 = vst.msk [vmem:[%s3 + $0x74] sm:$0xf] %vm1104, %v1005
  %1135 = vst.msk [vmem:[%s3 + $0x78] sm:$0xf] %vm1104, %v1006
  %1136 = vst.msk [vmem:[%s3 + $0x7c] sm:$0xf] %vm1104, %v1007
  %1137 = vst.msk [vmem:[%s3 + $0x80] sm:$0xf] %vm1104, %v1008
  %1138 = vst.msk [vmem:[%s3 + $0x84] sm:$0xf] %vm1104, %v1009
  %1139 = vst.msk [vmem:[%s3 + $0x88] sm:$0xf] %vm1104, %v1010
  %1140 = vst.msk [vmem:[%s3 + $0x8c] sm:$0xf] %vm1104, %v1011
  %1141 = vst.msk [vmem:[%s3 + $0x90] sm:$0xf] %vm1104, %v1012
  %1142 = vst.msk [vmem:[%s3 + $0x94] sm:$0xf] %vm1104, %v1013
  %1143 = vst.msk [vmem:[%s3 + $0x98] sm:$0xf] %vm1104, %v1014
  %1144 = vst.msk [vmem:[%s3 + $0x9c] sm:$0xf] %vm1104, %v1015
  %1145 = vst.msk [vmem:[%s3 + $0xa0] sm:$0xf] %vm1104, %v1016
  %1146 = vst.msk [vmem:[%s3 + $0xa4] sm:$0xf] %vm1104, %v1017
  %1147 = vst.msk [vmem:[%s3 + $0xa8] sm:$0xf] %vm1104, %v1018
  %1148 = vst.msk [vmem:[%s3 + $0xac] sm:$0xf] %vm1104, %v1019
  %1149 = vst.msk [vmem:[%s3 + $0xb0] sm:$0xf] %vm1104, %v1020
  %1150 = vst.msk [vmem:[%s3 + $0xb4] sm:$0xf] %vm1104, %v1021
  %1151 = vst.msk [vmem:[%s3 + $0xb8] sm:$0xf] %vm1104, %v1022
  %1152 = vst.msk [vmem:[%s3 + $0xbc] sm:$0xf] %vm1104, %v1023
  %1153 = vst.msk [vmem:[%s3 + $0xc0] sm:$0xf] %vm1104, %v1024
  %1154 = vst.msk [vmem:[%s3 + $0xc4] sm:$0xf] %vm1104, %v1025
  %1155 = vst.msk [vmem:[%s3 + $0xc8] sm:$0xf] %vm1104, %v1026
  %1156 = vst.msk [vmem:[%s3 + $0xcc] sm:$0xf] %vm1104, %v1027
  %1157 = vst.msk [vmem:[%s3 + $0xd0] sm:$0xf] %vm1104, %v1028
  %1158 = vst.msk [vmem:[%s3 + $0xd4] sm:$0xf] %vm1104, %v1029
  %1159 = vst.msk [vmem:[%s3 + $0xd8] sm:$0xf] %vm1104, %v1030
  %1160 = vst.msk [vmem:[%s3 + $0xdc] sm:$0xf] %vm1104, %v1031
  %1161 = vst.msk [vmem:[%s3 + $0xe0] sm:$0xf] %vm1104, %v1032
  %1162 = vst.msk [vmem:[%s3 + $0xe4] sm:$0xf] %vm1104, %v1033
  %1163 = vst.msk [vmem:[%s3 + $0xe8] sm:$0xf] %vm1104, %v1034
  %1164 = vst.msk [vmem:[%s3 + $0xec] sm:$0xf] %vm1104, %v1035
  %1165 = vst.msk [vmem:[%s3 + $0xf0] sm:$0xf] %vm1104, %v1036
  %1166 = vst.msk [vmem:[%s3 + $0xf4] sm:$0xf] %vm1104, %v1037
  %1167 = vst.msk [vmem:[%s3 + $0xf8] sm:$0xf] %vm1104, %v1038
  %1168 = vst.msk [vmem:[%s3 + $0xfc] sm:$0xf] %vm1104, %v1039
  // Predicated region
  $region14: #{discriminator_forward.5} parent=0 // pred_check
    _
  $region15: #{discriminator_forward.5} parent=0 // pred_check_branch
    %1170 = sbr.rel (0) target = $region17
  $region16: #{discriminator_forward.5} parent=0 // pred_region
    _
  $region17: #{discriminator_forward.5} parent=0 // pred_fallthru
    _
  // Predicated region
  $region18: #{discriminator_forward.5} parent=0 // pred_check
    _
  $region19: #{discriminator_forward.5} parent=0 // pred_check_branch
    %1172 = sbr.rel (0) target = $region21
  $region20: #{discriminator_forward.5} parent=0 // pred_region
    _
  $region21: #{discriminator_forward.5} parent=0 // pred_fallthru
    _

// kernel: discriminator_forward.6
$region0: #{discriminator_forward.6}
  #allocation0 [shape = 'u32[]', space=smem, size = 0x4, offset = 0x4, fixed_abs, tag = 'smem constant byte address 0x4 - core index']
  #allocation1 [shape = 'u32[144,128]{1,0:T(1,128)}', space=vmem, size = 0x12000, scoped, tag = 'internal scratch']
  %s0 = inlined_call_operand.vmem [shape: bf16[128,576], index: 0, kind: input, shape index: {}]
  %s1 = inlined_call_operand.vmem [shape: bf16[576,128], index: 1, kind: input, shape index: {}]
  %s2 = inlined_call_operand.vmem [shape: f32[1,128], index: 2, kind: input, shape index: {}]
  %s3 = inlined_call_operand.vmem [shape: bf16[128,128], index: 3, kind: output, shape index: {}]
  %s4 = sld [smem:[#allocation0]]
  $region22: #{discriminator_forward.6} parent=0
    _
  %s6 = ssub.s32 1, %s4
  %s7 = scalar_select 0, %s6, %s4
  // Predicated region
  $region2: #{discriminator_forward.6} parent=0 // pred_check
    _
  $region3: #{discriminator_forward.6} parent=0 // pred_check_branch
    %9 = sbr.rel (0) target = $region5
  $region4: #{discriminator_forward.6} parent=0 // pred_region
    _
  $region5: #{discriminator_forward.6} parent=0 // pred_fallthru
    _
  // Predicated region
  $region6: #{discriminator_forward.6} parent=0 // pred_check
    _
  $region7: #{discriminator_forward.6} parent=0 // pred_check_branch
    %11 = sbr.rel (0) target = $region9
  $region8: #{discriminator_forward.6} parent=0 // pred_region
    _
  $region9: #{discriminator_forward.6} parent=0 // pred_fallthru
    _
  // Predicated region
  $region10: #{discriminator_forward.6} parent=0 // pred_check
    _
  $region11: #{discriminator_forward.6} parent=0 // pred_check_branch
    %13 = sbr.rel (0) target = $region13
  $region12: #{discriminator_forward.6} parent=0 // pred_region
    _
  $region13: #{discriminator_forward.6} parent=0 // pred_fallthru
    _
  %v15 = vld [vmem:[%s0] sm:$0xff]
  %v16 = vld [vmem:[%s0 + $0x8] sm:$0xff]
  %v17 = vld [vmem:[%s0 + $0x10] sm:$0xf]
  %v18 = vld [vmem:[%s0 + $0x14] sm:$0xff]
  %v19 = vld [vmem:[%s0 + $0x1c] sm:$0xff]
  %v20 = vld [vmem:[%s0 + $0x24] sm:$0xf]
  %v21 = vld [vmem:[%s0 + $0x28] sm:$0xff]
  %v22 = vld [vmem:[%s0 + $0x30] sm:$0xff]
  %v23 = vld [vmem:[%s0 + $0x38] sm:$0xf]
  %v24 = vld [vmem:[%s0 + $0x3c] sm:$0xff]
  %v25 = vld [vmem:[%s0 + $0x44] sm:$0xff]
  %v26 = vld [vmem:[%s0 + $0x4c] sm:$0xf]
  %v27 = vld [vmem:[%s0 + $0x50] sm:$0xff]
  %v28 = vld [vmem:[%s0 + $0x58] sm:$0xff]
  %v29 = vld [vmem:[%s0 + $0x60] sm:$0xf]
  %v30 = vld [vmem:[%s0 + $0x64] sm:$0xff]
  %v31 = vld [vmem:[%s0 + $0x6c] sm:$0xff]
  %v32 = vld [vmem:[%s0 + $0x74] sm:$0xf]
  %v33 = vld [vmem:[%s0 + $0x78] sm:$0xff]
  %v34 = vld [vmem:[%s0 + $0x80] sm:$0xff]
  %v35 = vld [vmem:[%s0 + $0x88] sm:$0xf]
  %v36 = vld [vmem:[%s0 + $0x8c] sm:$0xff]
  %v37 = vld [vmem:[%s0 + $0x94] sm:$0xff]
  %v38 = vld [vmem:[%s0 + $0x9c] sm:$0xf]
  %v39 = vld [vmem:[%s0 + $0xa0] sm:$0xff]
  %v40 = vld [vmem:[%s0 + $0xa8] sm:$0xff]
  %v41 = vld [vmem:[%s0 + $0xb0] sm:$0xf]
  %v42 = vld [vmem:[%s0 + $0xb4] sm:$0xff]
  %v43 = vld [vmem:[%s0 + $0xbc] sm:$0xff]
  %v44 = vld [vmem:[%s0 + $0xc4] sm:$0xf]
  %v45 = vld [vmem:[%s0 + $0xc8] sm:$0xff]
  %v46 = vld [vmem:[%s0 + $0xd0] sm:$0xff]
  %v47 = vld [vmem:[%s0 + $0xd8] sm:$0xf]
  %v48 = vld [vmem:[%s0 + $0xdc] sm:$0xff]
  %v49 = vld [vmem:[%s0 + $0xe4] sm:$0xff]
  %v50 = vld [vmem:[%s0 + $0xec] sm:$0xf]
  %v51 = vld [vmem:[%s0 + $0xf0] sm:$0xff]
  %v52 = vld [vmem:[%s0 + $0xf8] sm:$0xff]
  %v53 = vld [vmem:[%s0 + $0x100] sm:$0xf]
  %v54 = vld [vmem:[%s0 + $0x104] sm:$0xff]
  %v55 = vld [vmem:[%s0 + $0x10c] sm:$0xff]
  %v56 = vld [vmem:[%s0 + $0x114] sm:$0xf]
  %v57 = vld [vmem:[%s0 + $0x118] sm:$0xff]
  %v58 = vld [vmem:[%s0 + $0x120] sm:$0xff]
  %v59 = vld [vmem:[%s0 + $0x128] sm:$0xf]
  %v60 = vld [vmem:[%s0 + $0x12c] sm:$0xff]
  %v61 = vld [vmem:[%s0 + $0x134] sm:$0xff]
  %v62 = vld [vmem:[%s0 + $0x13c] sm:$0xf]
  %v63 = vld [vmem:[%s1] sm:$0xf]
  %v64 = vld [vmem:[%s1 + $0x4] sm:$0xf]
  %v65 = vld [vmem:[%s1 + $0x8] sm:$0xf]
  %v66 = vld [vmem:[%s1 + $0xc] sm:$0xf]
  %v67 = vld [vmem:[%s1 + $0x10] sm:$0xf]
  %v68 = vld [vmem:[%s1 + $0x14] sm:$0xf]
  %v69 = vld [vmem:[%s1 + $0x18] sm:$0xf]
  %v70 = vld [vmem:[%s1 + $0x1c] sm:$0xf]
  %v71 = vld [vmem:[%s1 + $0x20] sm:$0xf]
  %v72 = vld [vmem:[%s1 + $0x24] sm:$0xf]
  %v73 = vld [vmem:[%s1 + $0x28] sm:$0xf]
  %v74 = vld [vmem:[%s1 + $0x2c] sm:$0xf]
  %v75 = vld [vmem:[%s1 + $0x30] sm:$0xf]
  %v76 = vld [vmem:[%s1 + $0x34] sm:$0xf]
  %v77 = vld [vmem:[%s1 + $0x38] sm:$0xf]
  %v78 = vld [vmem:[%s1 + $0x3c] sm:$0xf]
  %v79 = vld [vmem:[%s1 + $0x40] sm:$0xf]
  %v80 = vld [vmem:[%s1 + $0x44] sm:$0xf]
  %v81 = vld [vmem:[%s1 + $0x48] sm:$0xf]
  %v82 = vld [vmem:[%s1 + $0x4c] sm:$0xf]
  %v83 = vld [vmem:[%s1 + $0x50] sm:$0xf]
  %v84 = vld [vmem:[%s1 + $0x54] sm:$0xf]
  %v85 = vld [vmem:[%s1 + $0x58] sm:$0xf]
  %v86 = vld [vmem:[%s1 + $0x5c] sm:$0xf]
  %v87 = vld [vmem:[%s1 + $0x60] sm:$0xf]
  %v88 = vld [vmem:[%s1 + $0x64] sm:$0xf]
  %v89 = vld [vmem:[%s1 + $0x68] sm:$0xf]
  %v90 = vld [vmem:[%s1 + $0x6c] sm:$0xf]
  %v91 = vld [vmem:[%s1 + $0x70] sm:$0xf]
  %v92 = vld [vmem:[%s1 + $0x74] sm:$0xf]
  %v93 = vld [vmem:[%s1 + $0x78] sm:$0xf]
  %v94 = vld [vmem:[%s1 + $0x7c] sm:$0xf]
  %v95 = vld [vmem:[%s1 + $0x80] sm:$0xf]
  %v96 = vld [vmem:[%s1 + $0x84] sm:$0xf]
  %v97 = vld [vmem:[%s1 + $0x88] sm:$0xf]
  %v98 = vld [vmem:[%s1 + $0x8c] sm:$0xf]
  %v99 = vld [vmem:[%s1 + $0x90] sm:$0xf]
  %v100 = vld [vmem:[%s1 + $0x94] sm:$0xf]
  %v101 = vld [vmem:[%s1 + $0x98] sm:$0xf]
  %v102 = vld [vmem:[%s1 + $0x9c] sm:$0xf]
  %v103 = vld [vmem:[%s1 + $0xa0] sm:$0xf]
  %v104 = vld [vmem:[%s1 + $0xa4] sm:$0xf]
  %v105 = vld [vmem:[%s1 + $0xa8] sm:$0xf]
  %v106 = vld [vmem:[%s1 + $0xac] sm:$0xf]
  %v107 = vld [vmem:[%s1 + $0xb0] sm:$0xf]
  %v108 = vld [vmem:[%s1 + $0xb4] sm:$0xf]
  %v109 = vld [vmem:[%s1 + $0xb8] sm:$0xf]
  %v110 = vld [vmem:[%s1 + $0xbc] sm:$0xf]
  %v111 = vld [vmem:[%s1 + $0xc0] sm:$0xf]
  %v112 = vld [vmem:[%s1 + $0xc4] sm:$0xf]
  %v113 = vld [vmem:[%s1 + $0xc8] sm:$0xf]
  %v114 = vld [vmem:[%s1 + $0xcc] sm:$0xf]
  %v115 = vld [vmem:[%s1 + $0xd0] sm:$0xf]
  %v116 = vld [vmem:[%s1 + $0xd4] sm:$0xf]
  %v117 = vld [vmem:[%s1 + $0xd8] sm:$0xf]
  %v118 = vld [vmem:[%s1 + $0xdc] sm:$0xf]
  %v119 = vld [vmem:[%s1 + $0xe0] sm:$0xf]
  %v120 = vld [vmem:[%s1 + $0xe4] sm:$0xf]
  %v121 = vld [vmem:[%s1 + $0xe8] sm:$0xf]
  %v122 = vld [vmem:[%s1 + $0xec] sm:$0xf]
  %v123 = vld [vmem:[%s1 + $0xf0] sm:$0xf]
  %v124 = vld [vmem:[%s1 + $0xf4] sm:$0xf]
  %v125 = vld [vmem:[%s1 + $0xf8] sm:$0xf]
  %v126 = vld [vmem:[%s1 + $0xfc] sm:$0xf]
  %v127 = vld [vmem:[%s1 + $0x100] sm:$0xf]
  %v128 = vld [vmem:[%s1 + $0x104] sm:$0xf]
  %v129 = vld [vmem:[%s1 + $0x108] sm:$0xf]
  %v130 = vld [vmem:[%s1 + $0x10c] sm:$0xf]
  %v131 = vld [vmem:[%s1 + $0x110] sm:$0xf]
  %v132 = vld [vmem:[%s1 + $0x114] sm:$0xf]
  %v133 = vld [vmem:[%s1 + $0x118] sm:$0xf]
  %v134 = vld [vmem:[%s1 + $0x11c] sm:$0xf]
  %v135 = vld [vmem:[%s2] sm:$0x1]
  %v137 = vlaneseq
  %v138 = vshrl.u32 %v137, 7
  %v139 = vsub.s32 0, %v138
  %v140 = vrot.slane %v135, %v139
  %v190 = vunpack.c.l.b16 %v15
  %v191 = vunpack.c.h.b16 %v15
  %v192 = vunpack.c.l.b16 %v16
  %v193 = vunpack.c.h.b16 %v16
  %v194 = vunpack.c.l.b16 %v17
  %v195 = vunpack.c.l.b16 %v18
  %v196 = vunpack.c.h.b16 %v18
  %v197 = vunpack.c.l.b16 %v19
  %v198 = vunpack.c.h.b16 %v19
  %v199 = vunpack.c.l.b16 %v20
  %v200 = vunpack.c.l.b16 %v21
  %v201 = vunpack.c.h.b16 %v21
  %v202 = vunpack.c.l.b16 %v22
  %v203 = vunpack.c.h.b16 %v22
  %v204 = vunpack.c.l.b16 %v23
  %v205 = vunpack.c.l.b16 %v24
  %v206 = vunpack.c.h.b16 %v24
  %v207 = vunpack.c.l.b16 %v25
  %v208 = vunpack.c.h.b16 %v25
  %v209 = vunpack.c.l.b16 %v26
  %v210 = vunpack.c.l.b16 %v27
  %v211 = vunpack.c.h.b16 %v27
  %v212 = vunpack.c.l.b16 %v28
  %v213 = vunpack.c.h.b16 %v28
  %v214 = vunpack.c.l.b16 %v29
  %v215 = vunpack.c.l.b16 %v30
  %v216 = vunpack.c.h.b16 %v30
  %v217 = vunpack.c.l.b16 %v31
  %v218 = vunpack.c.h.b16 %v31
  %v219 = vunpack.c.l.b16 %v32
  %v220 = vunpack.c.l.b16 %v33
  %v221 = vunpack.c.h.b16 %v33
  %v222 = vunpack.c.l.b16 %v34
  %v223 = vunpack.c.h.b16 %v34
  %v224 = vunpack.c.l.b16 %v35
  %v225 = vunpack.c.l.b16 %v36
  %v226 = vunpack.c.h.b16 %v36
  %v227 = vunpack.c.l.b16 %v37
  %v228 = vunpack.c.h.b16 %v37
  %v229 = vunpack.c.l.b16 %v38
  %v230 = vunpack.c.l.b16 %v39
  %v231 = vunpack.c.h.b16 %v39
  %v232 = vunpack.c.l.b16 %v40
  %v233 = vunpack.c.h.b16 %v40
  %v234 = vunpack.c.l.b16 %v41
  %v235 = vunpack.c.l.b16 %v42
  %v236 = vunpack.c.h.b16 %v42
  %v237 = vunpack.c.l.b16 %v43
  %v238 = vunpack.c.h.b16 %v43
  %v239 = vunpack.c.l.b16 %v44
  %v240 = vunpack.c.l.b16 %v45
  %v241 = vunpack.c.h.b16 %v45
  %v242 = vunpack.c.l.b16 %v46
  %v243 = vunpack.c.h.b16 %v46
  %v244 = vunpack.c.l.b16 %v47
  %v245 = vunpack.c.l.b16 %v48
  %v246 = vunpack.c.h.b16 %v48
  %v247 = vunpack.c.l.b16 %v49
  %v248 = vunpack.c.h.b16 %v49
  %v249 = vunpack.c.l.b16 %v50
  %v250 = vunpack.c.l.b16 %v51
  %v251 = vunpack.c.h.b16 %v51
  %v252 = vunpack.c.l.b16 %v52
  %v253 = vunpack.c.h.b16 %v52
  %v254 = vunpack.c.l.b16 %v53
  %v255 = vunpack.c.l.b16 %v54
  %v256 = vunpack.c.h.b16 %v54
  %v257 = vunpack.c.l.b16 %v55
  %v258 = vunpack.c.h.b16 %v55
  %v259 = vunpack.c.l.b16 %v56
  %v260 = vunpack.c.l.b16 %v57
  %v261 = vunpack.c.h.b16 %v57
  %v262 = vunpack.c.l.b16 %v58
  %v263 = vunpack.c.h.b16 %v58
  %v264 = vunpack.c.l.b16 %v59
  %v265 = vunpack.c.l.b16 %v60
  %v266 = vunpack.c.h.b16 %v60
  %v267 = vunpack.c.l.b16 %v61
  %v268 = vunpack.c.h.b16 %v61
  %v269 = vunpack.c.l.b16 %v62
  %v270 = vpack.c.b16 %v195, %v190
  %v271 = vpack.c.b16 %v196, %v191
  %v272 = vpack.c.b16 %v197, %v192
  %v273 = vpack.c.b16 %v198, %v193
  %v274 = vpack.c.b16 %v199, %v194
  %v275 = vpack.c.b16 %v205, %v200
  %v276 = vpack.c.b16 %v206, %v201
  %v277 = vpack.c.b16 %v207, %v202
  %v278 = vpack.c.b16 %v208, %v203
  %v279 = vpack.c.b16 %v209, %v204
  %v280 = vpack.c.b16 %v215, %v210
  %v281 = vpack.c.b16 %v216, %v211
  %v282 = vpack.c.b16 %v217, %v212
  %v283 = vpack.c.b16 %v218, %v213
  %v284 = vpack.c.b16 %v219, %v214
  %v285 = vpack.c.b16 %v225, %v220
  %v286 = vpack.c.b16 %v226, %v221
  %v287 = vpack.c.b16 %v227, %v222
  %v288 = vpack.c.b16 %v228, %v223
  %v289 = vpack.c.b16 %v229, %v224
  %v290 = vpack.c.b16 %v235, %v230
  %v291 = vpack.c.b16 %v236, %v231
  %v292 = vpack.c.b16 %v237, %v232
  %v293 = vpack.c.b16 %v238, %v233
  %v294 = vpack.c.b16 %v239, %v234
  %v295 = vpack.c.b16 %v245, %v240
  %v296 = vpack.c.b16 %v246, %v241
  %v297 = vpack.c.b16 %v247, %v242
  %v298 = vpack.c.b16 %v248, %v243
  %v299 = vpack.c.b16 %v249, %v244
  %v300 = vpack.c.b16 %v255, %v250
  %v301 = vpack.c.b16 %v256, %v251
  %v302 = vpack.c.b16 %v257, %v252
  %v303 = vpack.c.b16 %v258, %v253
  %v304 = vpack.c.b16 %v259, %v254
  %v305 = vpack.c.b16 %v265, %v260
  %v306 = vpack.c.b16 %v266, %v261
  %v307 = vpack.c.b16 %v267, %v262
  %v308 = vpack.c.b16 %v268, %v263
  %v309 = vpack.c.b16 %v269, %v264
  %v414 = vunpack.c.l.b16 %v63
  %v415 = vunpack.c.l.b16 %v64
  %v416 = vunpack.c.l.b16 %v65
  %v417 = vunpack.c.l.b16 %v66
  %v418 = vunpack.c.l.b16 %v67
  %v419 = vunpack.c.l.b16 %v68
  %v420 = vunpack.c.l.b16 %v69
  %v421 = vunpack.c.l.b16 %v70
  %v422 = vunpack.c.l.b16 %v71
  %v423 = vunpack.c.l.b16 %v72
  %v424 = vunpack.c.l.b16 %v73
  %v425 = vunpack.c.l.b16 %v74
  %v426 = vunpack.c.l.b16 %v75
  %v427 = vunpack.c.l.b16 %v76
  %v428 = vunpack.c.l.b16 %v77
  %v429 = vunpack.c.l.b16 %v78
  %v430 = vunpack.c.l.b16 %v79
  %v431 = vunpack.c.l.b16 %v80
  %v432 = vunpack.c.l.b16 %v81
  %v433 = vunpack.c.l.b16 %v82
  %v434 = vunpack.c.l.b16 %v83
  %v435 = vunpack.c.l.b16 %v84
  %v436 = vunpack.c.l.b16 %v85
  %v437 = vunpack.c.l.b16 %v86
  %v438 = vunpack.c.l.b16 %v87
  %v439 = vunpack.c.l.b16 %v88
  %v440 = vunpack.c.l.b16 %v89
  %v441 = vunpack.c.l.b16 %v90
  %v442 = vunpack.c.l.b16 %v91
  %v443 = vunpack.c.l.b16 %v92
  %v444 = vunpack.c.l.b16 %v93
  %v445 = vunpack.c.l.b16 %v94
  %v446 = vunpack.c.l.b16 %v95
  %v447 = vunpack.c.l.b16 %v96
  %v448 = vunpack.c.l.b16 %v97
  %v449 = vunpack.c.l.b16 %v98
  %v450 = vunpack.c.l.b16 %v99
  %v451 = vunpack.c.l.b16 %v100
  %v452 = vunpack.c.l.b16 %v101
  %v453 = vunpack.c.l.b16 %v102
  %v454 = vunpack.c.l.b16 %v103
  %v455 = vunpack.c.l.b16 %v104
  %v456 = vunpack.c.l.b16 %v105
  %v457 = vunpack.c.l.b16 %v106
  %v458 = vunpack.c.l.b16 %v107
  %v459 = vunpack.c.l.b16 %v108
  %v460 = vunpack.c.l.b16 %v109
  %v461 = vunpack.c.l.b16 %v110
  %v462 = vunpack.c.l.b16 %v111
  %v463 = vunpack.c.l.b16 %v112
  %v464 = vunpack.c.l.b16 %v113
  %v465 = vunpack.c.l.b16 %v114
  %v466 = vunpack.c.l.b16 %v115
  %v467 = vunpack.c.l.b16 %v116
  %v468 = vunpack.c.l.b16 %v117
  %v469 = vunpack.c.l.b16 %v118
  %v470 = vunpack.c.l.b16 %v119
  %v471 = vunpack.c.l.b16 %v120
  %v472 = vunpack.c.l.b16 %v121
  %v473 = vunpack.c.l.b16 %v122
  %v474 = vunpack.c.l.b16 %v123
  %v475 = vunpack.c.l.b16 %v124
  %v476 = vunpack.c.l.b16 %v125
  %v477 = vunpack.c.l.b16 %v126
  %v478 = vunpack.c.l.b16 %v127
  %v479 = vunpack.c.l.b16 %v128
  %v480 = vunpack.c.l.b16 %v129
  %v481 = vunpack.c.l.b16 %v130
  %v482 = vunpack.c.l.b16 %v131
  %v483 = vunpack.c.l.b16 %v132
  %v484 = vunpack.c.l.b16 %v133
  %v485 = vunpack.c.l.b16 %v134
  %v486 = vpack.c.b16 %v415, %v414
  %v487 = vpack.c.b16 %v417, %v416
  %v488 = vpack.c.b16 %v419, %v418
  %v489 = vpack.c.b16 %v421, %v420
  %v490 = vpack.c.b16 %v423, %v422
  %v491 = vpack.c.b16 %v425, %v424
  %v492 = vpack.c.b16 %v427, %v426
  %v493 = vpack.c.b16 %v429, %v428
  %v494 = vpack.c.b16 %v431, %v430
  %v495 = vpack.c.b16 %v433, %v432
  %v496 = vpack.c.b16 %v435, %v434
  %v497 = vpack.c.b16 %v437, %v436
  %v498 = vpack.c.b16 %v439, %v438
  %v499 = vpack.c.b16 %v441, %v440
  %v500 = vpack.c.b16 %v443, %v442
  %v501 = vpack.c.b16 %v445, %v444
  %v502 = vpack.c.b16 %v447, %v446
  %v503 = vpack.c.b16 %v449, %v448
  %v504 = vpack.c.b16 %v451, %v450
  %v505 = vpack.c.b16 %v453, %v452
  %v506 = vpack.c.b16 %v455, %v454
  %v507 = vpack.c.b16 %v457, %v456
  %v508 = vpack.c.b16 %v459, %v458
  %v509 = vpack.c.b16 %v461, %v460
  %v510 = vpack.c.b16 %v463, %v462
  %v511 = vpack.c.b16 %v465, %v464
  %v512 = vpack.c.b16 %v467, %v466
  %v513 = vpack.c.b16 %v469, %v468
  %v514 = vpack.c.b16 %v471, %v470
  %v515 = vpack.c.b16 %v473, %v472
  %v516 = vpack.c.b16 %v475, %v474
  %v517 = vpack.c.b16 %v477, %v476
  %v518 = vpack.c.b16 %v479, %v478
  %v519 = vpack.c.b16 %v481, %v480
  %v520 = vpack.c.b16 %v483, %v482
  %v521 = vpack.c.b16 %v485, %v484
  %vm558 = vcmask 523264
  %v560 = vsel %vm558, %v274, 0
  %v563 = vsel %vm558, %v279, 0
  %v566 = vsel %vm558, %v284, 0
  %v569 = vsel %vm558, %v289, 0
  %v572 = vsel %vm558, %v294, 0
  %v575 = vsel %vm558, %v299, 0
  %v578 = vsel %vm558, %v304, 0
  %v581 = vsel %vm558, %v309, 0
  %583 = vmatprep.subr.bf16.mxu0 0
  %584 = vmatpush1.bf16.msra.mxu0 %v486
  %585 = vmatprep.subr.bf16.mxu0 0
  %586 = vmatpush1.bf16.msra.mxu0 %v487
  %587 = vmatprep.subr.bf16.mxu0 0
  %588 = vmatpush1.bf16.msra.mxu0 %v488
  %589 = vmatprep.subr.bf16.mxu0 0
  %590 = vmatpush1.bf16.msra.mxu0 %v489
  %591 = vmatprep.subr.bf16.mxu0 0
  %592 = vmatpush1.bf16.msra.mxu0 %v490
  %593 = vmatprep.subr.bf16.mxu0 0
  %594 = vmatpush1.bf16.msra.mxu0 %v491
  %595 = vmatprep.subr.bf16.mxu0 0
  %596 = vmatpush1.bf16.msra.mxu0 %v492
  %597 = vmatprep.subr.bf16.mxu0 0
  %598 = vmatpush1.bf16.msra.mxu0 %v493
  %599 = vmatprep.subr.bf16.mxu0 0
  %600 = vmatpush1.bf16.msra.mxu0 %v494
  %601 = vmatprep.subr.bf16.mxu0 0
  %602 = vmatpush1.bf16.msra.mxu0 %v495
  %603 = vmatprep.subr.bf16.mxu0 0
  %604 = vmatpush1.bf16.msra.mxu0 %v496
  %605 = vmatprep.subr.bf16.mxu0 0
  %606 = vmatpush1.bf16.msra.mxu0 %v497
  %607 = vmatprep.subr.bf16.mxu0 0
  %608 = vmatpush1.bf16.msra.mxu0 %v498
  %609 = vmatprep.subr.bf16.mxu0 0
  %610 = vmatpush1.bf16.msra.mxu0 %v499
  %611 = vmatprep.subr.bf16.mxu0 0
  %612 = vmatpush1.bf16.msra.mxu0 %v500
  %613 = vmatprep.subr.bf16.mxu0 0
  %614 = vmatpush1.bf16.msra.mxu0 %v501
  %615 = vmatprep.mubr.bf16.mxu0 %v271
  %616 = vmatmul.mubr.bf16.gmra.mrb[0].mxu0 %v270
  %v617 = vpop.f32.mrb[0].mxu0
  %v618 = vadd.f32 %v140, %v617
  %v619 = vpop.f32.mrb[0].mxu0
  %v620 = vpop.f32.mrb[0].mxu0
  %v621 = vadd.f32 %v140, %v620
  %v622 = vpop.f32.mrb[0].mxu0
  %623 = vmatprep.mubr.bf16.mxu0 %v276
  %624 = vmatmul.mubr.bf16.gmra.mrb[0].mxu0 %v275
  %v625 = vpop.f32.mrb[0].mxu0
  %v626 = vadd.f32 %v140, %v625
  %v627 = vpop.f32.mrb[0].mxu0
  %v628 = vpop.f32.mrb[0].mxu0
  %v629 = vadd.f32 %v140, %v628
  %v630 = vpop.f32.mrb[0].mxu0
  %631 = vmatprep.mubr.bf16.mxu0 %v281
  %632 = vmatmul.mubr.bf16.gmra.mrb[0].mxu0 %v280
  %v633 = vpop.f32.mrb[0].mxu0
  %v634 = vadd.f32 %v140, %v633
  %v635 = vpop.f32.mrb[0].mxu0
  %v636 = vpop.f32.mrb[0].mxu0
  %v637 = vadd.f32 %v140, %v636
  %v638 = vpop.f32.mrb[0].mxu0
  %639 = vmatprep.mubr.bf16.mxu0 %v286
  %640 = vmatmul.mubr.bf16.gmra.mrb[0].mxu0 %v285
  %v641 = vpop.f32.mrb[0].mxu0
  %v642 = vadd.f32 %v140, %v641
  %v643 = vpop.f32.mrb[0].mxu0
  %v644 = vpop.f32.mrb[0].mxu0
  %v645 = vadd.f32 %v140, %v644
  %v646 = vpop.f32.mrb[0].mxu0
  %647 = vmatprep.mubr.bf16.mxu0 %v291
  %648 = vmatmul.mubr.bf16.gmra.mrb[0].mxu0 %v290
  %v649 = vpop.f32.mrb[0].mxu0
  %v650 = vadd.f32 %v140, %v649
  %v651 = vpop.f32.mrb[0].mxu0
  %v652 = vpop.f32.mrb[0].mxu0
  %v653 = vadd.f32 %v140, %v652
  %v654 = vpop.f32.mrb[0].mxu0
  %655 = vmatprep.mubr.bf16.mxu0 %v296
  %656 = vmatmul.mubr.bf16.gmra.mrb[0].mxu0 %v295
  %v657 = vpop.f32.mrb[0].mxu0
  %v658 = vadd.f32 %v140, %v657
  %v659 = vpop.f32.mrb[0].mxu0
  %v660 = vpop.f32.mrb[0].mxu0
  %v661 = vadd.f32 %v140, %v660
  %v662 = vpop.f32.mrb[0].mxu0
  %663 = vmatprep.mubr.bf16.mxu0 %v301
  %664 = vmatmul.mubr.bf16.gmra.mrb[0].mxu0 %v300
  %v665 = vpop.f32.mrb[0].mxu0
  %v666 = vadd.f32 %v140, %v665
  %v667 = vpop.f32.mrb[0].mxu0
  %v668 = vpop.f32.mrb[0].mxu0
  %v669 = vadd.f32 %v140, %v668
  %v670 = vpop.f32.mrb[0].mxu0
  %671 = vmatprep.mubr.bf16.mxu0 %v306
  %672 = vmatmul.mubr.bf16.gmra.mrb[0].mxu0 %v305
  %v673 = vpop.f32.mrb[0].mxu0
  %v674 = vadd.f32 %v140, %v673
  %v675 = vpop.f32.mrb[0].mxu0
  %v676 = vpop.f32.mrb[0].mxu0
  %v677 = vadd.f32 %v140, %v676
  %v678 = vpop.f32.mrb[0].mxu0
  %679 = vdwg.mxu0
  %680 = vmatprep.subr.bf16.mxu0 0
  %681 = vmatpush1.bf16.msra.mxu0 %v502
  %682 = vmatprep.subr.bf16.mxu0 0
  %683 = vmatpush1.bf16.msra.mxu0 %v503
  %684 = vmatprep.subr.bf16.mxu0 0
  %685 = vmatpush1.bf16.msra.mxu0 %v504
  %686 = vmatprep.subr.bf16.mxu0 0
  %687 = vmatpush1.bf16.msra.mxu0 %v505
  %688 = vmatprep.subr.bf16.mxu0 0
  %689 = vmatpush1.bf16.msra.mxu0 %v506
  %690 = vmatprep.subr.bf16.mxu0 0
  %691 = vmatpush1.bf16.msra.mxu0 %v507
  %692 = vmatprep.subr.bf16.mxu0 0
  %693 = vmatpush1.bf16.msra.mxu0 %v508
  %694 = vmatprep.subr.bf16.mxu0 0
  %695 = vmatpush1.bf16.msra.mxu0 %v509
  %696 = vmatprep.subr.bf16.mxu0 0
  %697 = vmatpush1.bf16.msra.mxu0 %v510
  %698 = vmatprep.subr.bf16.mxu0 0
  %699 = vmatpush1.bf16.msra.mxu0 %v511
  %700 = vmatprep.subr.bf16.mxu0 0
  %701 = vmatpush1.bf16.msra.mxu0 %v512
  %702 = vmatprep.subr.bf16.mxu0 0
  %703 = vmatpush1.bf16.msra.mxu0 %v513
  %704 = vmatprep.subr.bf16.mxu0 0
  %705 = vmatpush1.bf16.msra.mxu0 %v514
  %706 = vmatprep.subr.bf16.mxu0 0
  %707 = vmatpush1.bf16.msra.mxu0 %v515
  %708 = vmatprep.subr.bf16.mxu0 0
  %709 = vmatpush1.bf16.msra.mxu0 %v516
  %710 = vmatprep.subr.bf16.mxu0 0
  %711 = vmatpush1.bf16.msra.mxu0 %v517
  %712 = vmatprep.mubr.bf16.mxu0 %v273
  %713 = vmatmul.mubr.bf16.gmra.mrb[0].mxu0 %v272
  %v714 = vpop.f32.mrb[0].mxu0
  %v715 = vadd.f32 %v618, %v714
  %v716 = vpop.f32.mrb[0].mxu0
  %v717 = vpop.f32.mrb[0].mxu0
  %v718 = vadd.f32 %v621, %v717
  %v719 = vpop.f32.mrb[0].mxu0
  %720 = vmatprep.mubr.bf16.mxu0 %v278
  %721 = vmatmul.mubr.bf16.gmra.mrb[0].mxu0 %v277
  %v722 = vpop.f32.mrb[0].mxu0
  %v723 = vadd.f32 %v626, %v722
  %v724 = vpop.f32.mrb[0].mxu0
  %v725 = vpop.f32.mrb[0].mxu0
  %v726 = vadd.f32 %v629, %v725
  %v727 = vpop.f32.mrb[0].mxu0
  %728 = vmatprep.mubr.bf16.mxu0 %v283
  %729 = vmatmul.mubr.bf16.gmra.mrb[0].mxu0 %v282
  %v730 = vpop.f32.mrb[0].mxu0
  %v731 = vadd.f32 %v634, %v730
  %v732 = vpop.f32.mrb[0].mxu0
  %v733 = vpop.f32.mrb[0].mxu0
  %v734 = vadd.f32 %v637, %v733
  %v735 = vpop.f32.mrb[0].mxu0
  %736 = vmatprep.mubr.bf16.mxu0 %v288
  %737 = vmatmul.mubr.bf16.gmra.mrb[0].mxu0 %v287
  %v738 = vpop.f32.mrb[0].mxu0
  %v739 = vadd.f32 %v642, %v738
  %v740 = vpop.f32.mrb[0].mxu0
  %v741 = vpop.f32.mrb[0].mxu0
  %v742 = vadd.f32 %v645, %v741
  %v743 = vpop.f32.mrb[0].mxu0
  %744 = vmatprep.mubr.bf16.mxu0 %v293
  %745 = vmatmul.mubr.bf16.gmra.mrb[0].mxu0 %v292
  %v746 = vpop.f32.mrb[0].mxu0
  %v747 = vadd.f32 %v650, %v746
  %v748 = vpop.f32.mrb[0].mxu0
  %v749 = vpop.f32.mrb[0].mxu0
  %v750 = vadd.f32 %v653, %v749
  %v751 = vpop.f32.mrb[0].mxu0
  %752 = vmatprep.mubr.bf16.mxu0 %v298
  %753 = vmatmul.mubr.bf16.gmra.mrb[0].mxu0 %v297
  %v754 = vpop.f32.mrb[0].mxu0
  %v755 = vadd.f32 %v658, %v754
  %v756 = vpop.f32.mrb[0].mxu0
  %v757 = vpop.f32.mrb[0].mxu0
  %v758 = vadd.f32 %v661, %v757
  %v759 = vpop.f32.mrb[0].mxu0
  %760 = vmatprep.mubr.bf16.mxu0 %v303
  %761 = vmatmul.mubr.bf16.gmra.mrb[0].mxu0 %v302
  %v762 = vpop.f32.mrb[0].mxu0
  %v763 = vadd.f32 %v666, %v762
  %v764 = vpop.f32.mrb[0].mxu0
  %v765 = vpop.f32.mrb[0].mxu0
  %v766 = vadd.f32 %v669, %v765
  %v767 = vpop.f32.mrb[0].mxu0
  %768 = vmatprep.mubr.bf16.mxu0 %v308
  %769 = vmatmul.mubr.bf16.gmra.mrb[0].mxu0 %v307
  %v770 = vpop.f32.mrb[0].mxu0
  %v771 = vadd.f32 %v674, %v770
  %v772 = vpop.f32.mrb[0].mxu0
  %v773 = vpop.f32.mrb[0].mxu0
  %v774 = vadd.f32 %v677, %v773
  %v775 = vpop.f32.mrb[0].mxu0
  %776 = vdwg.mxu0
  %777 = vmatprep.subr.bf16.mxu0 0
  %778 = vmatpush1.bf16.msra.mxu0 %v518
  %779 = vmatprep.subr.bf16.mxu0 0
  %780 = vmatpush1.bf16.msra.mxu0 %v519
  %781 = vmatprep.subr.bf16.mxu0 0
  %782 = vmatpush1.bf16.msra.mxu0 %v520
  %783 = vmatprep.subr.bf16.mxu0 0
  %784 = vmatpush1.bf16.msra.mxu0 %v521
  %785 = vmatprep.subr.bf16.mxu0 0
  %786 = vmatpush1.bf16.msra.mxu0 0
  %787 = vmatprep.subr.bf16.mxu0 0
  %788 = vmatpush1.bf16.msra.mxu0 0
  %789 = vmatprep.subr.bf16.mxu0 0
  %790 = vmatpush1.bf16.msra.mxu0 0
  %791 = vmatprep.subr.bf16.mxu0 0
  %792 = vmatpush1.bf16.msra.mxu0 0
  %793 = vmatprep.subr.bf16.mxu0 0
  %794 = vmatpush1.bf16.msra.mxu0 0
  %795 = vmatprep.subr.bf16.mxu0 0
  %796 = vmatpush1.bf16.msra.mxu0 0
  %797 = vmatprep.subr.bf16.mxu0 0
  %798 = vmatpush1.bf16.msra.mxu0 0
  %799 = vmatprep.subr.bf16.mxu0 0
  %800 = vmatpush1.bf16.msra.mxu0 0
  %801 = vmatprep.subr.bf16.mxu0 0
  %802 = vmatpush1.bf16.msra.mxu0 0
  %803 = vmatprep.subr.bf16.mxu0 0
  %804 = vmatpush1.bf16.msra.mxu0 0
  %805 = vmatprep.subr.bf16.mxu0 0
  %806 = vmatpush1.bf16.msra.mxu0 0
  %807 = vmatprep.subr.bf16.mxu0 0
  %808 = vmatpush1.bf16.msra.mxu0 0
  %809 = vmatprep.mubr.bf16.mxu0 0
  %810 = vmatmul.mubr.bf16.gmra.mrb[0].mxu0 %v560
  %v811 = vpop.f32.mrb[0].mxu0
  %v812 = vadd.f32 %v715, %v811
  %v813 = vpop.f32.mrb[0].mxu0
  %v814 = vpop.f32.mrb[0].mxu0
  %v815 = vadd.f32 %v718, %v814
  %v816 = vpop.f32.mrb[0].mxu0
  %817 = vmatprep.mubr.bf16.mxu0 0
  %818 = vmatmul.mubr.bf16.gmra.mrb[0].mxu0 %v563
  %v819 = vpop.f32.mrb[0].mxu0
  %v820 = vadd.f32 %v723, %v819
  %v821 = vpop.f32.mrb[0].mxu0
  %v822 = vpop.f32.mrb[0].mxu0
  %v823 = vadd.f32 %v726, %v822
  %v824 = vpop.f32.mrb[0].mxu0
  %825 = vmatprep.mubr.bf16.mxu0 0
  %826 = vmatmul.mubr.bf16.gmra.mrb[0].mxu0 %v566
  %v827 = vpop.f32.mrb[0].mxu0
  %v828 = vadd.f32 %v731, %v827
  %v829 = vpop.f32.mrb[0].mxu0
  %v830 = vpop.f32.mrb[0].mxu0
  %v831 = vadd.f32 %v734, %v830
  %v832 = vpop.f32.mrb[0].mxu0
  %833 = vmatprep.mubr.bf16.mxu0 0
  %834 = vmatmul.mubr.bf16.gmra.mrb[0].mxu0 %v569
  %v835 = vpop.f32.mrb[0].mxu0
  %v836 = vadd.f32 %v739, %v835
  %v837 = vpop.f32.mrb[0].mxu0
  %v838 = vpop.f32.mrb[0].mxu0
  %v839 = vadd.f32 %v742, %v838
  %v840 = vpop.f32.mrb[0].mxu0
  %841 = vmatprep.mubr.bf16.mxu0 0
  %842 = vmatmul.mubr.bf16.gmra.mrb[0].mxu0 %v572
  %v843 = vpop.f32.mrb[0].mxu0
  %v844 = vadd.f32 %v747, %v843
  %v845 = vpop.f32.mrb[0].mxu0
  %v846 = vpop.f32.mrb[0].mxu0
  %v847 = vadd.f32 %v750, %v846
  %v848 = vpop.f32.mrb[0].mxu0
  %849 = vmatprep.mubr.bf16.mxu0 0
  %850 = vmatmul.mubr.bf16.gmra.mrb[0].mxu0 %v575
  %v851 = vpop.f32.mrb[0].mxu0
  %v852 = vadd.f32 %v755, %v851
  %v853 = vpop.f32.mrb[0].mxu0
  %v854 = vpop.f32.mrb[0].mxu0
  %v855 = vadd.f32 %v758, %v854
  %v856 = vpop.f32.mrb[0].mxu0
  %857 = vmatprep.mubr.bf16.mxu0 0
  %858 = vmatmul.mubr.bf16.gmra.mrb[0].mxu0 %v578
  %v859 = vpop.f32.mrb[0].mxu0
  %v860 = vadd.f32 %v763, %v859
  %v861 = vpop.f32.mrb[0].mxu0
  %v862 = vpop.f32.mrb[0].mxu0
  %v863 = vadd.f32 %v766, %v862
  %v864 = vpop.f32.mrb[0].mxu0
  %865 = vmatprep.mubr.bf16.mxu0 0
  %866 = vmatmul.mubr.bf16.gmra.mrb[0].mxu0 %v581
  %v867 = vpop.f32.mrb[0].mxu0
  %v868 = vadd.f32 %v771, %v867
  %v869 = vpop.f32.mrb[0].mxu0
  %v870 = vpop.f32.mrb[0].mxu0
  %v871 = vadd.f32 %v774, %v870
  %v872 = vpop.f32.mrb[0].mxu0
  %873 = vdwg.mxu0
  %vm874 = vcmp.ge.f32.partialorder %v812, 0.0
  %vm875 = vcmp.ge.f32.partialorder %v815, 0.0
  %vm876 = vcmp.ge.f32.partialorder %v820, 0.0
  %vm877 = vcmp.ge.f32.partialorder %v823, 0.0
  %vm878 = vcmp.ge.f32.partialorder %v828, 0.0
  %vm879 = vcmp.ge.f32.partialorder %v831, 0.0
  %vm880 = vcmp.ge.f32.partialorder %v836, 0.0
  %vm881 = vcmp.ge.f32.partialorder %v839, 0.0
  %vm882 = vcmp.ge.f32.partialorder %v844, 0.0
  %vm883 = vcmp.ge.f32.partialorder %v847, 0.0
  %vm884 = vcmp.ge.f32.partialorder %v852, 0.0
  %vm885 = vcmp.ge.f32.partialorder %v855, 0.0
  %vm886 = vcmp.ge.f32.partialorder %v860, 0.0
  %vm887 = vcmp.ge.f32.partialorder %v863, 0.0
  %vm888 = vcmp.ge.f32.partialorder %v868, 0.0
  %vm889 = vcmp.ge.f32.partialorder %v871, 0.0
  %v890 = vmul.f32 %v812, 0.2
  %v891 = vmul.f32 %v815, 0.2
  %v892 = vmul.f32 %v820, 0.2
  %v893 = vmul.f32 %v823, 0.2
  %v894 = vmul.f32 %v828, 0.2
  %v895 = vmul.f32 %v831, 0.2
  %v896 = vmul.f32 %v836, 0.2
  %v897 = vmul.f32 %v839, 0.2
  %v898 = vmul.f32 %v844, 0.2
  %v899 = vmul.f32 %v847, 0.2
  %v900 = vmul.f32 %v852, 0.2
  %v901 = vmul.f32 %v855, 0.2
  %v902 = vmul.f32 %v860, 0.2
  %v903 = vmul.f32 %v863, 0.2
  %v904 = vmul.f32 %v868, 0.2
  %v905 = vmul.f32 %v871, 0.2
  %v906 = vsel %vm874, %v812, %v890
  %v907 = vsel %vm875, %v815, %v891
  %v908 = vsel %vm876, %v820, %v892
  %v909 = vsel %vm877, %v823, %v893
  %v910 = vsel %vm878, %v828, %v894
  %v911 = vsel %vm879, %v831, %v895
  %v912 = vsel %vm880, %v836, %v896
  %v913 = vsel %vm881, %v839, %v897
  %v914 = vsel %vm882, %v844, %v898
  %v915 = vsel %vm883, %v847, %v899
  %v916 = vsel %vm884, %v852, %v900
  %v917 = vsel %vm885, %v855, %v901
  %v918 = vsel %vm886, %v860, %v902
  %v919 = vsel %vm887, %v863, %v903
  %v920 = vsel %vm888, %v868, %v904
  %v921 = vsel %vm889, %v871, %v905
  %v922 = vpack.c.bf16 %v907, %v906
  %v923 = vpack.c.bf16 %v909, %v908
  %v924 = vpack.c.bf16 %v911, %v910
  %v925 = vpack.c.bf16 %v913, %v912
  %v926 = vpack.c.bf16 %v915, %v914
  %v927 = vpack.c.bf16 %v917, %v916
  %v928 = vpack.c.bf16 %v919, %v918
  %v929 = vpack.c.bf16 %v921, %v920
  %v938 = vunpack.c.l.b16 %v922
  %v939 = vunpack.c.h.b16 %v922
  %v940 = vunpack.c.l.b16 %v923
  %v941 = vunpack.c.h.b16 %v923
  %v942 = vunpack.c.l.b16 %v924
  %v943 = vunpack.c.h.b16 %v924
  %v944 = vunpack.c.l.b16 %v925
  %v945 = vunpack.c.h.b16 %v925
  %v946 = vunpack.c.l.b16 %v926
  %v947 = vunpack.c.h.b16 %v926
  %v948 = vunpack.c.l.b16 %v927
  %v949 = vunpack.c.h.b16 %v927
  %v950 = vunpack.c.l.b16 %v928
  %v951 = vunpack.c.h.b16 %v928
  %v952 = vunpack.c.l.b16 %v929
  %v953 = vunpack.c.h.b16 %v929
  %v954 = vpack.c.b16 %v938, %v938
  %v955 = vpack.c.b16 %v939, %v939
  %v956 = vpack.c.b16 %v940, %v940
  %v957 = vpack.c.b16 %v941, %v941
  %v958 = vpack.c.b16 %v942, %v942
  %v959 = vpack.c.b16 %v943, %v943
  %v960 = vpack.c.b16 %v944, %v944
  %v961 = vpack.c.b16 %v945, %v945
  %v962 = vpack.c.b16 %v946, %v946
  %v963 = vpack.c.b16 %v947, %v947
  %v964 = vpack.c.b16 %v948, %v948
  %v965 = vpack.c.b16 %v949, %v949
  %v966 = vpack.c.b16 %v950, %v950
  %v967 = vpack.c.b16 %v951, %v951
  %v968 = vpack.c.b16 %v952, %v952
  %v969 = vpack.c.b16 %v953, %v953
  %986 = vst [vmem:[%s3] sm:$0xf] %v954
  %987 = vst [vmem:[%s3 + $0x4] sm:$0xf] %v955
  %988 = vst [vmem:[%s3 + $0x8] sm:$0xf] %v956
  %989 = vst [vmem:[%s3 + $0xc] sm:$0xf] %v957
  %990 = vst [vmem:[%s3 + $0x10] sm:$0xf] %v958
  %991 = vst [vmem:[%s3 + $0x14] sm:$0xf] %v959
  %992 = vst [vmem:[%s3 + $0x18] sm:$0xf] %v960
  %993 = vst [vmem:[%s3 + $0x1c] sm:$0xf] %v961
  %994 = vst [vmem:[%s3 + $0x20] sm:$0xf] %v962
  %995 = vst [vmem:[%s3 + $0x24] sm:$0xf] %v963
  %996 = vst [vmem:[%s3 + $0x28] sm:$0xf] %v964
  %997 = vst [vmem:[%s3 + $0x2c] sm:$0xf] %v965
  %998 = vst [vmem:[%s3 + $0x30] sm:$0xf] %v966
  %999 = vst [vmem:[%s3 + $0x34] sm:$0xf] %v967
  %1000 = vst [vmem:[%s3 + $0x38] sm:$0xf] %v968
  %1001 = vst [vmem:[%s3 + $0x3c] sm:$0xf] %v969
  // Predicated region
  $region14: #{discriminator_forward.6} parent=0 // pred_check
    _
  $region15: #{discriminator_forward.6} parent=0 // pred_check_branch
    %1003 = sbr.rel (0) target = $region17
  $region16: #{discriminator_forward.6} parent=0 // pred_region
    _
  $region17: #{discriminator_forward.6} parent=0 // pred_fallthru
    _
  // Predicated region
  $region18: #{discriminator_forward.6} parent=0 // pred_check
    _
  $region19: #{discriminator_forward.6} parent=0 // pred_check_branch
    %1005 = sbr.rel (0) target = $region21
  $region20: #{discriminator_forward.6} parent=0 // pred_region
    _
  $region21: #{discriminator_forward.6} parent=0 // pred_fallthru
    _

// kernel: discriminator_forward.7
$region0: #{discriminator_forward.7}
  #allocation0 [shape = 'u32[]', space=smem, size = 0x4, offset = 0x4, fixed_abs, tag = 'smem constant byte address 0x4 - core index']
  #allocation1 [shape = 'u32[144,128]{1,0:T(1,128)}', space=vmem, size = 0x12000, scoped, tag = 'internal scratch']
  #allocation2 [shape = 'f32[1,1]{1,0:T(1,128)S(1)}', space=vmem, size = 0x200, scoped, tag = 'scoped memory for discriminator_forward.7']
  %s0 = inlined_call_operand.vmem [shape: bf16[32,1152], index: 0, kind: input, shape index: {}]
  %s1 = inlined_call_operand.vmem [shape: bf16[1152,256], index: 1, kind: input, shape index: {}]
  %s2 = inlined_call_operand.vmem [shape: f32[1,256], index: 2, kind: input, shape index: {}]
  %s3 = inlined_call_operand.vmem [shape: f32[16,256], index: 3, kind: input, shape index: {}]
  %s4 = inlined_call_operand.<no memory space> [shape: f32[1,1], index: 4, kind: input, shape index: {}]
  %s5 = inlined_call_operand.vmem [shape: f32[2,1], index: 5, kind: output, shape index: {}]
  %s6 = sld [smem:[#allocation0]]
  $region30: #{discriminator_forward.7} parent=0
    _
  %s8 = ssub.s32 1, %s6
  %s9 = scalar_select 0, %s8, %s6
  %v10 = vstv %s4
  %11 = vst [vmem:[#allocation2] sm:$0x1] %v10
  // Predicated region
  $region2: #{discriminator_forward.7} parent=0 // pred_check
    _
  $region3: #{discriminator_forward.7} parent=0 // pred_check_branch
    %13 = sbr.rel (0) target = $region5
  $region4: #{discriminator_forward.7} parent=0 // pred_region
    _
  $region5: #{discriminator_forward.7} parent=0 // pred_fallthru
    _
  // Predicated region
  $region6: #{discriminator_forward.7} parent=0 // pred_check
    _
  $region7: #{discriminator_forward.7} parent=0 // pred_check_branch
    %15 = sbr.rel (0) target = $region9
  $region8: #{discriminator_forward.7} parent=0 // pred_region
    _
  $region9: #{discriminator_forward.7} parent=0 // pred_fallthru
    _
  // Predicated region
  $region10: #{discriminator_forward.7} parent=0 // pred_check
    _
  $region11: #{discriminator_forward.7} parent=0 // pred_check_branch
    %17 = sbr.rel (0) target = $region13
  $region12: #{discriminator_forward.7} parent=0 // pred_region
    _
  $region13: #{discriminator_forward.7} parent=0 // pred_fallthru
    _
  // Predicated region
  $region14: #{discriminator_forward.7} parent=0 // pred_check
    _
  $region15: #{discriminator_forward.7} parent=0 // pred_check_branch
    %19 = sbr.rel (0) target = $region17
  $region16: #{discriminator_forward.7} parent=0 // pred_region
    _
  $region17: #{discriminator_forward.7} parent=0 // pred_fallthru
    _
  // Predicated region
  $region18: #{discriminator_forward.7} parent=0 // pred_check
    _
  $region19: #{discriminator_forward.7} parent=0 // pred_check_branch
    %21 = sbr.rel (0) target = $region21
  $region20: #{discriminator_forward.7} parent=0 // pred_region
    _
  $region21: #{discriminator_forward.7} parent=0 // pred_fallthru
    _
  %v23 = vld [vmem:[%s0] sm:$0xff]
  %v24 = vld [vmem:[%s0 + $0x8] sm:$0xff]
  %v25 = vld [vmem:[%s0 + $0x10] sm:$0xff]
  %v26 = vld [vmem:[%s0 + $0x18] sm:$0xff]
  %v27 = vld [vmem:[%s0 + $0x20] sm:$0xf]
  %v28 = vld [vmem:[%s0 + $0x24] sm:$0xff]
  %v29 = vld [vmem:[%s0 + $0x2c] sm:$0xff]
  %v30 = vld [vmem:[%s0 + $0x34] sm:$0xff]
  %v31 = vld [vmem:[%s0 + $0x3c] sm:$0xff]
  %v32 = vld [vmem:[%s0 + $0x44] sm:$0xf]
  %v33 = vld [vmem:[%s0 + $0x48] sm:$0xff]
  %v34 = vld [vmem:[%s0 + $0x50] sm:$0xff]
  %v35 = vld [vmem:[%s0 + $0x58] sm:$0xff]
  %v36 = vld [vmem:[%s0 + $0x60] sm:$0xff]
  %v37 = vld [vmem:[%s0 + $0x68] sm:$0xf]
  %v38 = vld [vmem:[%s0 + $0x6c] sm:$0xff]
  %v39 = vld [vmem:[%s0 + $0x74] sm:$0xff]
  %v40 = vld [vmem:[%s0 + $0x7c] sm:$0xff]
  %v41 = vld [vmem:[%s0 + $0x84] sm:$0xff]
  %v42 = vld [vmem:[%s0 + $0x8c] sm:$0xf]
  %v43 = vld [vmem:[%s1] sm:$0xff]
  %v44 = vld [vmem:[%s1 + $0x8] sm:$0xff]
  %v45 = vld [vmem:[%s1 + $0x10] sm:$0xff]
  %v46 = vld [vmem:[%s1 + $0x18] sm:$0xff]
  %v47 = vld [vmem:[%s1 + $0x20] sm:$0xff]
  %v48 = vld [vmem:[%s1 + $0x28] sm:$0xff]
  %v49 = vld [vmem:[%s1 + $0x30] sm:$0xff]
  %v50 = vld [vmem:[%s1 + $0x38] sm:$0xff]
  %v51 = vld [vmem:[%s1 + $0x40] sm:$0xff]
  %v52 = vld [vmem:[%s1 + $0x48] sm:$0xff]
  %v53 = vld [vmem:[%s1 + $0x50] sm:$0xff]
  %v54 = vld [vmem:[%s1 + $0x58] sm:$0xff]
  %v55 = vld [vmem:[%s1 + $0x60] sm:$0xff]
  %v56 = vld [vmem:[%s1 + $0x68] sm:$0xff]
  %v57 = vld [vmem:[%s1 + $0x70] sm:$0xff]
  %v58 = vld [vmem:[%s1 + $0x78] sm:$0xff]
  %v59 = vld [vmem:[%s1 + $0x80] sm:$0xff]
  %v60 = vld [vmem:[%s1 + $0x88] sm:$0xff]
  %v61 = vld [vmem:[%s1 + $0x90] sm:$0xff]
  %v62 = vld [vmem:[%s1 + $0x98] sm:$0xff]
  %v63 = vld [vmem:[%s1 + $0xa0] sm:$0xff]
  %v64 = vld [vmem:[%s1 + $0xa8] sm:$0xff]
  %v65 = vld [vmem:[%s1 + $0xb0] sm:$0xff]
  %v66 = vld [vmem:[%s1 + $0xb8] sm:$0xff]
  %v67 = vld [vmem:[%s1 + $0xc0] sm:$0xff]
  %v68 = vld [vmem:[%s1 + $0xc8] sm:$0xff]
  %v69 = vld [vmem:[%s1 + $0xd0] sm:$0xff]
  %v70 = vld [vmem:[%s1 + $0xd8] sm:$0xff]
  %v71 = vld [vmem:[%s1 + $0xe0] sm:$0xff]
  %v72 = vld [vmem:[%s1 + $0xe8] sm:$0xff]
  %v73 = vld [vmem:[%s1 + $0xf0] sm:$0xff]
  %v74 = vld [vmem:[%s1 + $0xf8] sm:$0xff]
  %v75 = vld [vmem:[%s1 + $0x100] sm:$0xff]
  %v76 = vld [vmem:[%s1 + $0x108] sm:$0xff]
  %v77 = vld [vmem:[%s1 + $0x110] sm:$0xff]
  %v78 = vld [vmem:[%s1 + $0x118] sm:$0xff]
  %v79 = vld [vmem:[%s1 + $0x120] sm:$0xff]
  %v80 = vld [vmem:[%s1 + $0x128] sm:$0xff]
  %v81 = vld [vmem:[%s1 + $0x130] sm:$0xff]
  %v82 = vld [vmem:[%s1 + $0x138] sm:$0xff]
  %v83 = vld [vmem:[%s1 + $0x140] sm:$0xff]
  %v84 = vld [vmem:[%s1 + $0x148] sm:$0xff]
  %v85 = vld [vmem:[%s1 + $0x150] sm:$0xff]
  %v86 = vld [vmem:[%s1 + $0x158] sm:$0xff]
  %v87 = vld [vmem:[%s1 + $0x160] sm:$0xff]
  %v88 = vld [vmem:[%s1 + $0x168] sm:$0xff]
  %v89 = vld [vmem:[%s1 + $0x170] sm:$0xff]
  %v90 = vld [vmem:[%s1 + $0x178] sm:$0xff]
  %v91 = vld [vmem:[%s1 + $0x180] sm:$0xff]
  %v92 = vld [vmem:[%s1 + $0x188] sm:$0xff]
  %v93 = vld [vmem:[%s1 + $0x190] sm:$0xff]
  %v94 = vld [vmem:[%s1 + $0x198] sm:$0xff]
  %v95 = vld [vmem:[%s1 + $0x1a0] sm:$0xff]
  %v96 = vld [vmem:[%s1 + $0x1a8] sm:$0xff]
  %v97 = vld [vmem:[%s1 + $0x1b0] sm:$0xff]
  %v98 = vld [vmem:[%s1 + $0x1b8] sm:$0xff]
  %v99 = vld [vmem:[%s1 + $0x1c0] sm:$0xff]
  %v100 = vld [vmem:[%s1 + $0x1c8] sm:$0xff]
  %v101 = vld [vmem:[%s1 + $0x1d0] sm:$0xff]
  %v102 = vld [vmem:[%s1 + $0x1d8] sm:$0xff]
  %v103 = vld [vmem:[%s1 + $0x1e0] sm:$0xff]
  %v104 = vld [vmem:[%s1 + $0x1e8] sm:$0xff]
  %v105 = vld [vmem:[%s1 + $0x1f0] sm:$0xff]
  %v106 = vld [vmem:[%s1 + $0x1f8] sm:$0xff]
  %v107 = vld [vmem:[%s1 + $0x200] sm:$0xff]
  %v108 = vld [vmem:[%s1 + $0x208] sm:$0xff]
  %v109 = vld [vmem:[%s1 + $0x210] sm:$0xff]
  %v110 = vld [vmem:[%s1 + $0x218] sm:$0xff]
  %v111 = vld [vmem:[%s1 + $0x220] sm:$0xff]
  %v112 = vld [vmem:[%s1 + $0x228] sm:$0xff]
  %v113 = vld [vmem:[%s1 + $0x230] sm:$0xff]
  %v114 = vld [vmem:[%s1 + $0x238] sm:$0xff]
  %v115 = vld [vmem:[%s1 + $0x240] sm:$0xff]
  %v116 = vld [vmem:[%s1 + $0x248] sm:$0xff]
  %v117 = vld [vmem:[%s1 + $0x250] sm:$0xff]
  %v118 = vld [vmem:[%s1 + $0x258] sm:$0xff]
  %v119 = vld [vmem:[%s1 + $0x260] sm:$0xff]
  %v120 = vld [vmem:[%s1 + $0x268] sm:$0xff]
  %v121 = vld [vmem:[%s1 + $0x270] sm:$0xff]
  %v122 = vld [vmem:[%s1 + $0x278] sm:$0xff]
  %v123 = vld [vmem:[%s1 + $0x280] sm:$0xff]
  %v124 = vld [vmem:[%s1 + $0x288] sm:$0xff]
  %v125 = vld [vmem:[%s1 + $0x290] sm:$0xff]
  %v126 = vld [vmem:[%s1 + $0x298] sm:$0xff]
  %v127 = vld [vmem:[%s1 + $0x2a0] sm:$0xff]
  %v128 = vld [vmem:[%s1 + $0x2a8] sm:$0xff]
  %v129 = vld [vmem:[%s1 + $0x2b0] sm:$0xff]
  %v130 = vld [vmem:[%s1 + $0x2b8] sm:$0xff]
  %v131 = vld [vmem:[%s1 + $0x2c0] sm:$0xff]
  %v132 = vld [vmem:[%s1 + $0x2c8] sm:$0xff]
  %v133 = vld [vmem:[%s1 + $0x2d0] sm:$0xff]
  %v134 = vld [vmem:[%s1 + $0x2d8] sm:$0xff]
  %v135 = vld [vmem:[%s1 + $0x2e0] sm:$0xff]
  %v136 = vld [vmem:[%s1 + $0x2e8] sm:$0xff]
  %v137 = vld [vmem:[%s1 + $0x2f0] sm:$0xff]
  %v138 = vld [vmem:[%s1 + $0x2f8] sm:$0xff]
  %v139 = vld [vmem:[%s1 + $0x300] sm:$0xff]
  %v140 = vld [vmem:[%s1 + $0x308] sm:$0xff]
  %v141 = vld [vmem:[%s1 + $0x310] sm:$0xff]
  %v142 = vld [vmem:[%s1 + $0x318] sm:$0xff]
  %v143 = vld [vmem:[%s1 + $0x320] sm:$0xff]
  %v144 = vld [vmem:[%s1 + $0x328] sm:$0xff]
  %v145 = vld [vmem:[%s1 + $0x330] sm:$0xff]
  %v146 = vld [vmem:[%s1 + $0x338] sm:$0xff]
  %v147 = vld [vmem:[%s1 + $0x340] sm:$0xff]
  %v148 = vld [vmem:[%s1 + $0x348] sm:$0xff]
  %v149 = vld [vmem:[%s1 + $0x350] sm:$0xff]
  %v150 = vld [vmem:[%s1 + $0x358] sm:$0xff]
  %v151 = vld [vmem:[%s1 + $0x360] sm:$0xff]
  %v152 = vld [vmem:[%s1 + $0x368] sm:$0xff]
  %v153 = vld [vmem:[%s1 + $0x370] sm:$0xff]
  %v154 = vld [vmem:[%s1 + $0x378] sm:$0xff]
  %v155 = vld [vmem:[%s1 + $0x380] sm:$0xff]
  %v156 = vld [vmem:[%s1 + $0x388] sm:$0xff]
  %v157 = vld [vmem:[%s1 + $0x390] sm:$0xff]
  %v158 = vld [vmem:[%s1 + $0x398] sm:$0xff]
  %v159 = vld [vmem:[%s1 + $0x3a0] sm:$0xff]
  %v160 = vld [vmem:[%s1 + $0x3a8] sm:$0xff]
  %v161 = vld [vmem:[%s1 + $0x3b0] sm:$0xff]
  %v162 = vld [vmem:[%s1 + $0x3b8] sm:$0xff]
  %v163 = vld [vmem:[%s1 + $0x3c0] sm:$0xff]
  %v164 = vld [vmem:[%s1 + $0x3c8] sm:$0xff]
  %v165 = vld [vmem:[%s1 + $0x3d0] sm:$0xff]
  %v166 = vld [vmem:[%s1 + $0x3d8] sm:$0xff]
  %v167 = vld [vmem:[%s1 + $0x3e0] sm:$0xff]
  %v168 = vld [vmem:[%s1 + $0x3e8] sm:$0xff]
  %v169 = vld [vmem:[%s1 + $0x3f0] sm:$0xff]
  %v170 = vld [vmem:[%s1 + $0x3f8] sm:$0xff]
  %v171 = vld [vmem:[%s1 + $0x400] sm:$0xff]
  %v172 = vld [vmem:[%s1 + $0x408] sm:$0xff]
  %v173 = vld [vmem:[%s1 + $0x410] sm:$0xff]
  %v174 = vld [vmem:[%s1 + $0x418] sm:$0xff]
  %v175 = vld [vmem:[%s1 + $0x420] sm:$0xff]
  %v176 = vld [vmem:[%s1 + $0x428] sm:$0xff]
  %v177 = vld [vmem:[%s1 + $0x430] sm:$0xff]
  %v178 = vld [vmem:[%s1 + $0x438] sm:$0xff]
  %v179 = vld [vmem:[%s1 + $0x440] sm:$0xff]
  %v180 = vld [vmem:[%s1 + $0x448] sm:$0xff]
  %v181 = vld [vmem:[%s1 + $0x450] sm:$0xff]
  %v182 = vld [vmem:[%s1 + $0x458] sm:$0xff]
  %v183 = vld [vmem:[%s1 + $0x460] sm:$0xff]
  %v184 = vld [vmem:[%s1 + $0x468] sm:$0xff]
  %v185 = vld [vmem:[%s1 + $0x470] sm:$0xff]
  %v186 = vld [vmem:[%s1 + $0x478] sm:$0xff]
  %v187 = vld [vmem:[%s2] sm:$0x3]
  %v189 = vlaneseq
  %v190 = vshrl.u32 %v189, 7
  %v191 = vsub.s32 0, %v190
  %v192 = vrot.slane %v187, %v191
  %v193 = vlaneseq
  %v194 = vshrl.u32 %v193, 7
  %v195 = vsub.s32 1, %v194
  %v196 = vrot.slane %v187, %v195
  %v219 = vunpack.c.l.b16 %v23
  %v220 = vunpack.c.h.b16 %v23
  %v221 = vunpack.c.l.b16 %v24
  %v222 = vunpack.c.h.b16 %v24
  %v223 = vunpack.c.l.b16 %v25
  %v224 = vunpack.c.h.b16 %v25
  %v225 = vunpack.c.l.b16 %v26
  %v226 = vunpack.c.h.b16 %v26
  %v227 = vunpack.c.l.b16 %v27
  %v228 = vunpack.c.l.b16 %v28
  %v229 = vunpack.c.h.b16 %v28
  %v230 = vunpack.c.l.b16 %v29
  %v231 = vunpack.c.h.b16 %v29
  %v232 = vunpack.c.l.b16 %v30
  %v233 = vunpack.c.h.b16 %v30
  %v234 = vunpack.c.l.b16 %v31
  %v235 = vunpack.c.h.b16 %v31
  %v236 = vunpack.c.l.b16 %v32
  %v237 = vunpack.c.l.b16 %v33
  %v238 = vunpack.c.h.b16 %v33
  %v239 = vunpack.c.l.b16 %v34
  %v240 = vunpack.c.h.b16 %v34
  %v241 = vunpack.c.l.b16 %v35
  %v242 = vunpack.c.h.b16 %v35
  %v243 = vunpack.c.l.b16 %v36
  %v244 = vunpack.c.h.b16 %v36
  %v245 = vunpack.c.l.b16 %v37
  %v246 = vunpack.c.l.b16 %v38
  %v247 = vunpack.c.h.b16 %v38
  %v248 = vunpack.c.l.b16 %v39
  %v249 = vunpack.c.h.b16 %v39
  %v250 = vunpack.c.l.b16 %v40
  %v251 = vunpack.c.h.b16 %v40
  %v252 = vunpack.c.l.b16 %v41
  %v253 = vunpack.c.h.b16 %v41
  %v254 = vunpack.c.l.b16 %v42
  %v255 = vpack.c.b16 %v228, %v219
  %v256 = vpack.c.b16 %v229, %v220
  %v257 = vpack.c.b16 %v230, %v221
  %v258 = vpack.c.b16 %v231, %v222
  %v259 = vpack.c.b16 %v232, %v223
  %v260 = vpack.c.b16 %v233, %v224
  %v261 = vpack.c.b16 %v234, %v225
  %v262 = vpack.c.b16 %v235, %v226
  %v263 = vpack.c.b16 %v236, %v227
  %v264 = vpack.c.b16 %v246, %v237
  %v265 = vpack.c.b16 %v247, %v238
  %v266 = vpack.c.b16 %v248, %v239
  %v267 = vpack.c.b16 %v249, %v240
  %v268 = vpack.c.b16 %v250, %v241
  %v269 = vpack.c.b16 %v251, %v242
  %v270 = vpack.c.b16 %v252, %v243
  %v271 = vpack.c.b16 %v253, %v244
  %v272 = vpack.c.b16 %v254, %v245
  %v435 = vunpack.c.l.b16 %v43
  %v436 = vunpack.c.h.b16 %v43
  %v437 = vunpack.c.l.b16 %v44
  %v438 = vunpack.c.h.b16 %v44
  %v439 = vunpack.c.l.b16 %v45
  %v440 = vunpack.c.h.b16 %v45
  %v441 = vunpack.c.l.b16 %v46
  %v442 = vunpack.c.h.b16 %v46
  %v443 = vunpack.c.l.b16 %v47
  %v444 = vunpack.c.h.b16 %v47
  %v445 = vunpack.c.l.b16 %v48
  %v446 = vunpack.c.h.b16 %v48
  %v447 = vunpack.c.l.b16 %v49
  %v448 = vunpack.c.h.b16 %v49
  %v449 = vunpack.c.l.b16 %v50
  %v450 = vunpack.c.h.b16 %v50
  %v451 = vunpack.c.l.b16 %v51
  %v452 = vunpack.c.h.b16 %v51
  %v453 = vunpack.c.l.b16 %v52
  %v454 = vunpack.c.h.b16 %v52
  %v455 = vunpack.c.l.b16 %v53
  %v456 = vunpack.c.h.b16 %v53
  %v457 = vunpack.c.l.b16 %v54
  %v458 = vunpack.c.h.b16 %v54
  %v459 = vunpack.c.l.b16 %v55
  %v460 = vunpack.c.h.b16 %v55
  %v461 = vunpack.c.l.b16 %v56
  %v462 = vunpack.c.h.b16 %v56
  %v463 = vunpack.c.l.b16 %v57
  %v464 = vunpack.c.h.b16 %v57
  %v465 = vunpack.c.l.b16 %v58
  %v466 = vunpack.c.h.b16 %v58
  %v467 = vunpack.c.l.b16 %v59
  %v468 = vunpack.c.h.b16 %v59
  %v469 = vunpack.c.l.b16 %v60
  %v470 = vunpack.c.h.b16 %v60
  %v471 = vunpack.c.l.b16 %v61
  %v472 = vunpack.c.h.b16 %v61
  %v473 = vunpack.c.l.b16 %v62
  %v474 = vunpack.c.h.b16 %v62
  %v475 = vunpack.c.l.b16 %v63
  %v476 = vunpack.c.h.b16 %v63
  %v477 = vunpack.c.l.b16 %v64
  %v478 = vunpack.c.h.b16 %v64
  %v479 = vunpack.c.l.b16 %v65
  %v480 = vunpack.c.h.b16 %v65
  %v481 = vunpack.c.l.b16 %v66
  %v482 = vunpack.c.h.b16 %v66
  %v483 = vunpack.c.l.b16 %v67
  %v484 = vunpack.c.h.b16 %v67
  %v485 = vunpack.c.l.b16 %v68
  %v486 = vunpack.c.h.b16 %v68
  %v487 = vunpack.c.l.b16 %v69
  %v488 = vunpack.c.h.b16 %v69
  %v489 = vunpack.c.l.b16 %v70
  %v490 = vunpack.c.h.b16 %v70
  %v491 = vunpack.c.l.b16 %v71
  %v492 = vunpack.c.h.b16 %v71
  %v493 = vunpack.c.l.b16 %v72
  %v494 = vunpack.c.h.b16 %v72
  %v495 = vunpack.c.l.b16 %v73
  %v496 = vunpack.c.h.b16 %v73
  %v497 = vunpack.c.l.b16 %v74
  %v498 = vunpack.c.h.b16 %v74
  %v499 = vunpack.c.l.b16 %v75
  %v500 = vunpack.c.h.b16 %v75
  %v501 = vunpack.c.l.b16 %v76
  %v502 = vunpack.c.h.b16 %v76
  %v503 = vunpack.c.l.b16 %v77
  %v504 = vunpack.c.h.b16 %v77
  %v505 = vunpack.c.l.b16 %v78
  %v506 = vunpack.c.h.b16 %v78
  %v507 = vunpack.c.l.b16 %v79
  %v508 = vunpack.c.h.b16 %v79
  %v509 = vunpack.c.l.b16 %v80
  %v510 = vunpack.c.h.b16 %v80
  %v511 = vunpack.c.l.b16 %v81
  %v512 = vunpack.c.h.b16 %v81
  %v513 = vunpack.c.l.b16 %v82
  %v514 = vunpack.c.h.b16 %v82
  %v515 = vunpack.c.l.b16 %v83
  %v516 = vunpack.c.h.b16 %v83
  %v517 = vunpack.c.l.b16 %v84
  %v518 = vunpack.c.h.b16 %v84
  %v519 = vunpack.c.l.b16 %v85
  %v520 = vunpack.c.h.b16 %v85
  %v521 = vunpack.c.l.b16 %v86
  %v522 = vunpack.c.h.b16 %v86
  %v523 = vunpack.c.l.b16 %v87
  %v524 = vunpack.c.h.b16 %v87
  %v525 = vunpack.c.l.b16 %v88
  %v526 = vunpack.c.h.b16 %v88
  %v527 = vunpack.c.l.b16 %v89
  %v528 = vunpack.c.h.b16 %v89
  %v529 = vunpack.c.l.b16 %v90
  %v530 = vunpack.c.h.b16 %v90
  %v531 = vunpack.c.l.b16 %v91
  %v532 = vunpack.c.h.b16 %v91
  %v533 = vunpack.c.l.b16 %v92
  %v534 = vunpack.c.h.b16 %v92
  %v535 = vunpack.c.l.b16 %v93
  %v536 = vunpack.c.h.b16 %v93
  %v537 = vunpack.c.l.b16 %v94
  %v538 = vunpack.c.h.b16 %v94
  %v539 = vunpack.c.l.b16 %v95
  %v540 = vunpack.c.h.b16 %v95
  %v541 = vunpack.c.l.b16 %v96
  %v542 = vunpack.c.h.b16 %v96
  %v543 = vunpack.c.l.b16 %v97
  %v544 = vunpack.c.h.b16 %v97
  %v545 = vunpack.c.l.b16 %v98
  %v546 = vunpack.c.h.b16 %v98
  %v547 = vunpack.c.l.b16 %v99
  %v548 = vunpack.c.h.b16 %v99
  %v549 = vunpack.c.l.b16 %v100
  %v550 = vunpack.c.h.b16 %v100
  %v551 = vunpack.c.l.b16 %v101
  %v552 = vunpack.c.h.b16 %v101
  %v553 = vunpack.c.l.b16 %v102
  %v554 = vunpack.c.h.b16 %v102
  %v555 = vunpack.c.l.b16 %v103
  %v556 = vunpack.c.h.b16 %v103
  %v557 = vunpack.c.l.b16 %v104
  %v558 = vunpack.c.h.b16 %v104
  %v559 = vunpack.c.l.b16 %v105
  %v560 = vunpack.c.h.b16 %v105
  %v561 = vunpack.c.l.b16 %v106
  %v562 = vunpack.c.h.b16 %v106
  %v563 = vunpack.c.l.b16 %v107
  %v564 = vunpack.c.h.b16 %v107
  %v565 = vunpack.c.l.b16 %v108
  %v566 = vunpack.c.h.b16 %v108
  %v567 = vunpack.c.l.b16 %v109
  %v568 = vunpack.c.h.b16 %v109
  %v569 = vunpack.c.l.b16 %v110
  %v570 = vunpack.c.h.b16 %v110
  %v571 = vunpack.c.l.b16 %v111
  %v572 = vunpack.c.h.b16 %v111
  %v573 = vunpack.c.l.b16 %v112
  %v574 = vunpack.c.h.b16 %v112
  %v575 = vunpack.c.l.b16 %v113
  %v576 = vunpack.c.h.b16 %v113
  %v577 = vunpack.c.l.b16 %v114
  %v578 = vunpack.c.h.b16 %v114
  %v579 = vunpack.c.l.b16 %v115
  %v580 = vunpack.c.h.b16 %v115
  %v581 = vunpack.c.l.b16 %v116
  %v582 = vunpack.c.h.b16 %v116
  %v583 = vunpack.c.l.b16 %v117
  %v584 = vunpack.c.h.b16 %v117
  %v585 = vunpack.c.l.b16 %v118
  %v586 = vunpack.c.h.b16 %v118
  %v587 = vunpack.c.l.b16 %v119
  %v588 = vunpack.c.h.b16 %v119
  %v589 = vunpack.c.l.b16 %v120
  %v590 = vunpack.c.h.b16 %v120
  %v591 = vunpack.c.l.b16 %v121
  %v592 = vunpack.c.h.b16 %v121
  %v593 = vunpack.c.l.b16 %v122
  %v594 = vunpack.c.h.b16 %v122
  %v595 = vunpack.c.l.b16 %v123
  %v596 = vunpack.c.h.b16 %v123
  %v597 = vunpack.c.l.b16 %v124
  %v598 = vunpack.c.h.b16 %v124
  %v599 = vunpack.c.l.b16 %v125
  %v600 = vunpack.c.h.b16 %v125
  %v601 = vunpack.c.l.b16 %v126
  %v602 = vunpack.c.h.b16 %v126
  %v603 = vunpack.c.l.b16 %v127
  %v604 = vunpack.c.h.b16 %v127
  %v605 = vunpack.c.l.b16 %v128
  %v606 = vunpack.c.h.b16 %v128
  %v607 = vunpack.c.l.b16 %v129
  %v608 = vunpack.c.h.b16 %v129
  %v609 = vunpack.c.l.b16 %v130
  %v610 = vunpack.c.h.b16 %v130
  %v611 = vunpack.c.l.b16 %v131
  %v612 = vunpack.c.h.b16 %v131
  %v613 = vunpack.c.l.b16 %v132
  %v614 = vunpack.c.h.b16 %v132
  %v615 = vunpack.c.l.b16 %v133
  %v616 = vunpack.c.h.b16 %v133
  %v617 = vunpack.c.l.b16 %v134
  %v618 = vunpack.c.h.b16 %v134
  %v619 = vunpack.c.l.b16 %v135
  %v620 = vunpack.c.h.b16 %v135
  %v621 = vunpack.c.l.b16 %v136
  %v622 = vunpack.c.h.b16 %v136
  %v623 = vunpack.c.l.b16 %v137
  %v624 = vunpack.c.h.b16 %v137
  %v625 = vunpack.c.l.b16 %v138
  %v626 = vunpack.c.h.b16 %v138
  %v627 = vunpack.c.l.b16 %v139
  %v628 = vunpack.c.h.b16 %v139
  %v629 = vunpack.c.l.b16 %v140
  %v630 = vunpack.c.h.b16 %v140
  %v631 = vunpack.c.l.b16 %v141
  %v632 = vunpack.c.h.b16 %v141
  %v633 = vunpack.c.l.b16 %v142
  %v634 = vunpack.c.h.b16 %v142
  %v635 = vunpack.c.l.b16 %v143
  %v636 = vunpack.c.h.b16 %v143
  %v637 = vunpack.c.l.b16 %v144
  %v638 = vunpack.c.h.b16 %v144
  %v639 = vunpack.c.l.b16 %v145
  %v640 = vunpack.c.h.b16 %v145
  %v641 = vunpack.c.l.b16 %v146
  %v642 = vunpack.c.h.b16 %v146
  %v643 = vunpack.c.l.b16 %v147
  %v644 = vunpack.c.h.b16 %v147
  %v645 = vunpack.c.l.b16 %v148
  %v646 = vunpack.c.h.b16 %v148
  %v647 = vunpack.c.l.b16 %v149
  %v648 = vunpack.c.h.b16 %v149
  %v649 = vunpack.c.l.b16 %v150
  %v650 = vunpack.c.h.b16 %v150
  %v651 = vunpack.c.l.b16 %v151
  %v652 = vunpack.c.h.b16 %v151
  %v653 = vunpack.c.l.b16 %v152
  %v654 = vunpack.c.h.b16 %v152
  %v655 = vunpack.c.l.b16 %v153
  %v656 = vunpack.c.h.b16 %v153
  %v657 = vunpack.c.l.b16 %v154
  %v658 = vunpack.c.h.b16 %v154
  %v659 = vunpack.c.l.b16 %v155
  %v660 = vunpack.c.h.b16 %v155
  %v661 = vunpack.c.l.b16 %v156
  %v662 = vunpack.c.h.b16 %v156
  %v663 = vunpack.c.l.b16 %v157
  %v664 = vunpack.c.h.b16 %v157
  %v665 = vunpack.c.l.b16 %v158
  %v666 = vunpack.c.h.b16 %v158
  %v667 = vunpack.c.l.b16 %v159
  %v668 = vunpack.c.h.b16 %v159
  %v669 = vunpack.c.l.b16 %v160
  %v670 = vunpack.c.h.b16 %v160
  %v671 = vunpack.c.l.b16 %v161
  %v672 = vunpack.c.h.b16 %v161
  %v673 = vunpack.c.l.b16 %v162
  %v674 = vunpack.c.h.b16 %v162
  %v675 = vunpack.c.l.b16 %v163
  %v676 = vunpack.c.h.b16 %v163
  %v677 = vunpack.c.l.b16 %v164
  %v678 = vunpack.c.h.b16 %v164
  %v679 = vunpack.c.l.b16 %v165
  %v680 = vunpack.c.h.b16 %v165
  %v681 = vunpack.c.l.b16 %v166
  %v682 = vunpack.c.h.b16 %v166
  %v683 = vunpack.c.l.b16 %v167
  %v684 = vunpack.c.h.b16 %v167
  %v685 = vunpack.c.l.b16 %v168
  %v686 = vunpack.c.h.b16 %v168
  %v687 = vunpack.c.l.b16 %v169
  %v688 = vunpack.c.h.b16 %v169
  %v689 = vunpack.c.l.b16 %v170
  %v690 = vunpack.c.h.b16 %v170
  %v691 = vunpack.c.l.b16 %v171
  %v692 = vunpack.c.h.b16 %v171
  %v693 = vunpack.c.l.b16 %v172
  %v694 = vunpack.c.h.b16 %v172
  %v695 = vunpack.c.l.b16 %v173
  %v696 = vunpack.c.h.b16 %v173
  %v697 = vunpack.c.l.b16 %v174
  %v698 = vunpack.c.h.b16 %v174
  %v699 = vunpack.c.l.b16 %v175
  %v700 = vunpack.c.h.b16 %v175
  %v701 = vunpack.c.l.b16 %v176
  %v702 = vunpack.c.h.b16 %v176
  %v703 = vunpack.c.l.b16 %v177
  %v704 = vunpack.c.h.b16 %v177
  %v705 = vunpack.c.l.b16 %v178
  %v706 = vunpack.c.h.b16 %v178
  %v707 = vunpack.c.l.b16 %v179
  %v708 = vunpack.c.h.b16 %v179
  %v709 = vunpack.c.l.b16 %v180
  %v710 = vunpack.c.h.b16 %v180
  %v711 = vunpack.c.l.b16 %v181
  %v712 = vunpack.c.h.b16 %v181
  %v713 = vunpack.c.l.b16 %v182
  %v714 = vunpack.c.h.b16 %v182
  %v715 = vunpack.c.l.b16 %v183
  %v716 = vunpack.c.h.b16 %v183
  %v717 = vunpack.c.l.b16 %v184
  %v718 = vunpack.c.h.b16 %v184
  %v719 = vunpack.c.l.b16 %v185
  %v720 = vunpack.c.h.b16 %v185
  %v721 = vunpack.c.l.b16 %v186
  %v722 = vunpack.c.h.b16 %v186
  %v723 = vpack.c.b16 %v437, %v435
  %v724 = vpack.c.b16 %v438, %v436
  %v725 = vpack.c.b16 %v441, %v439
  %v726 = vpack.c.b16 %v442, %v440
  %v727 = vpack.c.b16 %v445, %v443
  %v728 = vpack.c.b16 %v446, %v444
  %v729 = vpack.c.b16 %v449, %v447
  %v730 = vpack.c.b16 %v450, %v448
  %v731 = vpack.c.b16 %v453, %v451
  %v732 = vpack.c.b16 %v454, %v452
  %v733 = vpack.c.b16 %v457, %v455
  %v734 = vpack.c.b16 %v458, %v456
  %v735 = vpack.c.b16 %v461, %v459
  %v736 = vpack.c.b16 %v462, %v460
  %v737 = vpack.c.b16 %v465, %v463
  %v738 = vpack.c.b16 %v466, %v464
  %v739 = vpack.c.b16 %v469, %v467
  %v740 = vpack.c.b16 %v470, %v468
  %v741 = vpack.c.b16 %v473, %v471
  %v742 = vpack.c.b16 %v474, %v472
  %v743 = vpack.c.b16 %v477, %v475
  %v744 = vpack.c.b16 %v478, %v476
  %v745 = vpack.c.b16 %v481, %v479
  %v746 = vpack.c.b16 %v482, %v480
  %v747 = vpack.c.b16 %v485, %v483
  %v748 = vpack.c.b16 %v486, %v484
  %v749 = vpack.c.b16 %v489, %v487
  %v750 = vpack.c.b16 %v490, %v488
  %v751 = vpack.c.b16 %v493, %v491
  %v752 = vpack.c.b16 %v494, %v492
  %v753 = vpack.c.b16 %v497, %v495
  %v754 = vpack.c.b16 %v498, %v496
  %v755 = vpack.c.b16 %v501, %v499
  %v756 = vpack.c.b16 %v502, %v500
  %v757 = vpack.c.b16 %v505, %v503
  %v758 = vpack.c.b16 %v506, %v504
  %v759 = vpack.c.b16 %v509, %v507
  %v760 = vpack.c.b16 %v510, %v508
  %v761 = vpack.c.b16 %v513, %v511
  %v762 = vpack.c.b16 %v514, %v512
  %v763 = vpack.c.b16 %v517, %v515
  %v764 = vpack.c.b16 %v518, %v516
  %v765 = vpack.c.b16 %v521, %v519
  %v766 = vpack.c.b16 %v522, %v520
  %v767 = vpack.c.b16 %v525, %v523
  %v768 = vpack.c.b16 %v526, %v524
  %v769 = vpack.c.b16 %v529, %v527
  %v770 = vpack.c.b16 %v530, %v528
  %v771 = vpack.c.b16 %v533, %v531
  %v772 = vpack.c.b16 %v534, %v532
  %v773 = vpack.c.b16 %v537, %v535
  %v774 = vpack.c.b16 %v538, %v536
  %v775 = vpack.c.b16 %v541, %v539
  %v776 = vpack.c.b16 %v542, %v540
  %v777 = vpack.c.b16 %v545, %v543
  %v778 = vpack.c.b16 %v546, %v544
  %v779 = vpack.c.b16 %v549, %v547
  %v780 = vpack.c.b16 %v550, %v548
  %v781 = vpack.c.b16 %v553, %v551
  %v782 = vpack.c.b16 %v554, %v552
  %v783 = vpack.c.b16 %v557, %v555
  %v784 = vpack.c.b16 %v558, %v556
  %v785 = vpack.c.b16 %v561, %v559
  %v786 = vpack.c.b16 %v562, %v560
  %v787 = vpack.c.b16 %v565, %v563
  %v788 = vpack.c.b16 %v566, %v564
  %v789 = vpack.c.b16 %v569, %v567
  %v790 = vpack.c.b16 %v570, %v568
  %v791 = vpack.c.b16 %v573, %v571
  %v792 = vpack.c.b16 %v574, %v572
  %v793 = vpack.c.b16 %v577, %v575
  %v794 = vpack.c.b16 %v578, %v576
  %v795 = vpack.c.b16 %v581, %v579
  %v796 = vpack.c.b16 %v582, %v580
  %v797 = vpack.c.b16 %v585, %v583
  %v798 = vpack.c.b16 %v586, %v584
  %v799 = vpack.c.b16 %v589, %v587
  %v800 = vpack.c.b16 %v590, %v588
  %v801 = vpack.c.b16 %v593, %v591
  %v802 = vpack.c.b16 %v594, %v592
  %v803 = vpack.c.b16 %v597, %v595
  %v804 = vpack.c.b16 %v598, %v596
  %v805 = vpack.c.b16 %v601, %v599
  %v806 = vpack.c.b16 %v602, %v600
  %v807 = vpack.c.b16 %v605, %v603
  %v808 = vpack.c.b16 %v606, %v604
  %v809 = vpack.c.b16 %v609, %v607
  %v810 = vpack.c.b16 %v610, %v608
  %v811 = vpack.c.b16 %v613, %v611
  %v812 = vpack.c.b16 %v614, %v612
  %v813 = vpack.c.b16 %v617, %v615
  %v814 = vpack.c.b16 %v618, %v616
  %v815 = vpack.c.b16 %v621, %v619
  %v816 = vpack.c.b16 %v622, %v620
  %v817 = vpack.c.b16 %v625, %v623
  %v818 = vpack.c.b16 %v626, %v624
  %v819 = vpack.c.b16 %v629, %v627
  %v820 = vpack.c.b16 %v630, %v628
  %v821 = vpack.c.b16 %v633, %v631
  %v822 = vpack.c.b16 %v634, %v632
  %v823 = vpack.c.b16 %v637, %v635
  %v824 = vpack.c.b16 %v638, %v636
  %v825 = vpack.c.b16 %v641, %v639
  %v826 = vpack.c.b16 %v642, %v640
  %v827 = vpack.c.b16 %v645, %v643
  %v828 = vpack.c.b16 %v646, %v644
  %v829 = vpack.c.b16 %v649, %v647
  %v830 = vpack.c.b16 %v650, %v648
  %v831 = vpack.c.b16 %v653, %v651
  %v832 = vpack.c.b16 %v654, %v652
  %v833 = vpack.c.b16 %v657, %v655
  %v834 = vpack.c.b16 %v658, %v656
  %v835 = vpack.c.b16 %v661, %v659
  %v836 = vpack.c.b16 %v662, %v660
  %v837 = vpack.c.b16 %v665, %v663
  %v838 = vpack.c.b16 %v666, %v664
  %v839 = vpack.c.b16 %v669, %v667
  %v840 = vpack.c.b16 %v670, %v668
  %v841 = vpack.c.b16 %v673, %v671
  %v842 = vpack.c.b16 %v674, %v672
  %v843 = vpack.c.b16 %v677, %v675
  %v844 = vpack.c.b16 %v678, %v676
  %v845 = vpack.c.b16 %v681, %v679
  %v846 = vpack.c.b16 %v682, %v680
  %v847 = vpack.c.b16 %v685, %v683
  %v848 = vpack.c.b16 %v686, %v684
  %v849 = vpack.c.b16 %v689, %v687
  %v850 = vpack.c.b16 %v690, %v688
  %v851 = vpack.c.b16 %v693, %v691
  %v852 = vpack.c.b16 %v694, %v692
  %v853 = vpack.c.b16 %v697, %v695
  %v854 = vpack.c.b16 %v698, %v696
  %v855 = vpack.c.b16 %v701, %v699
  %v856 = vpack.c.b16 %v702, %v700
  %v857 = vpack.c.b16 %v705, %v703
  %v858 = vpack.c.b16 %v706, %v704
  %v859 = vpack.c.b16 %v709, %v707
  %v860 = vpack.c.b16 %v710, %v708
  %v861 = vpack.c.b16 %v713, %v711
  %v862 = vpack.c.b16 %v714, %v712
  %v863 = vpack.c.b16 %v717, %v715
  %v864 = vpack.c.b16 %v718, %v716
  %v865 = vpack.c.b16 %v721, %v719
  %v866 = vpack.c.b16 %v722, %v720
  %1011 = vmatprep.subr.bf16.mxu0 %v724
  %1012 = vmatpush1.bf16.msra.mxu0 %v723
  %1013 = vmatprep.subr.bf16.mxu0 %v726
  %1014 = vmatpush1.bf16.msra.mxu0 %v725
  %1015 = vmatprep.subr.bf16.mxu0 %v728
  %1016 = vmatpush1.bf16.msra.mxu0 %v727
  %1017 = vmatprep.subr.bf16.mxu0 %v730
  %1018 = vmatpush1.bf16.msra.mxu0 %v729
  %1019 = vmatprep.subr.bf16.mxu0 %v732
  %1020 = vmatpush1.bf16.msra.mxu0 %v731
  %1021 = vmatprep.subr.bf16.mxu0 %v734
  %1022 = vmatpush1.bf16.msra.mxu0 %v733
  %1023 = vmatprep.subr.bf16.mxu0 %v736
  %1024 = vmatpush1.bf16.msra.mxu0 %v735
  %1025 = vmatprep.subr.bf16.mxu0 %v738
  %1026 = vmatpush1.bf16.msra.mxu0 %v737
  %1027 = vmatprep.subr.bf16.mxu0 %v740
  %1028 = vmatpush1.bf16.msra.mxu0 %v739
  %1029 = vmatprep.subr.bf16.mxu0 %v742
  %1030 = vmatpush1.bf16.msra.mxu0 %v741
  %1031 = vmatprep.subr.bf16.mxu0 %v744
  %1032 = vmatpush1.bf16.msra.mxu0 %v743
  %1033 = vmatprep.subr.bf16.mxu0 %v746
  %1034 = vmatpush1.bf16.msra.mxu0 %v745
  %1035 = vmatprep.subr.bf16.mxu0 %v748
  %1036 = vmatpush1.bf16.msra.mxu0 %v747
  %1037 = vmatprep.subr.bf16.mxu0 %v750
  %1038 = vmatpush1.bf16.msra.mxu0 %v749
  %1039 = vmatprep.subr.bf16.mxu0 %v752
  %1040 = vmatpush1.bf16.msra.mxu0 %v751
  %1041 = vmatprep.subr.bf16.mxu0 %v754
  %1042 = vmatpush1.bf16.msra.mxu0 %v753
  %1043 = vmatprep.mubr.bf16.mxu0 %v256
  %1044 = vmatmul.mubr.bf16.gmra.mrb[0].mxu0 %v255
  %v1045 = vpop.f32.mrb[0].mxu0
  %v1046 = vadd.f32 %v192, %v1045
  %v1047 = vpop.f32.mrb[0].mxu0
  %v1048 = vadd.f32 %v196, %v1047
  %v1049 = vpop.f32.mrb[0].mxu0
  %v1050 = vadd.f32 %v192, %v1049
  %v1051 = vpop.f32.mrb[0].mxu0
  %v1052 = vadd.f32 %v196, %v1051
  %1053 = vmatprep.mubr.bf16.mxu0 %v265
  %1054 = vmatmul.mubr.bf16.gmra.mrb[0].mxu0 %v264
  %v1055 = vpop.f32.mrb[0].mxu0
  %v1056 = vadd.f32 %v192, %v1055
  %v1057 = vpop.f32.mrb[0].mxu0
  %v1058 = vadd.f32 %v196, %v1057
  %v1059 = vpop.f32.mrb[0].mxu0
  %v1060 = vadd.f32 %v192, %v1059
  %v1061 = vpop.f32.mrb[0].mxu0
  %v1062 = vadd.f32 %v196, %v1061
  %1063 = vdwg.mxu0
  %1064 = vmatprep.subr.bf16.mxu0 %v756
  %1065 = vmatpush1.bf16.msra.mxu0 %v755
  %1066 = vmatprep.subr.bf16.mxu0 %v758
  %1067 = vmatpush1.bf16.msra.mxu0 %v757
  %1068 = vmatprep.subr.bf16.mxu0 %v760
  %1069 = vmatpush1.bf16.msra.mxu0 %v759
  %1070 = vmatprep.subr.bf16.mxu0 %v762
  %1071 = vmatpush1.bf16.msra.mxu0 %v761
  %1072 = vmatprep.subr.bf16.mxu0 %v764
  %1073 = vmatpush1.bf16.msra.mxu0 %v763
  %1074 = vmatprep.subr.bf16.mxu0 %v766
  %1075 = vmatpush1.bf16.msra.mxu0 %v765
  %1076 = vmatprep.subr.bf16.mxu0 %v768
  %1077 = vmatpush1.bf16.msra.mxu0 %v767
  %1078 = vmatprep.subr.bf16.mxu0 %v770
  %1079 = vmatpush1.bf16.msra.mxu0 %v769
  %1080 = vmatprep.subr.bf16.mxu0 %v772
  %1081 = vmatpush1.bf16.msra.mxu0 %v771
  %1082 = vmatprep.subr.bf16.mxu0 %v774
  %1083 = vmatpush1.bf16.msra.mxu0 %v773
  %1084 = vmatprep.subr.bf16.mxu0 %v776
  %1085 = vmatpush1.bf16.msra.mxu0 %v775
  %1086 = vmatprep.subr.bf16.mxu0 %v778
  %1087 = vmatpush1.bf16.msra.mxu0 %v777
  %1088 = vmatprep.subr.bf16.mxu0 %v780
  %1089 = vmatpush1.bf16.msra.mxu0 %v779
  %1090 = vmatprep.subr.bf16.mxu0 %v782
  %1091 = vmatpush1.bf16.msra.mxu0 %v781
  %1092 = vmatprep.subr.bf16.mxu0 %v784
  %1093 = vmatpush1.bf16.msra.mxu0 %v783
  %1094 = vmatprep.subr.bf16.mxu0 %v786
  %1095 = vmatpush1.bf16.msra.mxu0 %v785
  %1096 = vmatprep.mubr.bf16.mxu0 %v258
  %1097 = vmatmul.mubr.bf16.gmra.mrb[0].mxu0 %v257
  %v1098 = vpop.f32.mrb[0].mxu0
  %v1099 = vadd.f32 %v1046, %v1098
  %v1100 = vpop.f32.mrb[0].mxu0
  %v1101 = vadd.f32 %v1048, %v1100
  %v1102 = vpop.f32.mrb[0].mxu0
  %v1103 = vadd.f32 %v1050, %v1102
  %v1104 = vpop.f32.mrb[0].mxu0
  %v1105 = vadd.f32 %v1052, %v1104
  %1106 = vmatprep.mubr.bf16.mxu0 %v267
  %1107 = vmatmul.mubr.bf16.gmra.mrb[0].mxu0 %v266
  %v1108 = vpop.f32.mrb[0].mxu0
  %v1109 = vadd.f32 %v1056, %v1108
  %v1110 = vpop.f32.mrb[0].mxu0
  %v1111 = vadd.f32 %v1058, %v1110
  %v1112 = vpop.f32.mrb[0].mxu0
  %v1113 = vadd.f32 %v1060, %v1112
  %v1114 = vpop.f32.mrb[0].mxu0
  %v1115 = vadd.f32 %v1062, %v1114
  %1116 = vdwg.mxu0
  %1117 = vmatprep.subr.bf16.mxu0 %v788
  %1118 = vmatpush1.bf16.msra.mxu0 %v787
  %1119 = vmatprep.subr.bf16.mxu0 %v790
  %1120 = vmatpush1.bf16.msra.mxu0 %v789
  %1121 = vmatprep.subr.bf16.mxu0 %v792
  %1122 = vmatpush1.bf16.msra.mxu0 %v791
  %1123 = vmatprep.subr.bf16.mxu0 %v794
  %1124 = vmatpush1.bf16.msra.mxu0 %v793
  %1125 = vmatprep.subr.bf16.mxu0 %v796
  %1126 = vmatpush1.bf16.msra.mxu0 %v795
  %1127 = vmatprep.subr.bf16.mxu0 %v798
  %1128 = vmatpush1.bf16.msra.mxu0 %v797
  %1129 = vmatprep.subr.bf16.mxu0 %v800
  %1130 = vmatpush1.bf16.msra.mxu0 %v799
  %1131 = vmatprep.subr.bf16.mxu0 %v802
  %1132 = vmatpush1.bf16.msra.mxu0 %v801
  %1133 = vmatprep.subr.bf16.mxu0 %v804
  %1134 = vmatpush1.bf16.msra.mxu0 %v803
  %1135 = vmatprep.subr.bf16.mxu0 %v806
  %1136 = vmatpush1.bf16.msra.mxu0 %v805
  %1137 = vmatprep.subr.bf16.mxu0 %v808
  %1138 = vmatpush1.bf16.msra.mxu0 %v807
  %1139 = vmatprep.subr.bf16.mxu0 %v810
  %1140 = vmatpush1.bf16.msra.mxu0 %v809
  %1141 = vmatprep.subr.bf16.mxu0 %v812
  %1142 = vmatpush1.bf16.msra.mxu0 %v811
  %1143 = vmatprep.subr.bf16.mxu0 %v814
  %1144 = vmatpush1.bf16.msra.mxu0 %v813
  %1145 = vmatprep.subr.bf16.mxu0 %v816
  %1146 = vmatpush1.bf16.msra.mxu0 %v815
  %1147 = vmatprep.subr.bf16.mxu0 %v818
  %1148 = vmatpush1.bf16.msra.mxu0 %v817
  %1149 = vmatprep.mubr.bf16.mxu0 %v260
  %1150 = vmatmul.mubr.bf16.gmra.mrb[0].mxu0 %v259
  %v1151 = vpop.f32.mrb[0].mxu0
  %v1152 = vadd.f32 %v1099, %v1151
  %v1153 = vpop.f32.mrb[0].mxu0
  %v1154 = vadd.f32 %v1101, %v1153
  %v1155 = vpop.f32.mrb[0].mxu0
  %v1156 = vadd.f32 %v1103, %v1155
  %v1157 = vpop.f32.mrb[0].mxu0
  %v1158 = vadd.f32 %v1105, %v1157
  %1159 = vmatprep.mubr.bf16.mxu0 %v269
  %1160 = vmatmul.mubr.bf16.gmra.mrb[0].mxu0 %v268
  %v1161 = vpop.f32.mrb[0].mxu0
  %v1162 = vadd.f32 %v1109, %v1161
  %v1163 = vpop.f32.mrb[0].mxu0
  %v1164 = vadd.f32 %v1111, %v1163
  %v1165 = vpop.f32.mrb[0].mxu0
  %v1166 = vadd.f32 %v1113, %v1165
  %v1167 = vpop.f32.mrb[0].mxu0
  %v1168 = vadd.f32 %v1115, %v1167
  %1169 = vdwg.mxu0
  %1170 = vmatprep.subr.bf16.mxu0 %v820
  %1171 = vmatpush1.bf16.msra.mxu0 %v819
  %1172 = vmatprep.subr.bf16.mxu0 %v822
  %1173 = vmatpush1.bf16.msra.mxu0 %v821
  %1174 = vmatprep.subr.bf16.mxu0 %v824
  %1175 = vmatpush1.bf16.msra.mxu0 %v823
  %1176 = vmatprep.subr.bf16.mxu0 %v826
  %1177 = vmatpush1.bf16.msra.mxu0 %v825
  %1178 = vmatprep.subr.bf16.mxu0 %v828
  %1179 = vmatpush1.bf16.msra.mxu0 %v827
  %1180 = vmatprep.subr.bf16.mxu0 %v830
  %1181 = vmatpush1.bf16.msra.mxu0 %v829
  %1182 = vmatprep.subr.bf16.mxu0 %v832
  %1183 = vmatpush1.bf16.msra.mxu0 %v831
  %1184 = vmatprep.subr.bf16.mxu0 %v834
  %1185 = vmatpush1.bf16.msra.mxu0 %v833
  %1186 = vmatprep.subr.bf16.mxu0 %v836
  %1187 = vmatpush1.bf16.msra.mxu0 %v835
  %1188 = vmatprep.subr.bf16.mxu0 %v838
  %1189 = vmatpush1.bf16.msra.mxu0 %v837
  %1190 = vmatprep.subr.bf16.mxu0 %v840
  %1191 = vmatpush1.bf16.msra.mxu0 %v839
  %1192 = vmatprep.subr.bf16.mxu0 %v842
  %1193 = vmatpush1.bf16.msra.mxu0 %v841
  %1194 = vmatprep.subr.bf16.mxu0 %v844
  %1195 = vmatpush1.bf16.msra.mxu0 %v843
  %1196 = vmatprep.subr.bf16.mxu0 %v846
  %1197 = vmatpush1.bf16.msra.mxu0 %v845
  %1198 = vmatprep.subr.bf16.mxu0 %v848
  %1199 = vmatpush1.bf16.msra.mxu0 %v847
  %1200 = vmatprep.subr.bf16.mxu0 %v850
  %1201 = vmatpush1.bf16.msra.mxu0 %v849
  %1202 = vmatprep.mubr.bf16.mxu0 %v262
  %1203 = vmatmul.mubr.bf16.gmra.mrb[0].mxu0 %v261
  %v1204 = vpop.f32.mrb[0].mxu0
  %v1205 = vadd.f32 %v1152, %v1204
  %v1206 = vpop.f32.mrb[0].mxu0
  %v1207 = vadd.f32 %v1154, %v1206
  %v1208 = vpop.f32.mrb[0].mxu0
  %v1209 = vadd.f32 %v1156, %v1208
  %v1210 = vpop.f32.mrb[0].mxu0
  %v1211 = vadd.f32 %v1158, %v1210
  %1212 = vmatprep.mubr.bf16.mxu0 %v271
  %1213 = vmatmul.mubr.bf16.gmra.mrb[0].mxu0 %v270
  %v1214 = vpop.f32.mrb[0].mxu0
  %v1215 = vadd.f32 %v1162, %v1214
  %v1216 = vpop.f32.mrb[0].mxu0
  %v1217 = vadd.f32 %v1164, %v1216
  %v1218 = vpop.f32.mrb[0].mxu0
  %v1219 = vadd.f32 %v1166, %v1218
  %v1220 = vpop.f32.mrb[0].mxu0
  %v1221 = vadd.f32 %v1168, %v1220
  %1222 = vdwg.mxu0
  %1223 = vmatprep.subr.bf16.mxu0 %v852
  %1224 = vmatpush1.bf16.msra.mxu0 %v851
  %1225 = vmatprep.subr.bf16.mxu0 %v854
  %1226 = vmatpush1.bf16.msra.mxu0 %v853
  %1227 = vmatprep.subr.bf16.mxu0 %v856
  %1228 = vmatpush1.bf16.msra.mxu0 %v855
  %1229 = vmatprep.subr.bf16.mxu0 %v858
  %1230 = vmatpush1.bf16.msra.mxu0 %v857
  %1231 = vmatprep.subr.bf16.mxu0 %v860
  %1232 = vmatpush1.bf16.msra.mxu0 %v859
  %1233 = vmatprep.subr.bf16.mxu0 %v862
  %1234 = vmatpush1.bf16.msra.mxu0 %v861
  %1235 = vmatprep.subr.bf16.mxu0 %v864
  %1236 = vmatpush1.bf16.msra.mxu0 %v863
  %1237 = vmatprep.subr.bf16.mxu0 %v866
  %1238 = vmatpush1.bf16.msra.mxu0 %v865
  %1239 = vmatprep.subr.bf16.mxu0 0
  %1240 = vmatpush1.bf16.msra.mxu0 0
  %1241 = vmatprep.subr.bf16.mxu0 0
  %1242 = vmatpush1.bf16.msra.mxu0 0
  %1243 = vmatprep.subr.bf16.mxu0 0
  %1244 = vmatpush1.bf16.msra.mxu0 0
  %1245 = vmatprep.subr.bf16.mxu0 0
  %1246 = vmatpush1.bf16.msra.mxu0 0
  %1247 = vmatprep.subr.bf16.mxu0 0
  %1248 = vmatpush1.bf16.msra.mxu0 0
  %1249 = vmatprep.subr.bf16.mxu0 0
  %1250 = vmatpush1.bf16.msra.mxu0 0
  %1251 = vmatprep.subr.bf16.mxu0 0
  %1252 = vmatpush1.bf16.msra.mxu0 0
  %1253 = vmatprep.subr.bf16.mxu0 0
  %1254 = vmatpush1.bf16.msra.mxu0 0
  %1255 = vmatprep.mubr.bf16.mxu0 0
  %1256 = vmatmul.mubr.bf16.gmra.mrb[0].mxu0 %v263
  %v1257 = vpop.f32.mrb[0].mxu0
  %v1258 = vadd.f32 %v1205, %v1257
  %v1259 = vpop.f32.mrb[0].mxu0
  %v1260 = vadd.f32 %v1207, %v1259
  %v1261 = vpop.f32.mrb[0].mxu0
  %v1262 = vadd.f32 %v1209, %v1261
  %v1263 = vpop.f32.mrb[0].mxu0
  %v1264 = vadd.f32 %v1211, %v1263
  %1265 = vmatprep.mubr.bf16.mxu0 0
  %1266 = vmatmul.mubr.bf16.gmra.mrb[0].mxu0 %v272
  %v1267 = vpop.f32.mrb[0].mxu0
  %v1268 = vadd.f32 %v1215, %v1267
  %v1269 = vpop.f32.mrb[0].mxu0
  %v1270 = vadd.f32 %v1217, %v1269
  %v1271 = vpop.f32.mrb[0].mxu0
  %v1272 = vadd.f32 %v1219, %v1271
  %v1273 = vpop.f32.mrb[0].mxu0
  %v1274 = vadd.f32 %v1221, %v1273
  %1275 = vdwg.mxu0
  %vm1276 = vcmp.ge.f32.partialorder %v1258, 0.0
  %vm1277 = vcmp.ge.f32.partialorder %v1260, 0.0
  %vm1278 = vcmp.ge.f32.partialorder %v1262, 0.0
  %vm1279 = vcmp.ge.f32.partialorder %v1264, 0.0
  %vm1280 = vcmp.ge.f32.partialorder %v1268, 0.0
  %vm1281 = vcmp.ge.f32.partialorder %v1270, 0.0
  %vm1282 = vcmp.ge.f32.partialorder %v1272, 0.0
  %vm1283 = vcmp.ge.f32.partialorder %v1274, 0.0
  %v1284 = vmul.f32 %v1258, 0.2
  %v1285 = vmul.f32 %v1260, 0.2
  %v1286 = vmul.f32 %v1262, 0.2
  %v1287 = vmul.f32 %v1264, 0.2
  %v1288 = vmul.f32 %v1268, 0.2
  %v1289 = vmul.f32 %v1270, 0.2
  %v1290 = vmul.f32 %v1272, 0.2
  %v1291 = vmul.f32 %v1274, 0.2
  %v1292 = vsel %vm1276, %v1258, %v1284
  %v1293 = vsel %vm1277, %v1260, %v1285
  %v1294 = vsel %vm1278, %v1262, %v1286
  %v1295 = vsel %vm1279, %v1264, %v1287
  %v1296 = vsel %vm1280, %v1268, %v1288
  %v1297 = vsel %vm1281, %v1270, %v1289
  %v1298 = vsel %vm1282, %v1272, %v1290
  %v1299 = vsel %vm1283, %v1274, %v1291
  %v1300 = vld [vmem:[%s3] sm:$0xff]
  %v1301 = vld [vmem:[%s3 + $0x8] sm:$0xff]
  %v1302 = vld [vmem:[%s3 + $0x10] sm:$0xff]
  %v1303 = vld [vmem:[%s3 + $0x18] sm:$0xff]
  %v1304 = vmul.f32 %v1292, %v1300
  %v1305 = vmul.f32 %v1293, %v1301
  %v1306 = vmul.f32 %v1294, %v1302
  %v1307 = vmul.f32 %v1295, %v1303
  %v1308 = vmul.f32 %v1296, %v1300
  %v1309 = vmul.f32 %v1297, %v1301
  %v1310 = vmul.f32 %v1298, %v1302
  %v1311 = vmul.f32 %v1299, %v1303
  %v1312 = vadd.f32 %v1304, %v1305
  %1313 = vadd.xlane.f32.xlu0 %v1312
  %v1314 = vpop.xlane.xlu0 %1313
  %v1315 = vadd.f32 %v1306, %v1307
  %1316 = vadd.xlane.f32.xlu0 %v1315
  %v1317 = vpop.xlane.xlu0 %1316
  %v1318 = vadd.f32 %v1308, %v1309
  %1319 = vadd.xlane.f32.xlu0 %v1318
  %v1320 = vpop.xlane.xlu0 %1319
  %v1321 = vadd.f32 %v1310, %v1311
  %1322 = vadd.xlane.f32.xlu0 %v1321
  %v1323 = vpop.xlane.xlu0 %1322
  %v1328 = vlaneseq
  %v1329 = vand.u32 %v1328, 127
  %v1330 = vlaneseq
  %v1331 = vshrl.u32 %v1330, 7
  %v1332 = vsub.s32 %v1329, %v1331
  %v1333 = vrot.slane %v1314, %v1332
  %v1334 = vadd.s32 %v1329, 4294967288
  %v1335 = vlaneseq
  %v1336 = vshrl.u32 %v1335, 7
  %v1337 = vsub.s32 %v1334, %v1336
  %v1338 = vrot.slane %v1317, %v1337
  %vm1339 = vcmask 130112
  %v1340 = vsel %vm1339, %v1338, %v1333
  %v1341 = vlaneseq
  %v1342 = vshrl.u32 %v1341, 7
  %v1343 = vsub.s32 %v1329, %v1342
  %v1344 = vrot.slane %v1320, %v1343
  %v1345 = vlaneseq
  %v1346 = vshrl.u32 %v1345, 7
  %v1347 = vsub.s32 %v1334, %v1346
  %v1348 = vrot.slane %v1323, %v1347
  %v1349 = vsel %vm1339, %v1348, %v1344
  %vm1350 = vcmask 1041409
  %v1351 = vsel %vm1350, %v1349, %v1340
  %vm1353 = vcmask 123904
  %v1354 = vsel %vm1353, %v1351, 0.0
  %1355 = vadd.xlane.f32.xlu0 %v1354
  %v1356 = vpop.xlane.xlu0 %1355
  %v1357 = vld [vmem:[#allocation2] sm:$0x1]
  %v1359 = vlaneseq
  %v1360 = vshrl.u32 %v1359, 7
  %v1361 = vsub.s32 0, %v1360
  %v1362 = vrot.slane %v1357, %v1361
  %v1364 = vadd.f32 %v1356, %v1362
  %vm1365 = vcmask 1024
  %1366 = vst.msk [vmem:[%s5] sm:$0x3] %vm1365, %v1364
  // Predicated region
  $region22: #{discriminator_forward.7} parent=0 // pred_check
    _
  $region23: #{discriminator_forward.7} parent=0 // pred_check_branch
    %1368 = sbr.rel (0) target = $region25
  $region24: #{discriminator_forward.7} parent=0 // pred_region
    _
  $region25: #{discriminator_forward.7} parent=0 // pred_fallthru
    _
  // Predicated region
  $region26: #{discriminator_forward.7} parent=0 // pred_check
    _
  $region27: #{discriminator_forward.7} parent=0 // pred_check_branch
    %1370 = sbr.rel (0) target = $region29
  $region28: #{discriminator_forward.7} parent=0 // pred_region
    _
  $region29: #{discriminator_forward.7} parent=0 // pred_fallthru
    _

</llo_original>
